<compile_context>
chip_gen: v6e
topology: v6e:2x2x1
jax: 0.10.0
libtpu: 0.0.40
codegen_flags: <defaults>
</compile_context>

<pallas_src>
import functools

import jax
import jax.numpy as jnp
from jax.experimental import pallas as pl
from jax.experimental.pallas import tpu as pltpu


def basic_block_kernel(x_ref, w1_ref, b1_ref, w2_ref, b2_ref, out_ref,
                       *, H, W, C, L):
    """One grid step processes B = L // (H*W) images in a lane-dense (C, L) slab."""
    HW = H * W
    x_t = x_ref[...]                                   # (C, L) f32, kept for residual

    # Per-lane spatial coordinates (within each image) from a single iota.
    col = jax.lax.broadcasted_iota(jnp.int32, (1, L), 1)
    if (HW & (HW - 1)) == 0 and (W & (W - 1)) == 0:    # pow2 fast path (demo shapes)
        hw = col & (HW - 1)
        hpos = hw >> (W.bit_length() - 1)
        wpos = hw & (W - 1)
    else:                                              # TODO(synk): slower generic path
        hw = col % HW
        hpos = hw // W
        wpos = hw % W

    def conv3x3(src, w_ref, b_ref):
        # 3x3 / stride 1 / pad 1 conv as 9 tap-dots accumulated in f32 vregs.
        # Spatial shifts are XLU lane rolls; zero padding is a per-tap 0/1
        # mask built from two coordinate compares (free VPU filler).
        acc = jnp.zeros((C, L), jnp.float32)
        for t in range(9):
            dy, dx = divmod(t, 3)
            oy, ox = dy - 1, dx - 1
            d = oy * W + ox                            # flat spatial offset of the tap
            shift = (-d) % L
            shifted = src if shift == 0 else pltpu.roll(src, shift=shift, axis=1)
            valid = ((hpos + oy >= 0) & (hpos + oy < H) &
                     (wpos + ox >= 0) & (wpos + ox < W))
            masked = shifted * valid.astype(jnp.float32)     # (1,L) mask broadcast
            acc = acc + jnp.dot(w_ref[t], masked,
                                preferred_element_type=jnp.float32)
        return acc + b_ref[...]                        # (C,1) bias lane-broadcast

    out1 = jnp.maximum(conv3x3(x_t, w1_ref, b1_ref), 0.0)     # conv1 + ReLU
    out2 = conv3x3(out1, w2_ref, b2_ref)                       # conv2
    out_ref[...] = jnp.maximum(out2 + x_t, 0.0)                # residual + final ReLU


def basic_block(x, w1, b1, w2, b2, *, images_per_step=None):
    """x: (N, C, H, W) f32 (NCHW); w*: (C, C, 3, 3) OIHW; b*: (C,)."""
    N, C, H, W = x.shape
    HW = H * W

    # Only the identity-residual BasicBlock config is implemented:
    # 3x3 kernels, stride=1, pad=1, dilation=1, downsample=None.
    assert w1.shape == (C, C, 3, 3) and w2.shape == (C, C, 3, 3), "unsupported conv config"
    assert b1.shape == (C,) and b2.shape == (C,), "unsupported bias config"
    # Layout assumptions for lane-dense, unmasked tiles.
    assert HW % 128 == 0, "H*W must be a multiple of 128"
    assert C % 8 == 0, "C must be a multiple of 8"

    if images_per_step is None:
        # Batch 2 images per step when that still leaves >= 2 parallel grid
        # steps (keeps both v7x TensorCores fed); otherwise 1 image per step.
        images_per_step = 2 if (N % 2 == 0 and N >= 4) else 1
    B = images_per_step
    assert N % B == 0, "batch must be divisible by images_per_step"
    L = B * HW

    # Lane-dense activation slab: (C, N*HW), column = n*HW + h*W + w.
    x_lanes = x.reshape(N, C, HW).transpose(1, 0, 2).reshape(C, N * HW)

    # Per-tap weights: w_taps[t, co, ci] = w[co, ci, dy, dx], t = dy*3 + dx.
    w1t = w1.transpose(2, 3, 0, 1).reshape(9, C, C)
    w2t = w2.transpose(2, 3, 0, 1).reshape(9, C, C)
    b1c = b1.reshape(C, 1)
    b2c = b2.reshape(C, 1)

    kern = functools.partial(basic_block_kernel, H=H, W=W, C=C, L=L)
    out = pl.pallas_call(
        kern,
        out_shape=jax.ShapeDtypeStruct((C, N * HW), jnp.float32),
        grid=(N // B,),
        in_specs=[
            pl.BlockSpec((C, L), lambda g: (0, g)),         # x slab (lane-dense)
            pl.BlockSpec((9, C, C), lambda g: (0, 0, 0)),   # w1 per-tap tiles
            pl.BlockSpec((C, 1), lambda g: (0, 0)),         # b1
            pl.BlockSpec((9, C, C), lambda g: (0, 0, 0)),   # w2 per-tap tiles
            pl.BlockSpec((C, 1), lambda g: (0, 0)),         # b2
        ],
        out_specs=pl.BlockSpec((C, L), lambda g: (0, g)),
        compiler_params=pltpu.CompilerParams(
            dimension_semantics=("parallel",)),
    )(x_lanes, w1t, b1c, w2t, b2c)

    return out.reshape(C, N, HW).transpose(1, 0, 2).reshape(N, C, H, W)


def reference_basic_block(x, w1, b1, w2, b2):
    """Pure-JAX reference (NCHW/OIHW), mirrors the PyTorch forward."""
    dn = jax.lax.conv_dimension_numbers(x.shape, w1.shape,
                                        ("NCHW", "OIHW", "NCHW"))
    out = jax.lax.conv_general_dilated(x, w1, (1, 1), ((1, 1), (1, 1)),
                                       dimension_numbers=dn)
    out = jax.nn.relu(out + b1.reshape(1, -1, 1, 1))
    out = jax.lax.conv_general_dilated(out, w2, (1, 1), ((1, 1), (1, 1)),
                                       dimension_numbers=dn)
    out = out + b2.reshape(1, -1, 1, 1) + x
    return jax.nn.relu(out)


if __name__ == "__main__":
    # BasicBlock(inplanes=16, planes=16, stride=1, downsample=None, pad=1, dilation=1)
    N, C, H, W = 4, 16, 16, 16

    key = jax.random.PRNGKey(0)
    kx, k1, k2, k3, k4 = jax.random.split(key, 5)

    x = jax.random.normal(kx, (N, C, H, W), dtype=jnp.float32)
    fan_in = 3 * 3 * C
    w1 = jax.random.normal(k1, (C, C, 3, 3), dtype=jnp.float32) / jnp.sqrt(fan_in)
    b1 = jax.random.normal(k2, (C,), dtype=jnp.float32) * 0.1
    w2 = jax.random.normal(k3, (C, C, 3, 3), dtype=jnp.float32) / jnp.sqrt(fan_in)
    b2 = jax.random.normal(k4, (C,), dtype=jnp.float32) * 0.1

    out = basic_block(x, w1, b1, w2, b2)
    out = jax.block_until_ready(out)

    ref = reference_basic_block(x, w1, b1, w2, b2)
    assert out.shape == (N, C, H, W)
    assert jnp.allclose(out, ref, atol=1e-4, rtol=1e-4), "mismatch vs reference"

    print("KERNEL_OK")
</pallas_src>

<mosaic_0001>
module attributes {stable_mosaic.version = 11 : i64} {
  func.func @basic_block_kernel(%arg0: i32, %arg1: memref<16x512xf32, #tpu.memory_space<vmem>>, %arg2: memref<9x16x16xf32, #tpu.memory_space<vmem>>, %arg3: memref<16x1xf32, #tpu.memory_space<vmem>>, %arg4: memref<9x16x16xf32, #tpu.memory_space<vmem>>, %arg5: memref<16x1xf32, #tpu.memory_space<vmem>>, %arg6: memref<16x512xf32, #tpu.memory_space<vmem>>) attributes {dimension_semantics = [#tpu.dimension_semantics<parallel>], iteration_bounds = array<i64: 2>, scalar_prefetch = 0 : i64, scratch_operands = 0 : i64, tpu.core_type = #tpu.core_type<tc>, window_params = [{transform_indices = @transform_0, window_bounds = array<i64: 16, 512>}, {pipeline_mode = #tpu.pipeline_mode<synchronous>, transform_indices = @transform_1, window_bounds = array<i64: 9, 16, 16>}, {pipeline_mode = #tpu.pipeline_mode<synchronous>, transform_indices = @transform_2, window_bounds = array<i64: 16, 1>}, {pipeline_mode = #tpu.pipeline_mode<synchronous>, transform_indices = @transform_3, window_bounds = array<i64: 9, 16, 16>}, {pipeline_mode = #tpu.pipeline_mode<synchronous>, transform_indices = @transform_4, window_bounds = array<i64: 16, 1>}, {transform_indices = @transform_5, window_bounds = array<i64: 16, 512>}]} {
    %c0 = arith.constant 0 : index
    %c0_0 = arith.constant 0 : index
    %0 = vector.load %arg1[%c0, %c0_0] : memref<16x512xf32, #tpu.memory_space<vmem>>, vector<16x512xf32>
    %1 = tpu.iota {dimensions = array<i32: 1>} : vector<1x512xi32>
    %c255_i32 = arith.constant 255 : i32
    %2 = vector.broadcast %c255_i32 : i32 to vector<1x512xi32>
    %3 = arith.andi %1, %2 : vector<1x512xi32>
    %c4_i32 = arith.constant 4 : i32
    %4 = vector.broadcast %c4_i32 : i32 to vector<1x512xi32>
    %5 = arith.shrsi %3, %4 : vector<1x512xi32>
    %c15_i32 = arith.constant 15 : i32
    %6 = vector.broadcast %c15_i32 : i32 to vector<1x512xi32>
    %7 = arith.andi %3, %6 : vector<1x512xi32>
    %cst = arith.constant 0.000000e+00 : f32
    %8 = vector.broadcast %cst : f32 to vector<16x512xf32>
    %c17_i32 = arith.constant 17 : i32
    %9 = tpu.dynamic_rotate %0 by %c17_i32 dim 1 : vector<16x512xf32>, i32 -> vector<16x512xf32>
    %c-1_i32 = arith.constant -1 : i32
    %10 = vector.broadcast %c-1_i32 : i32 to vector<1x512xi32>
    %11 = arith.addi %5, %10 : vector<1x512xi32>
    %c0_i32 = arith.constant 0 : i32
    %12 = vector.broadcast %c0_i32 : i32 to vector<1x512xi32>
    %13 = arith.cmpi sge, %11, %12 : vector<1x512xi32>
    %c-1_i32_1 = arith.constant -1 : i32
    %14 = vector.broadcast %c-1_i32_1 : i32 to vector<1x512xi32>
    %15 = arith.addi %5, %14 : vector<1x512xi32>
    %c16_i32 = arith.constant 16 : i32
    %16 = vector.broadcast %c16_i32 : i32 to vector<1x512xi32>
    %17 = arith.cmpi slt, %15, %16 : vector<1x512xi32>
    %18 = arith.andi %13, %17 : vector<1x512xi1>
    %c-1_i32_2 = arith.constant -1 : i32
    %19 = vector.broadcast %c-1_i32_2 : i32 to vector<1x512xi32>
    %20 = arith.addi %7, %19 : vector<1x512xi32>
    %c0_i32_3 = arith.constant 0 : i32
    %21 = vector.broadcast %c0_i32_3 : i32 to vector<1x512xi32>
    %22 = arith.cmpi sge, %20, %21 : vector<1x512xi32>
    %23 = arith.andi %18, %22 : vector<1x512xi1>
    %c-1_i32_4 = arith.constant -1 : i32
    %24 = vector.broadcast %c-1_i32_4 : i32 to vector<1x512xi32>
    %25 = arith.addi %7, %24 : vector<1x512xi32>
    %c16_i32_5 = arith.constant 16 : i32
    %26 = vector.broadcast %c16_i32_5 : i32 to vector<1x512xi32>
    %27 = arith.cmpi slt, %25, %26 : vector<1x512xi32>
    %28 = arith.andi %23, %27 : vector<1x512xi1>
    %29 = arith.extui %28 : vector<1x512xi1> to vector<1x512xi32>
    %30 = arith.sitofp %29 : vector<1x512xi32> to vector<1x512xf32>
    %31 = vector.broadcast %30 : vector<1x512xf32> to vector<16x512xf32>
    %32 = arith.mulf %9, %31 : vector<16x512xf32>
    %c0_6 = arith.constant 0 : index
    %c0_7 = arith.constant 0 : index
    %c0_8 = arith.constant 0 : index
    %33 = vector.load %arg2[%c0_6, %c0_7, %c0_8] : memref<9x16x16xf32, #tpu.memory_space<vmem>>, vector<1x16x16xf32>
    %34 = vector.shape_cast %33 : vector<1x16x16xf32> to vector<16x16xf32>
    %cst_9 = arith.constant dense<0.000000e+00> : vector<16x512xf32>
    %35 = tpu.matmul %34, %32, %cst_9 {dimension_numbers = #tpu.dot_dimension_numbers<[1], [0], [0], [1], [0, 0, 1, 1], [], []>} : vector<16x16xf32>, vector<16x512xf32>, vector<16x512xf32> -> vector<16x512xf32>
    %36 = arith.addf %8, %35 : vector<16x512xf32>
    %c16_i32_10 = arith.constant 16 : i32
    %37 = tpu.dynamic_rotate %0 by %c16_i32_10 dim 1 : vector<16x512xf32>, i32 -> vector<16x512xf32>
    %c-1_i32_11 = arith.constant -1 : i32
    %38 = vector.broadcast %c-1_i32_11 : i32 to vector<1x512xi32>
    %39 = arith.addi %5, %38 : vector<1x512xi32>
    %c0_i32_12 = arith.constant 0 : i32
    %40 = vector.broadcast %c0_i32_12 : i32 to vector<1x512xi32>
    %41 = arith.cmpi sge, %39, %40 : vector<1x512xi32>
    %c-1_i32_13 = arith.constant -1 : i32
    %42 = vector.broadcast %c-1_i32_13 : i32 to vector<1x512xi32>
    %43 = arith.addi %5, %42 : vector<1x512xi32>
    %c16_i32_14 = arith.constant 16 : i32
    %44 = vector.broadcast %c16_i32_14 : i32 to vector<1x512xi32>
    %45 = arith.cmpi slt, %43, %44 : vector<1x512xi32>
    %46 = arith.andi %41, %45 : vector<1x512xi1>
    %c0_i32_15 = arith.constant 0 : i32
    %47 = vector.broadcast %c0_i32_15 : i32 to vector<1x512xi32>
    %48 = arith.addi %7, %47 : vector<1x512xi32>
    %c0_i32_16 = arith.constant 0 : i32
    %49 = vector.broadcast %c0_i32_16 : i32 to vector<1x512xi32>
    %50 = arith.cmpi sge, %48, %49 : vector<1x512xi32>
    %51 = arith.andi %46, %50 : vector<1x512xi1>
    %c0_i32_17 = arith.constant 0 : i32
    %52 = vector.broadcast %c0_i32_17 : i32 to vector<1x512xi32>
    %53 = arith.addi %7, %52 : vector<1x512xi32>
    %c16_i32_18 = arith.constant 16 : i32
    %54 = vector.broadcast %c16_i32_18 : i32 to vector<1x512xi32>
    %55 = arith.cmpi slt, %53, %54 : vector<1x512xi32>
    %56 = arith.andi %51, %55 : vector<1x512xi1>
    %57 = arith.extui %56 : vector<1x512xi1> to vector<1x512xi32>
    %58 = arith.sitofp %57 : vector<1x512xi32> to vector<1x512xf32>
    %59 = vector.broadcast %58 : vector<1x512xf32> to vector<16x512xf32>
    %60 = arith.mulf %37, %59 : vector<16x512xf32>
    %c1 = arith.constant 1 : index
    %c0_19 = arith.constant 0 : index
    %c0_20 = arith.constant 0 : index
    %61 = vector.load %arg2[%c1, %c0_19, %c0_20] : memref<9x16x16xf32, #tpu.memory_space<vmem>>, vector<1x16x16xf32>
    %62 = vector.shape_cast %61 : vector<1x16x16xf32> to vector<16x16xf32>
    %cst_21 = arith.constant dense<0.000000e+00> : vector<16x512xf32>
    %63 = tpu.matmul %62, %60, %cst_21 {dimension_numbers = #tpu.dot_dimension_numbers<[1], [0], [0], [1], [0, 0, 1, 1], [], []>} : vector<16x16xf32>, vector<16x512xf32>, vector<16x512xf32> -> vector<16x512xf32>
    %64 = arith.addf %36, %63 : vector<16x512xf32>
    %c15_i32_22 = arith.constant 15 : i32
    %65 = tpu.dynamic_rotate %0 by %c15_i32_22 dim 1 : vector<16x512xf32>, i32 -> vector<16x512xf32>
    %c-1_i32_23 = arith.constant -1 : i32
    %66 = vector.broadcast %c-1_i32_23 : i32 to vector<1x512xi32>
    %67 = arith.addi %5, %66 : vector<1x512xi32>
    %c0_i32_24 = arith.constant 0 : i32
    %68 = vector.broadcast %c0_i32_24 : i32 to vector<1x512xi32>
    %69 = arith.cmpi sge, %67, %68 : vector<1x512xi32>
    %c-1_i32_25 = arith.constant -1 : i32
    %70 = vector.broadcast %c-1_i32_25 : i32 to vector<1x512xi32>
    %71 = arith.addi %5, %70 : vector<1x512xi32>
    %c16_i32_26 = arith.constant 16 : i32
    %72 = vector.broadcast %c16_i32_26 : i32 to vector<1x512xi32>
    %73 = arith.cmpi slt, %71, %72 : vector<1x512xi32>
    %74 = arith.andi %69, %73 : vector<1x512xi1>
    %c1_i32 = arith.constant 1 : i32
    %75 = vector.broadcast %c1_i32 : i32 to vector<1x512xi32>
    %76 = arith.addi %7, %75 : vector<1x512xi32>
    %c0_i32_27 = arith.constant 0 : i32
    %77 = vector.broadcast %c0_i32_27 : i32 to vector<1x512xi32>
    %78 = arith.cmpi sge, %76, %77 : vector<1x512xi32>
    %79 = arith.andi %74, %78 : vector<1x512xi1>
    %c1_i32_28 = arith.constant 1 : i32
    %80 = vector.broadcast %c1_i32_28 : i32 to vector<1x512xi32>
    %81 = arith.addi %7, %80 : vector<1x512xi32>
    %c16_i32_29 = arith.constant 16 : i32
    %82 = vector.broadcast %c16_i32_29 : i32 to vector<1x512xi32>
    %83 = arith.cmpi slt, %81, %82 : vector<1x512xi32>
    %84 = arith.andi %79, %83 : vector<1x512xi1>
    %85 = arith.extui %84 : vector<1x512xi1> to vector<1x512xi32>
    %86 = arith.sitofp %85 : vector<1x512xi32> to vector<1x512xf32>
    %87 = vector.broadcast %86 : vector<1x512xf32> to vector<16x512xf32>
    %88 = arith.mulf %65, %87 : vector<16x512xf32>
    %c2 = arith.constant 2 : index
    %c0_30 = arith.constant 0 : index
    %c0_31 = arith.constant 0 : index
    %89 = vector.load %arg2[%c2, %c0_30, %c0_31] : memref<9x16x16xf32, #tpu.memory_space<vmem>>, vector<1x16x16xf32>
    %90 = vector.shape_cast %89 : vector<1x16x16xf32> to vector<16x16xf32>
    %cst_32 = arith.constant dense<0.000000e+00> : vector<16x512xf32>
    %91 = tpu.matmul %90, %88, %cst_32 {dimension_numbers = #tpu.dot_dimension_numbers<[1], [0], [0], [1], [0, 0, 1, 1], [], []>} : vector<16x16xf32>, vector<16x512xf32>, vector<16x512xf32> -> vector<16x512xf32>
    %92 = arith.addf %64, %91 : vector<16x512xf32>
    %c1_i32_33 = arith.constant 1 : i32
    %93 = tpu.dynamic_rotate %0 by %c1_i32_33 dim 1 : vector<16x512xf32>, i32 -> vector<16x512xf32>
    %c0_i32_34 = arith.constant 0 : i32
    %94 = vector.broadcast %c0_i32_34 : i32 to vector<1x512xi32>
    %95 = arith.addi %5, %94 : vector<1x512xi32>
    %c0_i32_35 = arith.constant 0 : i32
    %96 = vector.broadcast %c0_i32_35 : i32 to vector<1x512xi32>
    %97 = arith.cmpi sge, %95, %96 : vector<1x512xi32>
    %c0_i32_36 = arith.constant 0 : i32
    %98 = vector.broadcast %c0_i32_36 : i32 to vector<1x512xi32>
    %99 = arith.addi %5, %98 : vector<1x512xi32>
    %c16_i32_37 = arith.constant 16 : i32
    %100 = vector.broadcast %c16_i32_37 : i32 to vector<1x512xi32>
    %101 = arith.cmpi slt, %99, %100 : vector<1x512xi32>
    %102 = arith.andi %97, %101 : vector<1x512xi1>
    %c-1_i32_38 = arith.constant -1 : i32
    %103 = vector.broadcast %c-1_i32_38 : i32 to vector<1x512xi32>
    %104 = arith.addi %7, %103 : vector<1x512xi32>
    %c0_i32_39 = arith.constant 0 : i32
    %105 = vector.broadcast %c0_i32_39 : i32 to vector<1x512xi32>
    %106 = arith.cmpi sge, %104, %105 : vector<1x512xi32>
    %107 = arith.andi %102, %106 : vector<1x512xi1>
    %c-1_i32_40 = arith.constant -1 : i32
    %108 = vector.broadcast %c-1_i32_40 : i32 to vector<1x512xi32>
    %109 = arith.addi %7, %108 : vector<1x512xi32>
    %c16_i32_41 = arith.constant 16 : i32
    %110 = vector.broadcast %c16_i32_41 : i32 to vector<1x512xi32>
    %111 = arith.cmpi slt, %109, %110 : vector<1x512xi32>
    %112 = arith.andi %107, %111 : vector<1x512xi1>
    %113 = arith.extui %112 : vector<1x512xi1> to vector<1x512xi32>
    %114 = arith.sitofp %113 : vector<1x512xi32> to vector<1x512xf32>
    %115 = vector.broadcast %114 : vector<1x512xf32> to vector<16x512xf32>
    %116 = arith.mulf %93, %115 : vector<16x512xf32>
    %c3 = arith.constant 3 : index
    %c0_42 = arith.constant 0 : index
    %c0_43 = arith.constant 0 : index
    %117 = vector.load %arg2[%c3, %c0_42, %c0_43] : memref<9x16x16xf32, #tpu.memory_space<vmem>>, vector<1x16x16xf32>
    %118 = vector.shape_cast %117 : vector<1x16x16xf32> to vector<16x16xf32>
    %cst_44 = arith.constant dense<0.000000e+00> : vector<16x512xf32>
    %119 = tpu.matmul %118, %116, %cst_44 {dimension_numbers = #tpu.dot_dimension_numbers<[1], [0], [0], [1], [0, 0, 1, 1], [], []>} : vector<16x16xf32>, vector<16x512xf32>, vector<16x512xf32> -> vector<16x512xf32>
    %120 = arith.addf %92, %119 : vector<16x512xf32>
    %c0_i32_45 = arith.constant 0 : i32
    %121 = vector.broadcast %c0_i32_45 : i32 to vector<1x512xi32>
    %122 = arith.addi %5, %121 : vector<1x512xi32>
    %c0_i32_46 = arith.constant 0 : i32
    %123 = vector.broadcast %c0_i32_46 : i32 to vector<1x512xi32>
    %124 = arith.cmpi sge, %122, %123 : vector<1x512xi32>
    %c0_i32_47 = arith.constant 0 : i32
    %125 = vector.broadcast %c0_i32_47 : i32 to vector<1x512xi32>
    %126 = arith.addi %5, %125 : vector<1x512xi32>
    %c16_i32_48 = arith.constant 16 : i32
    %127 = vector.broadcast %c16_i32_48 : i32 to vector<1x512xi32>
    %128 = arith.cmpi slt, %126, %127 : vector<1x512xi32>
    %129 = arith.andi %124, %128 : vector<1x512xi1>
    %c0_i32_49 = arith.constant 0 : i32
    %130 = vector.broadcast %c0_i32_49 : i32 to vector<1x512xi32>
    %131 = arith.addi %7, %130 : vector<1x512xi32>
    %c0_i32_50 = arith.constant 0 : i32
    %132 = vector.broadcast %c0_i32_50 : i32 to vector<1x512xi32>
    %133 = arith.cmpi sge, %131, %132 : vector<1x512xi32>
    %134 = arith.andi %129, %133 : vector<1x512xi1>
    %c0_i32_51 = arith.constant 0 : i32
    %135 = vector.broadcast %c0_i32_51 : i32 to vector<1x512xi32>
    %136 = arith.addi %7, %135 : vector<1x512xi32>
    %c16_i32_52 = arith.constant 16 : i32
    %137 = vector.broadcast %c16_i32_52 : i32 to vector<1x512xi32>
    %138 = arith.cmpi slt, %136, %137 : vector<1x512xi32>
    %139 = arith.andi %134, %138 : vector<1x512xi1>
    %140 = arith.extui %139 : vector<1x512xi1> to vector<1x512xi32>
    %141 = arith.sitofp %140 : vector<1x512xi32> to vector<1x512xf32>
    %142 = vector.broadcast %141 : vector<1x512xf32> to vector<16x512xf32>
    %143 = arith.mulf %0, %142 : vector<16x512xf32>
    %c4 = arith.constant 4 : index
    %c0_53 = arith.constant 0 : index
    %c0_54 = arith.constant 0 : index
    %144 = vector.load %arg2[%c4, %c0_53, %c0_54] : memref<9x16x16xf32, #tpu.memory_space<vmem>>, vector<1x16x16xf32>
    %145 = vector.shape_cast %144 : vector<1x16x16xf32> to vector<16x16xf32>
    %cst_55 = arith.constant dense<0.000000e+00> : vector<16x512xf32>
    %146 = tpu.matmul %145, %143, %cst_55 {dimension_numbers = #tpu.dot_dimension_numbers<[1], [0], [0], [1], [0, 0, 1, 1], [], []>} : vector<16x16xf32>, vector<16x512xf32>, vector<16x512xf32> -> vector<16x512xf32>
    %147 = arith.addf %120, %146 : vector<16x512xf32>
    %c511_i32 = arith.constant 511 : i32
    %148 = tpu.dynamic_rotate %0 by %c511_i32 dim 1 : vector<16x512xf32>, i32 -> vector<16x512xf32>
    %c0_i32_56 = arith.constant 0 : i32
    %149 = vector.broadcast %c0_i32_56 : i32 to vector<1x512xi32>
    %150 = arith.addi %5, %149 : vector<1x512xi32>
    %c0_i32_57 = arith.constant 0 : i32
    %151 = vector.broadcast %c0_i32_57 : i32 to vector<1x512xi32>
    %152 = arith.cmpi sge, %150, %151 : vector<1x512xi32>
    %c0_i32_58 = arith.constant 0 : i32
    %153 = vector.broadcast %c0_i32_58 : i32 to vector<1x512xi32>
    %154 = arith.addi %5, %153 : vector<1x512xi32>
    %c16_i32_59 = arith.constant 16 : i32
    %155 = vector.broadcast %c16_i32_59 : i32 to vector<1x512xi32>
    %156 = arith.cmpi slt, %154, %155 : vector<1x512xi32>
    %157 = arith.andi %152, %156 : vector<1x512xi1>
    %c1_i32_60 = arith.constant 1 : i32
    %158 = vector.broadcast %c1_i32_60 : i32 to vector<1x512xi32>
    %159 = arith.addi %7, %158 : vector<1x512xi32>
    %c0_i32_61 = arith.constant 0 : i32
    %160 = vector.broadcast %c0_i32_61 : i32 to vector<1x512xi32>
    %161 = arith.cmpi sge, %159, %160 : vector<1x512xi32>
    %162 = arith.andi %157, %161 : vector<1x512xi1>
    %c1_i32_62 = arith.constant 1 : i32
    %163 = vector.broadcast %c1_i32_62 : i32 to vector<1x512xi32>
    %164 = arith.addi %7, %163 : vector<1x512xi32>
    %c16_i32_63 = arith.constant 16 : i32
    %165 = vector.broadcast %c16_i32_63 : i32 to vector<1x512xi32>
    %166 = arith.cmpi slt, %164, %165 : vector<1x512xi32>
    %167 = arith.andi %162, %166 : vector<1x512xi1>
    %168 = arith.extui %167 : vector<1x512xi1> to vector<1x512xi32>
    %169 = arith.sitofp %168 : vector<1x512xi32> to vector<1x512xf32>
    %170 = vector.broadcast %169 : vector<1x512xf32> to vector<16x512xf32>
    %171 = arith.mulf %148, %170 : vector<16x512xf32>
    %c5 = arith.constant 5 : index
    %c0_64 = arith.constant 0 : index
    %c0_65 = arith.constant 0 : index
    %172 = vector.load %arg2[%c5, %c0_64, %c0_65] : memref<9x16x16xf32, #tpu.memory_space<vmem>>, vector<1x16x16xf32>
    %173 = vector.shape_cast %172 : vector<1x16x16xf32> to vector<16x16xf32>
    %cst_66 = arith.constant dense<0.000000e+00> : vector<16x512xf32>
    %174 = tpu.matmul %173, %171, %cst_66 {dimension_numbers = #tpu.dot_dimension_numbers<[1], [0], [0], [1], [0, 0, 1, 1], [], []>} : vector<16x16xf32>, vector<16x512xf32>, vector<16x512xf32> -> vector<16x512xf32>
    %175 = arith.addf %147, %174 : vector<16x512xf32>
    %c497_i32 = arith.constant 497 : i32
    %176 = tpu.dynamic_rotate %0 by %c497_i32 dim 1 : vector<16x512xf32>, i32 -> vector<16x512xf32>
    %c1_i32_67 = arith.constant 1 : i32
    %177 = vector.broadcast %c1_i32_67 : i32 to vector<1x512xi32>
    %178 = arith.addi %5, %177 : vector<1x512xi32>
    %c0_i32_68 = arith.constant 0 : i32
    %179 = vector.broadcast %c0_i32_68 : i32 to vector<1x512xi32>
    %180 = arith.cmpi sge, %178, %179 : vector<1x512xi32>
    %c1_i32_69 = arith.constant 1 : i32
    %181 = vector.broadcast %c1_i32_69 : i32 to vector<1x512xi32>
    %182 = arith.addi %5, %181 : vector<1x512xi32>
    %c16_i32_70 = arith.constant 16 : i32
    %183 = vector.broadcast %c16_i32_70 : i32 to vector<1x512xi32>
    %184 = arith.cmpi slt, %182, %183 : vector<1x512xi32>
    %185 = arith.andi %180, %184 : vector<1x512xi1>
    %c-1_i32_71 = arith.constant -1 : i32
    %186 = vector.broadcast %c-1_i32_71 : i32 to vector<1x512xi32>
    %187 = arith.addi %7, %186 : vector<1x512xi32>
    %c0_i32_72 = arith.constant 0 : i32
    %188 = vector.broadcast %c0_i32_72 : i32 to vector<1x512xi32>
    %189 = arith.cmpi sge, %187, %188 : vector<1x512xi32>
    %190 = arith.andi %185, %189 : vector<1x512xi1>
    %c-1_i32_73 = arith.constant -1 : i32
    %191 = vector.broadcast %c-1_i32_73 : i32 to vector<1x512xi32>
    %192 = arith.addi %7, %191 : vector<1x512xi32>
    %c16_i32_74 = arith.constant 16 : i32
    %193 = vector.broadcast %c16_i32_74 : i32 to vector<1x512xi32>
    %194 = arith.cmpi slt, %192, %193 : vector<1x512xi32>
    %195 = arith.andi %190, %194 : vector<1x512xi1>
    %196 = arith.extui %195 : vector<1x512xi1> to vector<1x512xi32>
    %197 = arith.sitofp %196 : vector<1x512xi32> to vector<1x512xf32>
    %198 = vector.broadcast %197 : vector<1x512xf32> to vector<16x512xf32>
    %199 = arith.mulf %176, %198 : vector<16x512xf32>
    %c6 = arith.constant 6 : index
    %c0_75 = arith.constant 0 : index
    %c0_76 = arith.constant 0 : index
    %200 = vector.load %arg2[%c6, %c0_75, %c0_76] : memref<9x16x16xf32, #tpu.memory_space<vmem>>, vector<1x16x16xf32>
    %201 = vector.shape_cast %200 : vector<1x16x16xf32> to vector<16x16xf32>
    %cst_77 = arith.constant dense<0.000000e+00> : vector<16x512xf32>
    %202 = tpu.matmul %201, %199, %cst_77 {dimension_numbers = #tpu.dot_dimension_numbers<[1], [0], [0], [1], [0, 0, 1, 1], [], []>} : vector<16x16xf32>, vector<16x512xf32>, vector<16x512xf32> -> vector<16x512xf32>
    %203 = arith.addf %175, %202 : vector<16x512xf32>
    %c496_i32 = arith.constant 496 : i32
    %204 = tpu.dynamic_rotate %0 by %c496_i32 dim 1 : vector<16x512xf32>, i32 -> vector<16x512xf32>
    %c1_i32_78 = arith.constant 1 : i32
    %205 = vector.broadcast %c1_i32_78 : i32 to vector<1x512xi32>
    %206 = arith.addi %5, %205 : vector<1x512xi32>
    %c0_i32_79 = arith.constant 0 : i32
    %207 = vector.broadcast %c0_i32_79 : i32 to vector<1x512xi32>
    %208 = arith.cmpi sge, %206, %207 : vector<1x512xi32>
    %c1_i32_80 = arith.constant 1 : i32
    %209 = vector.broadcast %c1_i32_80 : i32 to vector<1x512xi32>
    %210 = arith.addi %5, %209 : vector<1x512xi32>
    %c16_i32_81 = arith.constant 16 : i32
    %211 = vector.broadcast %c16_i32_81 : i32 to vector<1x512xi32>
    %212 = arith.cmpi slt, %210, %211 : vector<1x512xi32>
    %213 = arith.andi %208, %212 : vector<1x512xi1>
    %c0_i32_82 = arith.constant 0 : i32
    %214 = vector.broadcast %c0_i32_82 : i32 to vector<1x512xi32>
    %215 = arith.addi %7, %214 : vector<1x512xi32>
    %c0_i32_83 = arith.constant 0 : i32
    %216 = vector.broadcast %c0_i32_83 : i32 to vector<1x512xi32>
    %217 = arith.cmpi sge, %215, %216 : vector<1x512xi32>
    %218 = arith.andi %213, %217 : vector<1x512xi1>
    %c0_i32_84 = arith.constant 0 : i32
    %219 = vector.broadcast %c0_i32_84 : i32 to vector<1x512xi32>
    %220 = arith.addi %7, %219 : vector<1x512xi32>
    %c16_i32_85 = arith.constant 16 : i32
    %221 = vector.broadcast %c16_i32_85 : i32 to vector<1x512xi32>
    %222 = arith.cmpi slt, %220, %221 : vector<1x512xi32>
    %223 = arith.andi %218, %222 : vector<1x512xi1>
    %224 = arith.extui %223 : vector<1x512xi1> to vector<1x512xi32>
    %225 = arith.sitofp %224 : vector<1x512xi32> to vector<1x512xf32>
    %226 = vector.broadcast %225 : vector<1x512xf32> to vector<16x512xf32>
    %227 = arith.mulf %204, %226 : vector<16x512xf32>
    %c7 = arith.constant 7 : index
    %c0_86 = arith.constant 0 : index
    %c0_87 = arith.constant 0 : index
    %228 = vector.load %arg2[%c7, %c0_86, %c0_87] : memref<9x16x16xf32, #tpu.memory_space<vmem>>, vector<1x16x16xf32>
    %229 = vector.shape_cast %228 : vector<1x16x16xf32> to vector<16x16xf32>
    %cst_88 = arith.constant dense<0.000000e+00> : vector<16x512xf32>
    %230 = tpu.matmul %229, %227, %cst_88 {dimension_numbers = #tpu.dot_dimension_numbers<[1], [0], [0], [1], [0, 0, 1, 1], [], []>} : vector<16x16xf32>, vector<16x512xf32>, vector<16x512xf32> -> vector<16x512xf32>
    %231 = arith.addf %203, %230 : vector<16x512xf32>
    %c495_i32 = arith.constant 495 : i32
    %232 = tpu.dynamic_rotate %0 by %c495_i32 dim 1 : vector<16x512xf32>, i32 -> vector<16x512xf32>
    %c1_i32_89 = arith.constant 1 : i32
    %233 = vector.broadcast %c1_i32_89 : i32 to vector<1x512xi32>
    %234 = arith.addi %5, %233 : vector<1x512xi32>
    %c0_i32_90 = arith.constant 0 : i32
    %235 = vector.broadcast %c0_i32_90 : i32 to vector<1x512xi32>
    %236 = arith.cmpi sge, %234, %235 : vector<1x512xi32>
    %c1_i32_91 = arith.constant 1 : i32
    %237 = vector.broadcast %c1_i32_91 : i32 to vector<1x512xi32>
    %238 = arith.addi %5, %237 : vector<1x512xi32>
    %c16_i32_92 = arith.constant 16 : i32
    %239 = vector.broadcast %c16_i32_92 : i32 to vector<1x512xi32>
    %240 = arith.cmpi slt, %238, %239 : vector<1x512xi32>
    %241 = arith.andi %236, %240 : vector<1x512xi1>
    %c1_i32_93 = arith.constant 1 : i32
    %242 = vector.broadcast %c1_i32_93 : i32 to vector<1x512xi32>
    %243 = arith.addi %7, %242 : vector<1x512xi32>
    %c0_i32_94 = arith.constant 0 : i32
    %244 = vector.broadcast %c0_i32_94 : i32 to vector<1x512xi32>
    %245 = arith.cmpi sge, %243, %244 : vector<1x512xi32>
    %246 = arith.andi %241, %245 : vector<1x512xi1>
    %c1_i32_95 = arith.constant 1 : i32
    %247 = vector.broadcast %c1_i32_95 : i32 to vector<1x512xi32>
    %248 = arith.addi %7, %247 : vector<1x512xi32>
    %c16_i32_96 = arith.constant 16 : i32
    %249 = vector.broadcast %c16_i32_96 : i32 to vector<1x512xi32>
    %250 = arith.cmpi slt, %248, %249 : vector<1x512xi32>
    %251 = arith.andi %246, %250 : vector<1x512xi1>
    %252 = arith.extui %251 : vector<1x512xi1> to vector<1x512xi32>
    %253 = arith.sitofp %252 : vector<1x512xi32> to vector<1x512xf32>
    %254 = vector.broadcast %253 : vector<1x512xf32> to vector<16x512xf32>
    %255 = arith.mulf %232, %254 : vector<16x512xf32>
    %c8 = arith.constant 8 : index
    %c0_97 = arith.constant 0 : index
    %c0_98 = arith.constant 0 : index
    %256 = vector.load %arg2[%c8, %c0_97, %c0_98] : memref<9x16x16xf32, #tpu.memory_space<vmem>>, vector<1x16x16xf32>
    %257 = vector.shape_cast %256 : vector<1x16x16xf32> to vector<16x16xf32>
    %cst_99 = arith.constant dense<0.000000e+00> : vector<16x512xf32>
    %258 = tpu.matmul %257, %255, %cst_99 {dimension_numbers = #tpu.dot_dimension_numbers<[1], [0], [0], [1], [0, 0, 1, 1], [], []>} : vector<16x16xf32>, vector<16x512xf32>, vector<16x512xf32> -> vector<16x512xf32>
    %259 = arith.addf %231, %258 : vector<16x512xf32>
    %c0_100 = arith.constant 0 : index
    %c0_101 = arith.constant 0 : index
    %260 = vector.load %arg3[%c0_100, %c0_101] : memref<16x1xf32, #tpu.memory_space<vmem>>, vector<16x1xf32>
    %261 = vector.broadcast %260 : vector<16x1xf32> to vector<16x512xf32>
    %262 = arith.addf %259, %261 : vector<16x512xf32>
    %cst_102 = arith.constant 0.000000e+00 : f32
    %263 = vector.broadcast %cst_102 : f32 to vector<16x512xf32>
    %264 = arith.maximumf %262, %263 : vector<16x512xf32>
    %cst_103 = arith.constant 0.000000e+00 : f32
    %265 = vector.broadcast %cst_103 : f32 to vector<16x512xf32>
    %c17_i32_104 = arith.constant 17 : i32
    %266 = tpu.dynamic_rotate %264 by %c17_i32_104 dim 1 : vector<16x512xf32>, i32 -> vector<16x512xf32>
    %c-1_i32_105 = arith.constant -1 : i32
    %267 = vector.broadcast %c-1_i32_105 : i32 to vector<1x512xi32>
    %268 = arith.addi %5, %267 : vector<1x512xi32>
    %c0_i32_106 = arith.constant 0 : i32
    %269 = vector.broadcast %c0_i32_106 : i32 to vector<1x512xi32>
    %270 = arith.cmpi sge, %268, %269 : vector<1x512xi32>
    %c-1_i32_107 = arith.constant -1 : i32
    %271 = vector.broadcast %c-1_i32_107 : i32 to vector<1x512xi32>
    %272 = arith.addi %5, %271 : vector<1x512xi32>
    %c16_i32_108 = arith.constant 16 : i32
    %273 = vector.broadcast %c16_i32_108 : i32 to vector<1x512xi32>
    %274 = arith.cmpi slt, %272, %273 : vector<1x512xi32>
    %275 = arith.andi %270, %274 : vector<1x512xi1>
    %c-1_i32_109 = arith.constant -1 : i32
    %276 = vector.broadcast %c-1_i32_109 : i32 to vector<1x512xi32>
    %277 = arith.addi %7, %276 : vector<1x512xi32>
    %c0_i32_110 = arith.constant 0 : i32
    %278 = vector.broadcast %c0_i32_110 : i32 to vector<1x512xi32>
    %279 = arith.cmpi sge, %277, %278 : vector<1x512xi32>
    %280 = arith.andi %275, %279 : vector<1x512xi1>
    %c-1_i32_111 = arith.constant -1 : i32
    %281 = vector.broadcast %c-1_i32_111 : i32 to vector<1x512xi32>
    %282 = arith.addi %7, %281 : vector<1x512xi32>
    %c16_i32_112 = arith.constant 16 : i32
    %283 = vector.broadcast %c16_i32_112 : i32 to vector<1x512xi32>
    %284 = arith.cmpi slt, %282, %283 : vector<1x512xi32>
    %285 = arith.andi %280, %284 : vector<1x512xi1>
    %286 = arith.extui %285 : vector<1x512xi1> to vector<1x512xi32>
    %287 = arith.sitofp %286 : vector<1x512xi32> to vector<1x512xf32>
    %288 = vector.broadcast %287 : vector<1x512xf32> to vector<16x512xf32>
    %289 = arith.mulf %266, %288 : vector<16x512xf32>
    %c0_113 = arith.constant 0 : index
    %c0_114 = arith.constant 0 : index
    %c0_115 = arith.constant 0 : index
    %290 = vector.load %arg4[%c0_113, %c0_114, %c0_115] : memref<9x16x16xf32, #tpu.memory_space<vmem>>, vector<1x16x16xf32>
    %291 = vector.shape_cast %290 : vector<1x16x16xf32> to vector<16x16xf32>
    %cst_116 = arith.constant dense<0.000000e+00> : vector<16x512xf32>
    %292 = tpu.matmul %291, %289, %cst_116 {dimension_numbers = #tpu.dot_dimension_numbers<[1], [0], [0], [1], [0, 0, 1, 1], [], []>} : vector<16x16xf32>, vector<16x512xf32>, vector<16x512xf32> -> vector<16x512xf32>
    %293 = arith.addf %265, %292 : vector<16x512xf32>
    %c16_i32_117 = arith.constant 16 : i32
    %294 = tpu.dynamic_rotate %264 by %c16_i32_117 dim 1 : vector<16x512xf32>, i32 -> vector<16x512xf32>
    %c-1_i32_118 = arith.constant -1 : i32
    %295 = vector.broadcast %c-1_i32_118 : i32 to vector<1x512xi32>
    %296 = arith.addi %5, %295 : vector<1x512xi32>
    %c0_i32_119 = arith.constant 0 : i32
    %297 = vector.broadcast %c0_i32_119 : i32 to vector<1x512xi32>
    %298 = arith.cmpi sge, %296, %297 : vector<1x512xi32>
    %c-1_i32_120 = arith.constant -1 : i32
    %299 = vector.broadcast %c-1_i32_120 : i32 to vector<1x512xi32>
    %300 = arith.addi %5, %299 : vector<1x512xi32>
    %c16_i32_121 = arith.constant 16 : i32
    %301 = vector.broadcast %c16_i32_121 : i32 to vector<1x512xi32>
    %302 = arith.cmpi slt, %300, %301 : vector<1x512xi32>
    %303 = arith.andi %298, %302 : vector<1x512xi1>
    %c0_i32_122 = arith.constant 0 : i32
    %304 = vector.broadcast %c0_i32_122 : i32 to vector<1x512xi32>
    %305 = arith.addi %7, %304 : vector<1x512xi32>
    %c0_i32_123 = arith.constant 0 : i32
    %306 = vector.broadcast %c0_i32_123 : i32 to vector<1x512xi32>
    %307 = arith.cmpi sge, %305, %306 : vector<1x512xi32>
    %308 = arith.andi %303, %307 : vector<1x512xi1>
    %c0_i32_124 = arith.constant 0 : i32
    %309 = vector.broadcast %c0_i32_124 : i32 to vector<1x512xi32>
    %310 = arith.addi %7, %309 : vector<1x512xi32>
    %c16_i32_125 = arith.constant 16 : i32
    %311 = vector.broadcast %c16_i32_125 : i32 to vector<1x512xi32>
    %312 = arith.cmpi slt, %310, %311 : vector<1x512xi32>
    %313 = arith.andi %308, %312 : vector<1x512xi1>
    %314 = arith.extui %313 : vector<1x512xi1> to vector<1x512xi32>
    %315 = arith.sitofp %314 : vector<1x512xi32> to vector<1x512xf32>
    %316 = vector.broadcast %315 : vector<1x512xf32> to vector<16x512xf32>
    %317 = arith.mulf %294, %316 : vector<16x512xf32>
    %c1_126 = arith.constant 1 : index
    %c0_127 = arith.constant 0 : index
    %c0_128 = arith.constant 0 : index
    %318 = vector.load %arg4[%c1_126, %c0_127, %c0_128] : memref<9x16x16xf32, #tpu.memory_space<vmem>>, vector<1x16x16xf32>
    %319 = vector.shape_cast %318 : vector<1x16x16xf32> to vector<16x16xf32>
    %cst_129 = arith.constant dense<0.000000e+00> : vector<16x512xf32>
    %320 = tpu.matmul %319, %317, %cst_129 {dimension_numbers = #tpu.dot_dimension_numbers<[1], [0], [0], [1], [0, 0, 1, 1], [], []>} : vector<16x16xf32>, vector<16x512xf32>, vector<16x512xf32> -> vector<16x512xf32>
    %321 = arith.addf %293, %320 : vector<16x512xf32>
    %c15_i32_130 = arith.constant 15 : i32
    %322 = tpu.dynamic_rotate %264 by %c15_i32_130 dim 1 : vector<16x512xf32>, i32 -> vector<16x512xf32>
    %c-1_i32_131 = arith.constant -1 : i32
    %323 = vector.broadcast %c-1_i32_131 : i32 to vector<1x512xi32>
    %324 = arith.addi %5, %323 : vector<1x512xi32>
    %c0_i32_132 = arith.constant 0 : i32
    %325 = vector.broadcast %c0_i32_132 : i32 to vector<1x512xi32>
    %326 = arith.cmpi sge, %324, %325 : vector<1x512xi32>
    %c-1_i32_133 = arith.constant -1 : i32
    %327 = vector.broadcast %c-1_i32_133 : i32 to vector<1x512xi32>
    %328 = arith.addi %5, %327 : vector<1x512xi32>
    %c16_i32_134 = arith.constant 16 : i32
    %329 = vector.broadcast %c16_i32_134 : i32 to vector<1x512xi32>
    %330 = arith.cmpi slt, %328, %329 : vector<1x512xi32>
    %331 = arith.andi %326, %330 : vector<1x512xi1>
    %c1_i32_135 = arith.constant 1 : i32
    %332 = vector.broadcast %c1_i32_135 : i32 to vector<1x512xi32>
    %333 = arith.addi %7, %332 : vector<1x512xi32>
    %c0_i32_136 = arith.constant 0 : i32
    %334 = vector.broadcast %c0_i32_136 : i32 to vector<1x512xi32>
    %335 = arith.cmpi sge, %333, %334 : vector<1x512xi32>
    %336 = arith.andi %331, %335 : vector<1x512xi1>
    %c1_i32_137 = arith.constant 1 : i32
    %337 = vector.broadcast %c1_i32_137 : i32 to vector<1x512xi32>
    %338 = arith.addi %7, %337 : vector<1x512xi32>
    %c16_i32_138 = arith.constant 16 : i32
    %339 = vector.broadcast %c16_i32_138 : i32 to vector<1x512xi32>
    %340 = arith.cmpi slt, %338, %339 : vector<1x512xi32>
    %341 = arith.andi %336, %340 : vector<1x512xi1>
    %342 = arith.extui %341 : vector<1x512xi1> to vector<1x512xi32>
    %343 = arith.sitofp %342 : vector<1x512xi32> to vector<1x512xf32>
    %344 = vector.broadcast %343 : vector<1x512xf32> to vector<16x512xf32>
    %345 = arith.mulf %322, %344 : vector<16x512xf32>
    %c2_139 = arith.constant 2 : index
    %c0_140 = arith.constant 0 : index
    %c0_141 = arith.constant 0 : index
    %346 = vector.load %arg4[%c2_139, %c0_140, %c0_141] : memref<9x16x16xf32, #tpu.memory_space<vmem>>, vector<1x16x16xf32>
    %347 = vector.shape_cast %346 : vector<1x16x16xf32> to vector<16x16xf32>
    %cst_142 = arith.constant dense<0.000000e+00> : vector<16x512xf32>
    %348 = tpu.matmul %347, %345, %cst_142 {dimension_numbers = #tpu.dot_dimension_numbers<[1], [0], [0], [1], [0, 0, 1, 1], [], []>} : vector<16x16xf32>, vector<16x512xf32>, vector<16x512xf32> -> vector<16x512xf32>
    %349 = arith.addf %321, %348 : vector<16x512xf32>
    %c1_i32_143 = arith.constant 1 : i32
    %350 = tpu.dynamic_rotate %264 by %c1_i32_143 dim 1 : vector<16x512xf32>, i32 -> vector<16x512xf32>
    %c0_i32_144 = arith.constant 0 : i32
    %351 = vector.broadcast %c0_i32_144 : i32 to vector<1x512xi32>
    %352 = arith.addi %5, %351 : vector<1x512xi32>
    %c0_i32_145 = arith.constant 0 : i32
    %353 = vector.broadcast %c0_i32_145 : i32 to vector<1x512xi32>
    %354 = arith.cmpi sge, %352, %353 : vector<1x512xi32>
    %c0_i32_146 = arith.constant 0 : i32
    %355 = vector.broadcast %c0_i32_146 : i32 to vector<1x512xi32>
    %356 = arith.addi %5, %355 : vector<1x512xi32>
    %c16_i32_147 = arith.constant 16 : i32
    %357 = vector.broadcast %c16_i32_147 : i32 to vector<1x512xi32>
    %358 = arith.cmpi slt, %356, %357 : vector<1x512xi32>
    %359 = arith.andi %354, %358 : vector<1x512xi1>
    %c-1_i32_148 = arith.constant -1 : i32
    %360 = vector.broadcast %c-1_i32_148 : i32 to vector<1x512xi32>
    %361 = arith.addi %7, %360 : vector<1x512xi32>
    %c0_i32_149 = arith.constant 0 : i32
    %362 = vector.broadcast %c0_i32_149 : i32 to vector<1x512xi32>
    %363 = arith.cmpi sge, %361, %362 : vector<1x512xi32>
    %364 = arith.andi %359, %363 : vector<1x512xi1>
    %c-1_i32_150 = arith.constant -1 : i32
    %365 = vector.broadcast %c-1_i32_150 : i32 to vector<1x512xi32>
    %366 = arith.addi %7, %365 : vector<1x512xi32>
    %c16_i32_151 = arith.constant 16 : i32
    %367 = vector.broadcast %c16_i32_151 : i32 to vector<1x512xi32>
    %368 = arith.cmpi slt, %366, %367 : vector<1x512xi32>
    %369 = arith.andi %364, %368 : vector<1x512xi1>
    %370 = arith.extui %369 : vector<1x512xi1> to vector<1x512xi32>
    %371 = arith.sitofp %370 : vector<1x512xi32> to vector<1x512xf32>
    %372 = vector.broadcast %371 : vector<1x512xf32> to vector<16x512xf32>
    %373 = arith.mulf %350, %372 : vector<16x512xf32>
    %c3_152 = arith.constant 3 : index
    %c0_153 = arith.constant 0 : index
    %c0_154 = arith.constant 0 : index
    %374 = vector.load %arg4[%c3_152, %c0_153, %c0_154] : memref<9x16x16xf32, #tpu.memory_space<vmem>>, vector<1x16x16xf32>
    %375 = vector.shape_cast %374 : vector<1x16x16xf32> to vector<16x16xf32>
    %cst_155 = arith.constant dense<0.000000e+00> : vector<16x512xf32>
    %376 = tpu.matmul %375, %373, %cst_155 {dimension_numbers = #tpu.dot_dimension_numbers<[1], [0], [0], [1], [0, 0, 1, 1], [], []>} : vector<16x16xf32>, vector<16x512xf32>, vector<16x512xf32> -> vector<16x512xf32>
    %377 = arith.addf %349, %376 : vector<16x512xf32>
    %c0_i32_156 = arith.constant 0 : i32
    %378 = vector.broadcast %c0_i32_156 : i32 to vector<1x512xi32>
    %379 = arith.addi %5, %378 : vector<1x512xi32>
    %c0_i32_157 = arith.constant 0 : i32
    %380 = vector.broadcast %c0_i32_157 : i32 to vector<1x512xi32>
    %381 = arith.cmpi sge, %379, %380 : vector<1x512xi32>
    %c0_i32_158 = arith.constant 0 : i32
    %382 = vector.broadcast %c0_i32_158 : i32 to vector<1x512xi32>
    %383 = arith.addi %5, %382 : vector<1x512xi32>
    %c16_i32_159 = arith.constant 16 : i32
    %384 = vector.broadcast %c16_i32_159 : i32 to vector<1x512xi32>
    %385 = arith.cmpi slt, %383, %384 : vector<1x512xi32>
    %386 = arith.andi %381, %385 : vector<1x512xi1>
    %c0_i32_160 = arith.constant 0 : i32
    %387 = vector.broadcast %c0_i32_160 : i32 to vector<1x512xi32>
    %388 = arith.addi %7, %387 : vector<1x512xi32>
    %c0_i32_161 = arith.constant 0 : i32
    %389 = vector.broadcast %c0_i32_161 : i32 to vector<1x512xi32>
    %390 = arith.cmpi sge, %388, %389 : vector<1x512xi32>
    %391 = arith.andi %386, %390 : vector<1x512xi1>
    %c0_i32_162 = arith.constant 0 : i32
    %392 = vector.broadcast %c0_i32_162 : i32 to vector<1x512xi32>
    %393 = arith.addi %7, %392 : vector<1x512xi32>
    %c16_i32_163 = arith.constant 16 : i32
    %394 = vector.broadcast %c16_i32_163 : i32 to vector<1x512xi32>
    %395 = arith.cmpi slt, %393, %394 : vector<1x512xi32>
    %396 = arith.andi %391, %395 : vector<1x512xi1>
    %397 = arith.extui %396 : vector<1x512xi1> to vector<1x512xi32>
    %398 = arith.sitofp %397 : vector<1x512xi32> to vector<1x512xf32>
    %399 = vector.broadcast %398 : vector<1x512xf32> to vector<16x512xf32>
    %400 = arith.mulf %264, %399 : vector<16x512xf32>
    %c4_164 = arith.constant 4 : index
    %c0_165 = arith.constant 0 : index
    %c0_166 = arith.constant 0 : index
    %401 = vector.load %arg4[%c4_164, %c0_165, %c0_166] : memref<9x16x16xf32, #tpu.memory_space<vmem>>, vector<1x16x16xf32>
    %402 = vector.shape_cast %401 : vector<1x16x16xf32> to vector<16x16xf32>
    %cst_167 = arith.constant dense<0.000000e+00> : vector<16x512xf32>
    %403 = tpu.matmul %402, %400, %cst_167 {dimension_numbers = #tpu.dot_dimension_numbers<[1], [0], [0], [1], [0, 0, 1, 1], [], []>} : vector<16x16xf32>, vector<16x512xf32>, vector<16x512xf32> -> vector<16x512xf32>
    %404 = arith.addf %377, %403 : vector<16x512xf32>
    %c511_i32_168 = arith.constant 511 : i32
    %405 = tpu.dynamic_rotate %264 by %c511_i32_168 dim 1 : vector<16x512xf32>, i32 -> vector<16x512xf32>
    %c0_i32_169 = arith.constant 0 : i32
    %406 = vector.broadcast %c0_i32_169 : i32 to vector<1x512xi32>
    %407 = arith.addi %5, %406 : vector<1x512xi32>
    %c0_i32_170 = arith.constant 0 : i32
    %408 = vector.broadcast %c0_i32_170 : i32 to vector<1x512xi32>
    %409 = arith.cmpi sge, %407, %408 : vector<1x512xi32>
    %c0_i32_171 = arith.constant 0 : i32
    %410 = vector.broadcast %c0_i32_171 : i32 to vector<1x512xi32>
    %411 = arith.addi %5, %410 : vector<1x512xi32>
    %c16_i32_172 = arith.constant 16 : i32
    %412 = vector.broadcast %c16_i32_172 : i32 to vector<1x512xi32>
    %413 = arith.cmpi slt, %411, %412 : vector<1x512xi32>
    %414 = arith.andi %409, %413 : vector<1x512xi1>
    %c1_i32_173 = arith.constant 1 : i32
    %415 = vector.broadcast %c1_i32_173 : i32 to vector<1x512xi32>
    %416 = arith.addi %7, %415 : vector<1x512xi32>
    %c0_i32_174 = arith.constant 0 : i32
    %417 = vector.broadcast %c0_i32_174 : i32 to vector<1x512xi32>
    %418 = arith.cmpi sge, %416, %417 : vector<1x512xi32>
    %419 = arith.andi %414, %418 : vector<1x512xi1>
    %c1_i32_175 = arith.constant 1 : i32
    %420 = vector.broadcast %c1_i32_175 : i32 to vector<1x512xi32>
    %421 = arith.addi %7, %420 : vector<1x512xi32>
    %c16_i32_176 = arith.constant 16 : i32
    %422 = vector.broadcast %c16_i32_176 : i32 to vector<1x512xi32>
    %423 = arith.cmpi slt, %421, %422 : vector<1x512xi32>
    %424 = arith.andi %419, %423 : vector<1x512xi1>
    %425 = arith.extui %424 : vector<1x512xi1> to vector<1x512xi32>
    %426 = arith.sitofp %425 : vector<1x512xi32> to vector<1x512xf32>
    %427 = vector.broadcast %426 : vector<1x512xf32> to vector<16x512xf32>
    %428 = arith.mulf %405, %427 : vector<16x512xf32>
    %c5_177 = arith.constant 5 : index
    %c0_178 = arith.constant 0 : index
    %c0_179 = arith.constant 0 : index
    %429 = vector.load %arg4[%c5_177, %c0_178, %c0_179] : memref<9x16x16xf32, #tpu.memory_space<vmem>>, vector<1x16x16xf32>
    %430 = vector.shape_cast %429 : vector<1x16x16xf32> to vector<16x16xf32>
    %cst_180 = arith.constant dense<0.000000e+00> : vector<16x512xf32>
    %431 = tpu.matmul %430, %428, %cst_180 {dimension_numbers = #tpu.dot_dimension_numbers<[1], [0], [0], [1], [0, 0, 1, 1], [], []>} : vector<16x16xf32>, vector<16x512xf32>, vector<16x512xf32> -> vector<16x512xf32>
    %432 = arith.addf %404, %431 : vector<16x512xf32>
    %c497_i32_181 = arith.constant 497 : i32
    %433 = tpu.dynamic_rotate %264 by %c497_i32_181 dim 1 : vector<16x512xf32>, i32 -> vector<16x512xf32>
    %c1_i32_182 = arith.constant 1 : i32
    %434 = vector.broadcast %c1_i32_182 : i32 to vector<1x512xi32>
    %435 = arith.addi %5, %434 : vector<1x512xi32>
    %c0_i32_183 = arith.constant 0 : i32
    %436 = vector.broadcast %c0_i32_183 : i32 to vector<1x512xi32>
    %437 = arith.cmpi sge, %435, %436 : vector<1x512xi32>
    %c1_i32_184 = arith.constant 1 : i32
    %438 = vector.broadcast %c1_i32_184 : i32 to vector<1x512xi32>
    %439 = arith.addi %5, %438 : vector<1x512xi32>
    %c16_i32_185 = arith.constant 16 : i32
    %440 = vector.broadcast %c16_i32_185 : i32 to vector<1x512xi32>
    %441 = arith.cmpi slt, %439, %440 : vector<1x512xi32>
    %442 = arith.andi %437, %441 : vector<1x512xi1>
    %c-1_i32_186 = arith.constant -1 : i32
    %443 = vector.broadcast %c-1_i32_186 : i32 to vector<1x512xi32>
    %444 = arith.addi %7, %443 : vector<1x512xi32>
    %c0_i32_187 = arith.constant 0 : i32
    %445 = vector.broadcast %c0_i32_187 : i32 to vector<1x512xi32>
    %446 = arith.cmpi sge, %444, %445 : vector<1x512xi32>
    %447 = arith.andi %442, %446 : vector<1x512xi1>
    %c-1_i32_188 = arith.constant -1 : i32
    %448 = vector.broadcast %c-1_i32_188 : i32 to vector<1x512xi32>
    %449 = arith.addi %7, %448 : vector<1x512xi32>
    %c16_i32_189 = arith.constant 16 : i32
    %450 = vector.broadcast %c16_i32_189 : i32 to vector<1x512xi32>
    %451 = arith.cmpi slt, %449, %450 : vector<1x512xi32>
    %452 = arith.andi %447, %451 : vector<1x512xi1>
    %453 = arith.extui %452 : vector<1x512xi1> to vector<1x512xi32>
    %454 = arith.sitofp %453 : vector<1x512xi32> to vector<1x512xf32>
    %455 = vector.broadcast %454 : vector<1x512xf32> to vector<16x512xf32>
    %456 = arith.mulf %433, %455 : vector<16x512xf32>
    %c6_190 = arith.constant 6 : index
    %c0_191 = arith.constant 0 : index
    %c0_192 = arith.constant 0 : index
    %457 = vector.load %arg4[%c6_190, %c0_191, %c0_192] : memref<9x16x16xf32, #tpu.memory_space<vmem>>, vector<1x16x16xf32>
    %458 = vector.shape_cast %457 : vector<1x16x16xf32> to vector<16x16xf32>
    %cst_193 = arith.constant dense<0.000000e+00> : vector<16x512xf32>
    %459 = tpu.matmul %458, %456, %cst_193 {dimension_numbers = #tpu.dot_dimension_numbers<[1], [0], [0], [1], [0, 0, 1, 1], [], []>} : vector<16x16xf32>, vector<16x512xf32>, vector<16x512xf32> -> vector<16x512xf32>
    %460 = arith.addf %432, %459 : vector<16x512xf32>
    %c496_i32_194 = arith.constant 496 : i32
    %461 = tpu.dynamic_rotate %264 by %c496_i32_194 dim 1 : vector<16x512xf32>, i32 -> vector<16x512xf32>
    %c1_i32_195 = arith.constant 1 : i32
    %462 = vector.broadcast %c1_i32_195 : i32 to vector<1x512xi32>
    %463 = arith.addi %5, %462 : vector<1x512xi32>
    %c0_i32_196 = arith.constant 0 : i32
    %464 = vector.broadcast %c0_i32_196 : i32 to vector<1x512xi32>
    %465 = arith.cmpi sge, %463, %464 : vector<1x512xi32>
    %c1_i32_197 = arith.constant 1 : i32
    %466 = vector.broadcast %c1_i32_197 : i32 to vector<1x512xi32>
    %467 = arith.addi %5, %466 : vector<1x512xi32>
    %c16_i32_198 = arith.constant 16 : i32
    %468 = vector.broadcast %c16_i32_198 : i32 to vector<1x512xi32>
    %469 = arith.cmpi slt, %467, %468 : vector<1x512xi32>
    %470 = arith.andi %465, %469 : vector<1x512xi1>
    %c0_i32_199 = arith.constant 0 : i32
    %471 = vector.broadcast %c0_i32_199 : i32 to vector<1x512xi32>
    %472 = arith.addi %7, %471 : vector<1x512xi32>
    %c0_i32_200 = arith.constant 0 : i32
    %473 = vector.broadcast %c0_i32_200 : i32 to vector<1x512xi32>
    %474 = arith.cmpi sge, %472, %473 : vector<1x512xi32>
    %475 = arith.andi %470, %474 : vector<1x512xi1>
    %c0_i32_201 = arith.constant 0 : i32
    %476 = vector.broadcast %c0_i32_201 : i32 to vector<1x512xi32>
    %477 = arith.addi %7, %476 : vector<1x512xi32>
    %c16_i32_202 = arith.constant 16 : i32
    %478 = vector.broadcast %c16_i32_202 : i32 to vector<1x512xi32>
    %479 = arith.cmpi slt, %477, %478 : vector<1x512xi32>
    %480 = arith.andi %475, %479 : vector<1x512xi1>
    %481 = arith.extui %480 : vector<1x512xi1> to vector<1x512xi32>
    %482 = arith.sitofp %481 : vector<1x512xi32> to vector<1x512xf32>
    %483 = vector.broadcast %482 : vector<1x512xf32> to vector<16x512xf32>
    %484 = arith.mulf %461, %483 : vector<16x512xf32>
    %c7_203 = arith.constant 7 : index
    %c0_204 = arith.constant 0 : index
    %c0_205 = arith.constant 0 : index
    %485 = vector.load %arg4[%c7_203, %c0_204, %c0_205] : memref<9x16x16xf32, #tpu.memory_space<vmem>>, vector<1x16x16xf32>
    %486 = vector.shape_cast %485 : vector<1x16x16xf32> to vector<16x16xf32>
    %cst_206 = arith.constant dense<0.000000e+00> : vector<16x512xf32>
    %487 = tpu.matmul %486, %484, %cst_206 {dimension_numbers = #tpu.dot_dimension_numbers<[1], [0], [0], [1], [0, 0, 1, 1], [], []>} : vector<16x16xf32>, vector<16x512xf32>, vector<16x512xf32> -> vector<16x512xf32>
    %488 = arith.addf %460, %487 : vector<16x512xf32>
    %c495_i32_207 = arith.constant 495 : i32
    %489 = tpu.dynamic_rotate %264 by %c495_i32_207 dim 1 : vector<16x512xf32>, i32 -> vector<16x512xf32>
    %c1_i32_208 = arith.constant 1 : i32
    %490 = vector.broadcast %c1_i32_208 : i32 to vector<1x512xi32>
    %491 = arith.addi %5, %490 : vector<1x512xi32>
    %c0_i32_209 = arith.constant 0 : i32
    %492 = vector.broadcast %c0_i32_209 : i32 to vector<1x512xi32>
    %493 = arith.cmpi sge, %491, %492 : vector<1x512xi32>
    %c1_i32_210 = arith.constant 1 : i32
    %494 = vector.broadcast %c1_i32_210 : i32 to vector<1x512xi32>
    %495 = arith.addi %5, %494 : vector<1x512xi32>
    %c16_i32_211 = arith.constant 16 : i32
    %496 = vector.broadcast %c16_i32_211 : i32 to vector<1x512xi32>
    %497 = arith.cmpi slt, %495, %496 : vector<1x512xi32>
    %498 = arith.andi %493, %497 : vector<1x512xi1>
    %c1_i32_212 = arith.constant 1 : i32
    %499 = vector.broadcast %c1_i32_212 : i32 to vector<1x512xi32>
    %500 = arith.addi %7, %499 : vector<1x512xi32>
    %c0_i32_213 = arith.constant 0 : i32
    %501 = vector.broadcast %c0_i32_213 : i32 to vector<1x512xi32>
    %502 = arith.cmpi sge, %500, %501 : vector<1x512xi32>
    %503 = arith.andi %498, %502 : vector<1x512xi1>
    %c1_i32_214 = arith.constant 1 : i32
    %504 = vector.broadcast %c1_i32_214 : i32 to vector<1x512xi32>
    %505 = arith.addi %7, %504 : vector<1x512xi32>
    %c16_i32_215 = arith.constant 16 : i32
    %506 = vector.broadcast %c16_i32_215 : i32 to vector<1x512xi32>
    %507 = arith.cmpi slt, %505, %506 : vector<1x512xi32>
    %508 = arith.andi %503, %507 : vector<1x512xi1>
    %509 = arith.extui %508 : vector<1x512xi1> to vector<1x512xi32>
    %510 = arith.sitofp %509 : vector<1x512xi32> to vector<1x512xf32>
    %511 = vector.broadcast %510 : vector<1x512xf32> to vector<16x512xf32>
    %512 = arith.mulf %489, %511 : vector<16x512xf32>
    %c8_216 = arith.constant 8 : index
    %c0_217 = arith.constant 0 : index
    %c0_218 = arith.constant 0 : index
    %513 = vector.load %arg4[%c8_216, %c0_217, %c0_218] : memref<9x16x16xf32, #tpu.memory_space<vmem>>, vector<1x16x16xf32>
    %514 = vector.shape_cast %513 : vector<1x16x16xf32> to vector<16x16xf32>
    %cst_219 = arith.constant dense<0.000000e+00> : vector<16x512xf32>
    %515 = tpu.matmul %514, %512, %cst_219 {dimension_numbers = #tpu.dot_dimension_numbers<[1], [0], [0], [1], [0, 0, 1, 1], [], []>} : vector<16x16xf32>, vector<16x512xf32>, vector<16x512xf32> -> vector<16x512xf32>
    %516 = arith.addf %488, %515 : vector<16x512xf32>
    %c0_220 = arith.constant 0 : index
    %c0_221 = arith.constant 0 : index
    %517 = vector.load %arg5[%c0_220, %c0_221] : memref<16x1xf32, #tpu.memory_space<vmem>>, vector<16x1xf32>
    %518 = vector.broadcast %517 : vector<16x1xf32> to vector<16x512xf32>
    %519 = arith.addf %516, %518 : vector<16x512xf32>
    %520 = arith.addf %519, %0 : vector<16x512xf32>
    %cst_222 = arith.constant 0.000000e+00 : f32
    %521 = vector.broadcast %cst_222 : f32 to vector<16x512xf32>
    %522 = arith.maximumf %520, %521 : vector<16x512xf32>
    %c0_223 = arith.constant 0 : index
    %c0_224 = arith.constant 0 : index
    %523 = vector.load %arg6[%c0_223, %c0_224] : memref<16x512xf32, #tpu.memory_space<vmem>>, vector<16x512xf32>
    tpu.vector_store %arg6[%c0_223, %c0_224], %522 {strides = array<i32>} : memref<16x512xf32, #tpu.memory_space<vmem>>, vector<16x512xf32>,
    return
  }
  func.func @transform_0(%arg0: i32) -> (i32, i32) {
    %c0_i32 = arith.constant 0 : i32
    %c0_i32_0 = arith.constant 0 : i32
    return %c0_i32, %arg0 : i32, i32
  }
  func.func @transform_1(%arg0: i32) -> (i32, i32, i32) {
    %c0_i32 = arith.constant 0 : i32
    %c0_i32_0 = arith.constant 0 : i32
    %c0_i32_1 = arith.constant 0 : i32
    %c0_i32_2 = arith.constant 0 : i32
    return %c0_i32, %c0_i32_0, %c0_i32_1 : i32, i32, i32
  }
  func.func @transform_2(%arg0: i32) -> (i32, i32) {
    %c0_i32 = arith.constant 0 : i32
    %c0_i32_0 = arith.constant 0 : i32
    %c0_i32_1 = arith.constant 0 : i32
    return %c0_i32, %c0_i32_0 : i32, i32
  }
  func.func @transform_3(%arg0: i32) -> (i32, i32, i32) {
    %c0_i32 = arith.constant 0 : i32
    %c0_i32_0 = arith.constant 0 : i32
    %c0_i32_1 = arith.constant 0 : i32
    %c0_i32_2 = arith.constant 0 : i32
    return %c0_i32, %c0_i32_0, %c0_i32_1 : i32, i32, i32
  }
  func.func @transform_4(%arg0: i32) -> (i32, i32) {
    %c0_i32 = arith.constant 0 : i32
    %c0_i32_0 = arith.constant 0 : i32
    %c0_i32_1 = arith.constant 0 : i32
    return %c0_i32, %c0_i32_0 : i32, i32
  }
  func.func @transform_5(%arg0: i32) -> (i32, i32) {
    %c0_i32 = arith.constant 0 : i32
    %c0_i32_0 = arith.constant 0 : i32
    return %c0_i32, %arg0 : i32, i32
  }
}

</mosaic_0001>

<llo_original>
// kernel: tpu_custom_call.1
$region0: #{tpu_custom_call.1}
  #allocation0 [shape = 'u32[]', space=smem, size = 0x4, offset = 0x4, fixed_abs, tag = 'smem constant byte address 0x4 - core index']
  #allocation1 [shape = 'u32[144,128]{1,0:T(1,128)}', space=vmem, size = 0x12000, scoped, tag = 'internal scratch']
  %s0 = inlined_call_operand.hbm [shape: f32[16,1024], index: 0, kind: input, shape index: {}]
  %s1 = inlined_call_operand.hbm [shape: f32[9,16,16], index: 1, kind: input, shape index: {}]
  %s2 = inlined_call_operand.vmem [shape: f32[16,1], index: 2, kind: input, shape index: {}]
  %s3 = inlined_call_operand.hbm [shape: f32[9,16,16], index: 3, kind: input, shape index: {}]
  %s4 = inlined_call_operand.vmem [shape: f32[16,1], index: 4, kind: input, shape index: {}]
  %s5 = inlined_call_operand.hbm [shape: f32[16,1024], index: 5, kind: output, shape index: {}]
  %s6 = sld [smem:[#allocation0]]
  $region65: #{tpu_custom_call.1} parent=0
    _
  %s8 = ssub.s32 1, %s6
  %s9 = scalar_select 0, %s8, %s6
  $region1: #{tpu_custom_call.1} parent=0
    #allocation2 [shape = 'u8[65536]{0}', space=vmem, size = 0x10000, scoped, tag = 'input window, operand 0']
    #allocation3 [shape = 's32[2]{0}', space=sflag, size = 0x8, scoped, tag = 'scoped memory for tpu_custom_call.1']
    #allocation4 [shape = 's32[2]{0}', space=sflag, size = 0x8, scoped, tag = 'scoped memory for tpu_custom_call.1']
    #allocation5 [shape = 'u8[73728]{0}', space=vmem, size = 0x12000, scoped, tag = 'input window, operand 1, single buffered']
    #allocation6 [shape = 's32[1]{0}', space=sflag, size = 0x4, scoped, tag = 'scoped memory for tpu_custom_call.1']
    #allocation7 [shape = 'u8[73728]{0}', space=vmem, size = 0x12000, scoped, tag = 'input window, operand 3, single buffered']
    #allocation8 [shape = 'u8[65536]{0}', space=vmem, size = 0x10000, scoped, tag = 'output window, operand 0']
    %10 = vsyncpa [#allocation3], 0
    %s11 = scalar_lea.sflag [#allocation3], 1
    %12 = vsyncpa %s11, 0
    %13 = vsyncpa [#allocation6], 0
    %14 = vsyncpa [#allocation4], 0
    %s15 = scalar_lea.sflag [#allocation4], 1
    %16 = vsyncpa %s15, 0
    loop: start=0, step=1, limit=4
    $region2: #{tpu_custom_call.1} parent=1 // loop_pre_header
      _
    $region3: #{tpu_custom_call.1} parent=1 // loop_header
      %s18 = sphi 0, %s22
      %p19 = scmp.ge.s32.totalorder %s18, 4
      %s28 = sphi 0, %s30
      %s31 = sphi 0, %s28
      %s32 = sphi 0, %s31
      %s48 = sphi 0, %s32
      %s52 = sphi 0, %s52
      %s54 = sphi 0, %s52
      %s55 = sphi 0, %s54
      %s69 = sphi 0, %s55
      %s73 = sphi 0, %s73
      %s75 = sphi 0, %s73
      %s76 = sphi 0, %s75
      %s90 = sphi 0, %s76
      %s94 = sphi 0, %s94
      %s96 = sphi 0, %s94
      %s97 = sphi 0, %s96
      %s111 = sphi 0, %s97
      %s115 = sphi 0, %s115
      %s117 = sphi 0, %s115
      %s118 = sphi 0, %s117
      %s132 = sphi 0, %s118
      %s138 = sphi 0, %s140
      %s141 = sphi 0, %s138
      %s142 = sphi 0, %s141
      %s158 = sphi 0, %s142
    $region4: #{tpu_custom_call.1} parent=1 // loop_header_branch
      %21 = sbr.rel (%p19) target = $region8
    $region5: #{tpu_custom_call.1} parent=1 // loop_body
      %s23 = ssub.s32 %s18, 1
      %s24 = ssub.s32 %s18, 2
      %s25 = sadd.s32 %s18, 1
      %s26 = ssub.s32 %s18, %s25
      %p27 = scmp.eq.s32.totalorder %s26, 0
      %s29 = sadd.s32 %s28, 1
      %s30 = scalar_select %p27, %s28, %s29
      %p33 = pneg %p27
      %p34 = scmp.eq.s32.totalorder %s18, 1
      %p35 = por %p33, %p34
      %p36 = scmp.ne.s32.totalorder %s28, %s31
      %p37 = scmp.eq.s32.totalorder %s18, 0
      %p38 = por %p36, %p37
      %p39 = scmp.ne.s32.totalorder %s28, %s31
      %p40 = scmp.eq.s32.totalorder %s23, 1
      %p41 = por %p39, %p40
      %p42 = scmp.ne.s32.totalorder %s31, %s32
      %p43 = scmp.eq.s32.totalorder %s23, 0
      %p44 = por %p42, %p43
      %p45 = scmp.ne.s32.totalorder %s31, %s32
      %p46 = scmp.eq.s32.totalorder %s24, 1
      %p47 = por %p45, %p46
      %p49 = scmp.ne.s32.totalorder %s32, %s48
      %p50 = scmp.eq.s32.totalorder %s24, 0
      %p51 = por %p49, %p50
      %s53 = sadd.s32 %s52, 1
      %p56 = scmp.eq.s32.totalorder %s18, 1
      %p57 = scmp.ne.s32.totalorder %s52, %s54
      %p58 = scmp.eq.s32.totalorder %s18, 0
      %p59 = por %p57, %p58
      %p60 = scmp.ne.s32.totalorder %s52, %s54
      %p61 = scmp.eq.s32.totalorder %s23, 1
      %p62 = por %p60, %p61
      %p63 = scmp.ne.s32.totalorder %s54, %s55
      %p64 = scmp.eq.s32.totalorder %s23, 0
      %p65 = por %p63, %p64
      %p66 = scmp.ne.s32.totalorder %s54, %s55
      %p67 = scmp.eq.s32.totalorder %s24, 1
      %p68 = por %p66, %p67
      %p70 = scmp.ne.s32.totalorder %s55, %s69
      %p71 = scmp.eq.s32.totalorder %s24, 0
      %p72 = por %p70, %p71
      %s74 = sadd.s32 %s73, 1
      %p77 = scmp.eq.s32.totalorder %s18, 1
      %p78 = scmp.ne.s32.totalorder %s73, %s75
      %p79 = scmp.eq.s32.totalorder %s18, 0
      %p80 = por %p78, %p79
      %p81 = scmp.ne.s32.totalorder %s73, %s75
      %p82 = scmp.eq.s32.totalorder %s23, 1
      %p83 = por %p81, %p82
      %p84 = scmp.ne.s32.totalorder %s75, %s76
      %p85 = scmp.eq.s32.totalorder %s23, 0
      %p86 = por %p84, %p85
      %p87 = scmp.ne.s32.totalorder %s75, %s76
      %p88 = scmp.eq.s32.totalorder %s24, 1
      %p89 = por %p87, %p88
      %p91 = scmp.ne.s32.totalorder %s76, %s90
      %p92 = scmp.eq.s32.totalorder %s24, 0
      %p93 = por %p91, %p92
      %s95 = sadd.s32 %s94, 1
      %p98 = scmp.eq.s32.totalorder %s18, 1
      %p99 = scmp.ne.s32.totalorder %s94, %s96
      %p100 = scmp.eq.s32.totalorder %s18, 0
      %p101 = por %p99, %p100
      %p102 = scmp.ne.s32.totalorder %s94, %s96
      %p103 = scmp.eq.s32.totalorder %s23, 1
      %p104 = por %p102, %p103
      %p105 = scmp.ne.s32.totalorder %s96, %s97
      %p106 = scmp.eq.s32.totalorder %s23, 0
      %p107 = por %p105, %p106
      %p108 = scmp.ne.s32.totalorder %s96, %s97
      %p109 = scmp.eq.s32.totalorder %s24, 1
      %p110 = por %p108, %p109
      %p112 = scmp.ne.s32.totalorder %s97, %s111
      %p113 = scmp.eq.s32.totalorder %s24, 0
      %p114 = por %p112, %p113
      %s116 = sadd.s32 %s115, 1
      %p119 = scmp.eq.s32.totalorder %s18, 1
      %p120 = scmp.ne.s32.totalorder %s115, %s117
      %p121 = scmp.eq.s32.totalorder %s18, 0
      %p122 = por %p120, %p121
      %p123 = scmp.ne.s32.totalorder %s115, %s117
      %p124 = scmp.eq.s32.totalorder %s23, 1
      %p125 = por %p123, %p124
      %p126 = scmp.ne.s32.totalorder %s117, %s118
      %p127 = scmp.eq.s32.totalorder %s23, 0
      %p128 = por %p126, %p127
      %p129 = scmp.ne.s32.totalorder %s117, %s118
      %p130 = scmp.eq.s32.totalorder %s24, 1
      %p131 = por %p129, %p130
      %p133 = scmp.ne.s32.totalorder %s118, %s132
      %p134 = scmp.eq.s32.totalorder %s24, 0
      %p135 = por %p133, %p134
      %s136 = ssub.s32 %s18, %s25
      %p137 = scmp.eq.s32.totalorder %s136, 0
      %s139 = sadd.s32 %s138, 1
      %s140 = scalar_select %p137, %s138, %s139
      %p143 = pneg %p137
      %p144 = scmp.eq.s32.totalorder %s18, 1
      %p145 = por %p143, %p144
      %p146 = scmp.ne.s32.totalorder %s138, %s141
      %p147 = scmp.eq.s32.totalorder %s18, 0
      %p148 = por %p146, %p147
      %p149 = scmp.ne.s32.totalorder %s138, %s141
      %p150 = scmp.eq.s32.totalorder %s23, 1
      %p151 = por %p149, %p150
      %p152 = scmp.ne.s32.totalorder %s141, %s142
      %p153 = scmp.eq.s32.totalorder %s23, 0
      %p154 = por %p152, %p153
      %p155 = scmp.ne.s32.totalorder %s141, %s142
      %p156 = scmp.eq.s32.totalorder %s24, 1
      %p157 = por %p155, %p156
      %p159 = scmp.ne.s32.totalorder %s142, %s158
      %p160 = scmp.eq.s32.totalorder %s24, 0
      %p161 = por %p159, %p160
      %p162 = scmp.le.s32.totalorder 1, %s18
      %p163 = scmp.lt.s32.totalorder %s18, 3
      %p164 = pnand %p162, %p163
      %p165 = pneg %p164
      // Predicated region
      $region9: #{tpu_custom_call.1} parent=5 // pred_check
        _
      $region10: #{tpu_custom_call.1} parent=5 // pred_check_branch
        %167 = sbr.rel (%p164) target = $region12
      $region11: #{tpu_custom_call.1} parent=5 // pred_region
        %s168 = ssub.s32 %s18, 1
        // Predicated region
        $region13: #{tpu_custom_call.1} parent=11 // pred_check
          %p169 = pneg %p65
        $region14: #{tpu_custom_call.1} parent=11 // pred_check_branch
          %171 = sbr.rel (%p169) target = $region16
        $region15: #{tpu_custom_call.1} parent=11 // pred_region
          %s173 = ssub.s32 2304, 2304
          %174 = vsyncadd [#allocation6], %s173
          %s175 = sshll.u32 [#allocation5], 4
          %s176 = int_to_ptr.vmem [resolvable:$true] %s175
          %181 = dma.hbm_to_vmem [thread:$0]  %s1, 2304, %s176, [#allocation6], 128, 128, 8
        $region16: #{tpu_custom_call.1} parent=11 // pred_fallthru
          _
        // Predicated region
        $region17: #{tpu_custom_call.1} parent=11 // pred_check
          %p182 = pneg %p86
        $region18: #{tpu_custom_call.1} parent=11 // pred_check_branch
          %184 = sbr.rel (%p182) target = $region20
        $region19: #{tpu_custom_call.1} parent=11 // pred_region
          _
        $region20: #{tpu_custom_call.1} parent=11 // pred_fallthru
          _
        // Predicated region
        $region21: #{tpu_custom_call.1} parent=11 // pred_check
          %p185 = pneg %p107
        $region22: #{tpu_custom_call.1} parent=11 // pred_check_branch
          %187 = sbr.rel (%p185) target = $region24
        $region23: #{tpu_custom_call.1} parent=11 // pred_region
          %s189 = ssub.s32 2304, 2304
          %190 = vsyncadd [#allocation6], %s189
          %s191 = sshll.u32 [#allocation7], 4
          %s192 = int_to_ptr.vmem [resolvable:$true] %s191
          %197 = dma.hbm_to_vmem [thread:$0]  %s3, 2304, %s192, [#allocation6], 128, 128, 8
        $region24: #{tpu_custom_call.1} parent=11 // pred_fallthru
          _
        // Predicated region
        $region25: #{tpu_custom_call.1} parent=11 // pred_check
          %p198 = pneg %p128
        $region26: #{tpu_custom_call.1} parent=11 // pred_check_branch
          %200 = sbr.rel (%p198) target = $region28
        $region27: #{tpu_custom_call.1} parent=11 // pred_region
          _
        $region28: #{tpu_custom_call.1} parent=11 // pred_fallthru
          _
      $region12: #{tpu_custom_call.1} parent=5 // pred_fallthru
        _
      %p201 = scmp.lt.s32.totalorder %s18, 2
      // Predicated region
      $region29: #{tpu_custom_call.1} parent=5 // pred_check
        %p202 = pneg %p201
      $region30: #{tpu_custom_call.1} parent=5 // pred_check_branch
        %204 = sbr.rel (%p202) target = $region32
      $region31: #{tpu_custom_call.1} parent=5 // pred_region
        // Predicated region
        $region33: #{tpu_custom_call.1} parent=31 // pred_check
          %p205 = pneg %p38
        $region34: #{tpu_custom_call.1} parent=31 // pred_check_branch
          %207 = sbr.rel (%p205) target = $region36
        $region35: #{tpu_custom_call.1} parent=31 // pred_region
          %s208 = sand.u32 %s28, 1
          %s209 = scalar_lea.sflag [#allocation3], %s208
          %s210 = sand.u32 %s28, 1
          %s211 = smul.addr %s210, 64
          %s212 = scalar_lea.vmem [#allocation2], %s211
          %s213 = smul.u32 4, %s18
          %s215 = ssub.s32 1024, 1024
          %216 = vsyncadd %s209, %s215
          %s217 = smul.addr %s213, 128
          %s218 = scalar_lea.hbm %s0, %s217
          %s219 = sshll.u32 %s212, 4
          %s220 = int_to_ptr.vmem [resolvable:$true] %s219
          %225 = dma.hbm_to_vmem [thread:$0]  %s218, 1024, %s220, %s209, 1024, 512, 32
        $region36: #{tpu_custom_call.1} parent=31 // pred_fallthru
          _
      $region32: #{tpu_custom_call.1} parent=5 // pred_fallthru
        _
      %p226 = scmp.le.s32.totalorder 1, %s18
      %p227 = scmp.lt.s32.totalorder %s18, 3
      %p228 = pnand %p226, %p227
      %p229 = pneg %p228
      // Predicated region
      $region37: #{tpu_custom_call.1} parent=5 // pred_check
        _
      $region38: #{tpu_custom_call.1} parent=5 // pred_check_branch
        %231 = sbr.rel (%p228) target = $region40
      $region39: #{tpu_custom_call.1} parent=5 // pred_region
        %s232 = ssub.s32 %s18, 1
        %s233 = sand.u32 %s31, 1
        %s234 = scalar_lea.sflag [#allocation3], %s233
        %s235 = sand.u32 %s31, 1
        %s236 = smul.addr %s235, 64
        %s237 = scalar_lea.vmem [#allocation2], %s236
        // Predicated region
        $region41: #{tpu_custom_call.1} parent=39 // pred_check
          %p238 = pneg %p44
        $region42: #{tpu_custom_call.1} parent=39 // pred_check_branch
          %240 = sbr.rel (%p238) target = $region44
        $region43: #{tpu_custom_call.1} parent=39 // pred_region
          %241 = dma.done %s234, 1024
        $region44: #{tpu_custom_call.1} parent=39 // pred_fallthru
          _
        // Predicated region
        $region45: #{tpu_custom_call.1} parent=39 // pred_check
          %p242 = pneg %p65
        $region46: #{tpu_custom_call.1} parent=39 // pred_check_branch
          %244 = sbr.rel (%p242) target = $region48
        $region47: #{tpu_custom_call.1} parent=39 // pred_region
          %245 = dma.done [#allocation6], 2304
        $region48: #{tpu_custom_call.1} parent=39 // pred_fallthru
          _
        // Predicated region
        $region49: #{tpu_custom_call.1} parent=39 // pred_check
          %p246 = pneg %p107
        $region50: #{tpu_custom_call.1} parent=39 // pred_check_branch
          %248 = sbr.rel (%p246) target = $region52
        $region51: #{tpu_custom_call.1} parent=39 // pred_region
          %249 = dma.done [#allocation6], 2304
        $region52: #{tpu_custom_call.1} parent=39 // pred_fallthru
          _
        %s250 = sand.u32 %s31, 1
        %s251 = scalar_lea.sflag [#allocation3], %s250
        %s252 = sand.u32 %s31, 1
        %s253 = smul.addr %s252, 64
        %s254 = scalar_lea.vmem [#allocation2], %s253
        %p255 = pneg %p44
        %p256 = pneg %p41
        %p257 = pneg %p65
        %p258 = pneg %p62
        %p259 = pneg %p86
        %p260 = pneg %p83
        %p261 = pneg %p107
        %p262 = pneg %p104
        %p263 = pneg %p128
        %p264 = pneg %p125
        %p265 = pneg %p154
        %p266 = pneg %p151
        %s267 = sand.u32 %s141, 1
        %s268 = scalar_lea.sflag [#allocation4], %s267
        %s269 = sand.u32 %s141, 1
        %s270 = smul.addr %s269, 64
        %s271 = scalar_lea.vmem [#allocation8], %s270
        %s272 = smul.u32 4, %s23
        %s273 = smul.u32 4, %s23
        %v274 = vld [vmem:[%s237] sm:$0xff]
        %v275 = vld [vmem:[%s237 + $0x8] sm:$0xff]
        %v276 = vld [vmem:[%s237 + $0x10] sm:$0xff]
        %v277 = vld [vmem:[%s237 + $0x18] sm:$0xff]
        %v278 = vld [vmem:[%s237 + $0x20] sm:$0xff]
        %v279 = vld [vmem:[%s237 + $0x28] sm:$0xff]
        %v280 = vld [vmem:[%s237 + $0x30] sm:$0xff]
        %v281 = vld [vmem:[%s237 + $0x38] sm:$0xff]
        %v282 = vlaneseq
        %v283 = vand.u32 %v282, 127
        %v284 = vadd.s32 %v283, 128
        %v285 = vadd.s32 %v283, 256
        %v286 = vadd.s32 %v283, 384
        %v287 = vand.u32 %v283, 255
        %v288 = vand.u32 %v284, 255
        %v289 = vand.u32 %v285, 255
        %v290 = vand.u32 %v286, 255
        %v291 = vshra.s32 %v287, 4
        %v292 = vshra.s32 %v288, 4
        %v293 = vshra.s32 %v289, 4
        %v294 = vshra.s32 %v290, 4
        %v295 = vand.u32 %v287, 15
        %v296 = vand.u32 %v288, 15
        %v297 = vand.u32 %v289, 15
        %v298 = vand.u32 %v290, 15
        %299 = vrot.lane.b32.xlu0 %v274, 17
        %v300 = vpop.permute.xlu0 %299
        %301 = vrot.lane.b32.xlu0 %v278, 17
        %v302 = vpop.permute.xlu0 %301
        %303 = vrot.lane.b32.xlu0 %v275, 17
        %v304 = vpop.permute.xlu0 %303
        %305 = vrot.lane.b32.xlu0 %v279, 17
        %v306 = vpop.permute.xlu0 %305
        %307 = vrot.lane.b32.xlu0 %v276, 17
        %v308 = vpop.permute.xlu0 %307
        %309 = vrot.lane.b32.xlu0 %v280, 17
        %v310 = vpop.permute.xlu0 %309
        %311 = vrot.lane.b32.xlu0 %v277, 17
        %v312 = vpop.permute.xlu0 %311
        %313 = vrot.lane.b32.xlu0 %v281, 17
        %v314 = vpop.permute.xlu0 %313
        %vm315 = vcmp.lt.s32.totalorder %v283, 17
        %v316 = vsel %vm315, %v308, %v312
        %v317 = vsel %vm315, %v310, %v314
        %v318 = vsel %vm315, %v304, %v308
        %v319 = vsel %vm315, %v306, %v310
        %v320 = vsel %vm315, %v300, %v304
        %v321 = vsel %vm315, %v302, %v306
        %v322 = vsel %vm315, %v312, %v300
        %v323 = vsel %vm315, %v314, %v302
        %v324 = vadd.s32 %v291, 4294967295
        %v325 = vadd.s32 %v292, 4294967295
        %v326 = vadd.s32 %v293, 4294967295
        %v327 = vadd.s32 %v294, 4294967295
        %vm328 = vcmp.ge.s32.totalorder %v324, 0
        %vm329 = vcmp.ge.s32.totalorder %v325, 0
        %vm330 = vcmp.ge.s32.totalorder %v326, 0
        %vm331 = vcmp.ge.s32.totalorder %v327, 0
        %vm332 = vcmp.lt.s32.totalorder %v324, 16
        %vm333 = vcmp.lt.s32.totalorder %v325, 16
        %vm334 = vcmp.lt.s32.totalorder %v326, 16
        %vm335 = vcmp.lt.s32.totalorder %v327, 16
        %vm336 = vmand %vm328, %vm332
        %vm337 = vmand %vm329, %vm333
        %vm338 = vmand %vm330, %vm334
        %vm339 = vmand %vm331, %vm335
        %v340 = vadd.s32 %v295, 4294967295
        %v341 = vadd.s32 %v296, 4294967295
        %v342 = vadd.s32 %v297, 4294967295
        %v343 = vadd.s32 %v298, 4294967295
        %vm344 = vcmp.ge.s32.totalorder %v340, 0
        %vm345 = vcmp.ge.s32.totalorder %v341, 0
        %vm346 = vcmp.ge.s32.totalorder %v342, 0
        %vm347 = vcmp.ge.s32.totalorder %v343, 0
        %vm348 = vmand %vm336, %vm344
        %vm349 = vmand %vm337, %vm345
        %vm350 = vmand %vm338, %vm346
        %vm351 = vmand %vm339, %vm347
        %vm352 = vcmp.lt.s32.totalorder %v340, 16
        %vm353 = vcmp.lt.s32.totalorder %v341, 16
        %vm354 = vcmp.lt.s32.totalorder %v342, 16
        %vm355 = vcmp.lt.s32.totalorder %v343, 16
        %vm356 = vmand %vm348, %vm352
        %vm357 = vmand %vm349, %vm353
        %vm358 = vmand %vm350, %vm354
        %vm359 = vmand %vm351, %vm355
        %v360 = vsel %vm356, 1, 0
        %v361 = vsel %vm357, 1, 0
        %v362 = vsel %vm358, 1, 0
        %v363 = vsel %vm359, 1, 0
        %v364 = vcvt.s32.f32 %v360
        %v365 = vcvt.s32.f32 %v361
        %v366 = vcvt.s32.f32 %v362
        %v367 = vcvt.s32.f32 %v363
        %v368 = vmul.f32 %v322, %v364
        %v369 = vmul.f32 %v320, %v365
        %v370 = vmul.f32 %v318, %v366
        %v371 = vmul.f32 %v316, %v367
        %v372 = vmul.f32 %v323, %v364
        %v373 = vmul.f32 %v321, %v365
        %v374 = vmul.f32 %v319, %v366
        %v375 = vmul.f32 %v317, %v367
        %v376 = vld [vmem:[#allocation5] sm:$0xff]
        %v377 = vld [vmem:[#allocation5 + $0x8] sm:$0xff]
        %378 = vrot.lane.b32.xlu0 %v274, 16
        %v379 = vpop.permute.xlu0 %378
        %380 = vrot.lane.b32.xlu0 %v278, 16
        %v381 = vpop.permute.xlu0 %380
        %382 = vrot.lane.b32.xlu0 %v275, 16
        %v383 = vpop.permute.xlu0 %382
        %384 = vrot.lane.b32.xlu0 %v279, 16
        %v385 = vpop.permute.xlu0 %384
        %386 = vrot.lane.b32.xlu0 %v276, 16
        %v387 = vpop.permute.xlu0 %386
        %388 = vrot.lane.b32.xlu0 %v280, 16
        %v389 = vpop.permute.xlu0 %388
        %390 = vrot.lane.b32.xlu0 %v277, 16
        %v391 = vpop.permute.xlu0 %390
        %392 = vrot.lane.b32.xlu0 %v281, 16
        %v393 = vpop.permute.xlu0 %392
        %vm394 = vcmp.lt.s32.totalorder %v283, 16
        %v395 = vsel %vm394, %v387, %v391
        %v396 = vsel %vm394, %v389, %v393
        %v397 = vsel %vm394, %v383, %v387
        %v398 = vsel %vm394, %v385, %v389
        %v399 = vsel %vm394, %v379, %v383
        %v400 = vsel %vm394, %v381, %v385
        %v401 = vsel %vm394, %v391, %v379
        %v402 = vsel %vm394, %v393, %v381
        %vm403 = vcmp.ge.s32.totalorder %v295, 0
        %vm404 = vcmp.ge.s32.totalorder %v296, 0
        %vm405 = vcmp.ge.s32.totalorder %v297, 0
        %vm406 = vcmp.ge.s32.totalorder %v298, 0
        %vm407 = vmand %vm336, %vm403
        %vm408 = vmand %vm337, %vm404
        %vm409 = vmand %vm338, %vm405
        %vm410 = vmand %vm339, %vm406
        %vm411 = vcmp.lt.s32.totalorder %v295, 16
        %vm412 = vcmp.lt.s32.totalorder %v296, 16
        %vm413 = vcmp.lt.s32.totalorder %v297, 16
        %vm414 = vcmp.lt.s32.totalorder %v298, 16
        %vm415 = vmand %vm407, %vm411
        %vm416 = vmand %vm408, %vm412
        %vm417 = vmand %vm409, %vm413
        %vm418 = vmand %vm410, %vm414
        %v419 = vsel %vm415, 1, 0
        %v420 = vsel %vm416, 1, 0
        %v421 = vsel %vm417, 1, 0
        %v422 = vsel %vm418, 1, 0
        %v423 = vcvt.s32.f32 %v419
        %v424 = vcvt.s32.f32 %v420
        %v425 = vcvt.s32.f32 %v421
        %v426 = vcvt.s32.f32 %v422
        %v427 = vmul.f32 %v401, %v423
        %v428 = vmul.f32 %v399, %v424
        %v429 = vmul.f32 %v397, %v425
        %v430 = vmul.f32 %v395, %v426
        %v431 = vmul.f32 %v402, %v423
        %v432 = vmul.f32 %v400, %v424
        %v433 = vmul.f32 %v398, %v425
        %v434 = vmul.f32 %v396, %v426
        %s435 = scalar_lea.vmem [#allocation5], 16
        %v436 = vld [vmem:[%s435] sm:$0xff]
        %v437 = vld [vmem:[%s435 + $0x8] sm:$0xff]
        %vm438 = vcmask 130048
        %v440 = vsel %vm438, %v436, 0
        %v443 = vsel %vm438, %v437, 0
        %445 = vmatprep.subr.mxu0 0.0
        %446 = vmatpush1.msra.mxu0 0.0
        %447 = vmatprep.subr.mxu0 0.0
        %448 = vmatpush1.msra.mxu0 0.0
        %449 = vmatprep.subr.mxu0 0.0
        %450 = vmatpush1.msra.mxu0 0.0
        %451 = vmatprep.subr.mxu0 0.0
        %452 = vmatpush1.msra.mxu0 0.0
        %453 = vmatprep.subr.mxu0 0.0
        %454 = vmatpush1.msra.mxu0 0.0
        %455 = vmatprep.subr.mxu0 0.0
        %456 = vmatpush1.msra.mxu0 0.0
        %457 = vmatprep.subr.mxu0 0.0
        %458 = vmatpush1.msra.mxu0 0.0
        %459 = vmatprep.subr.mxu0 0.0
        %460 = vmatpush1.msra.mxu0 0.0
        %461 = vmatprep.subr.mxu0 0.0
        %462 = vmatpush1.msra.mxu0 0.0
        %463 = vmatprep.subr.mxu0 0.0
        %464 = vmatpush1.msra.mxu0 0.0
        %465 = vmatprep.subr.mxu0 0.0
        %466 = vmatpush1.msra.mxu0 0.0
        %467 = vmatprep.subr.mxu0 0.0
        %468 = vmatpush1.msra.mxu0 0.0
        %469 = vmatprep.subr.mxu0 0.0
        %470 = vmatpush1.msra.mxu0 0.0
        %471 = vmatprep.subr.mxu0 0.0
        %472 = vmatpush1.msra.mxu0 0.0
        %473 = vmatprep.subr.mxu0 %v432
        %474 = vmatpush1.msra.mxu0 %v431
        %475 = vmatprep.subr.mxu0 %v428
        %476 = vmatpush1.msra.mxu0 %v427
        %477 = vmatprep.subr.mxu0 0.0
        %478 = vmatpush2.msra.mxu0 0.0
        %479 = vmatprep.subr.mxu0 0.0
        %480 = vmatpush2.msra.mxu0 0.0
        %481 = vmatprep.subr.mxu0 0.0
        %482 = vmatpush2.msra.mxu0 0.0
        %483 = vmatprep.subr.mxu0 0.0
        %484 = vmatpush2.msra.mxu0 0.0
        %485 = vmatprep.subr.mxu0 0.0
        %486 = vmatpush2.msra.mxu0 0.0
        %487 = vmatprep.subr.mxu0 0.0
        %488 = vmatpush2.msra.mxu0 0.0
        %489 = vmatprep.subr.mxu0 0.0
        %490 = vmatpush2.msra.mxu0 0.0
        %491 = vmatprep.subr.mxu0 0.0
        %492 = vmatpush2.msra.mxu0 0.0
        %493 = vmatprep.subr.mxu0 0.0
        %494 = vmatpush2.msra.mxu0 0.0
        %495 = vmatprep.subr.mxu0 0.0
        %496 = vmatpush2.msra.mxu0 0.0
        %497 = vmatprep.subr.mxu0 0.0
        %498 = vmatpush2.msra.mxu0 0.0
        %499 = vmatprep.subr.mxu0 0.0
        %500 = vmatpush2.msra.mxu0 0.0
        %501 = vmatprep.subr.mxu0 0.0
        %502 = vmatpush2.msra.mxu0 0.0
        %503 = vmatprep.subr.mxu0 0.0
        %504 = vmatpush2.msra.mxu0 0.0
        %505 = vmatprep.subr.mxu0 0.0
        %506 = vmatpush2.msra.mxu0 0.0
        %507 = vmatprep.subr.mxu0 0.0
        %508 = vmatpush2.msra.mxu0 0.0
        %509 = vmatprep.mubr.f32.mxu0 0.0
        %510 = vmatmul.mubr.f32.gmra.mxu0 %v440
        %v511 = vpop.f32.mrf.mxu0
        %v512 = vadd.f32 0.0, %v511
        %v513 = vpop.f32.mrf.mxu0
        %v514 = vadd.f32 0.0, %v513
        %515 = vmatprep.mubr.f32.mxu0 0.0
        %516 = vmatmul.mubr.f32.gmra.mxu0 %v443
        %v517 = vpop.f32.mrf.mxu0
        %v518 = vadd.f32 0.0, %v517
        %v519 = vpop.f32.mrf.mxu0
        %v520 = vadd.f32 0.0, %v519
        %521 = vdwg.mxu0
        %522 = vmatprep.subr.mxu0 0.0
        %523 = vmatpush1.msra.mxu0 0.0
        %524 = vmatprep.subr.mxu0 0.0
        %525 = vmatpush1.msra.mxu0 0.0
        %526 = vmatprep.subr.mxu0 0.0
        %527 = vmatpush1.msra.mxu0 0.0
        %528 = vmatprep.subr.mxu0 0.0
        %529 = vmatpush1.msra.mxu0 0.0
        %530 = vmatprep.subr.mxu0 0.0
        %531 = vmatpush1.msra.mxu0 0.0
        %532 = vmatprep.subr.mxu0 0.0
        %533 = vmatpush1.msra.mxu0 0.0
        %534 = vmatprep.subr.mxu0 0.0
        %535 = vmatpush1.msra.mxu0 0.0
        %536 = vmatprep.subr.mxu0 0.0
        %537 = vmatpush1.msra.mxu0 0.0
        %538 = vmatprep.subr.mxu0 0.0
        %539 = vmatpush1.msra.mxu0 0.0
        %540 = vmatprep.subr.mxu0 0.0
        %541 = vmatpush1.msra.mxu0 0.0
        %542 = vmatprep.subr.mxu0 0.0
        %543 = vmatpush1.msra.mxu0 0.0
        %544 = vmatprep.subr.mxu0 0.0
        %545 = vmatpush1.msra.mxu0 0.0
        %546 = vmatprep.subr.mxu0 0.0
        %547 = vmatpush1.msra.mxu0 0.0
        %548 = vmatprep.subr.mxu0 0.0
        %549 = vmatpush1.msra.mxu0 0.0
        %550 = vmatprep.subr.mxu0 %v434
        %551 = vmatpush1.msra.mxu0 %v433
        %552 = vmatprep.subr.mxu0 %v430
        %553 = vmatpush1.msra.mxu0 %v429
        %554 = vmatprep.subr.mxu0 0.0
        %555 = vmatpush2.msra.mxu0 0.0
        %556 = vmatprep.subr.mxu0 0.0
        %557 = vmatpush2.msra.mxu0 0.0
        %558 = vmatprep.subr.mxu0 0.0
        %559 = vmatpush2.msra.mxu0 0.0
        %560 = vmatprep.subr.mxu0 0.0
        %561 = vmatpush2.msra.mxu0 0.0
        %562 = vmatprep.subr.mxu0 0.0
        %563 = vmatpush2.msra.mxu0 0.0
        %564 = vmatprep.subr.mxu0 0.0
        %565 = vmatpush2.msra.mxu0 0.0
        %566 = vmatprep.subr.mxu0 0.0
        %567 = vmatpush2.msra.mxu0 0.0
        %568 = vmatprep.subr.mxu0 0.0
        %569 = vmatpush2.msra.mxu0 0.0
        %570 = vmatprep.subr.mxu0 0.0
        %571 = vmatpush2.msra.mxu0 0.0
        %572 = vmatprep.subr.mxu0 0.0
        %573 = vmatpush2.msra.mxu0 0.0
        %574 = vmatprep.subr.mxu0 0.0
        %575 = vmatpush2.msra.mxu0 0.0
        %576 = vmatprep.subr.mxu0 0.0
        %577 = vmatpush2.msra.mxu0 0.0
        %578 = vmatprep.subr.mxu0 0.0
        %579 = vmatpush2.msra.mxu0 0.0
        %580 = vmatprep.subr.mxu0 0.0
        %581 = vmatpush2.msra.mxu0 0.0
        %582 = vmatprep.subr.mxu0 0.0
        %583 = vmatpush2.msra.mxu0 0.0
        %584 = vmatprep.subr.mxu0 0.0
        %585 = vmatpush2.msra.mxu0 0.0
        %586 = vmatprep.mubr.f32.mxu0 0.0
        %587 = vmatmul.mubr.f32.gmra.mxu0 %v440
        %v588 = vpop.f32.mrf.mxu0
        %v589 = vadd.f32 0.0, %v588
        %v590 = vpop.f32.mrf.mxu0
        %v591 = vadd.f32 0.0, %v590
        %592 = vmatprep.mubr.f32.mxu0 0.0
        %593 = vmatmul.mubr.f32.gmra.mxu0 %v443
        %v594 = vpop.f32.mrf.mxu0
        %v595 = vadd.f32 0.0, %v594
        %v596 = vpop.f32.mrf.mxu0
        %v597 = vadd.f32 0.0, %v596
        %598 = vdwg.mxu0
        %v600 = vsel %vm438, %v376, 0
        %v603 = vsel %vm438, %v377, 0
        %605 = vmatprep.subr.mxu0 0.0
        %606 = vmatpush1.msra.mxu0 0.0
        %607 = vmatprep.subr.mxu0 0.0
        %608 = vmatpush1.msra.mxu0 0.0
        %609 = vmatprep.subr.mxu0 0.0
        %610 = vmatpush1.msra.mxu0 0.0
        %611 = vmatprep.subr.mxu0 0.0
        %612 = vmatpush1.msra.mxu0 0.0
        %613 = vmatprep.subr.mxu0 0.0
        %614 = vmatpush1.msra.mxu0 0.0
        %615 = vmatprep.subr.mxu0 0.0
        %616 = vmatpush1.msra.mxu0 0.0
        %617 = vmatprep.subr.mxu0 0.0
        %618 = vmatpush1.msra.mxu0 0.0
        %619 = vmatprep.subr.mxu0 0.0
        %620 = vmatpush1.msra.mxu0 0.0
        %621 = vmatprep.subr.mxu0 0.0
        %622 = vmatpush1.msra.mxu0 0.0
        %623 = vmatprep.subr.mxu0 0.0
        %624 = vmatpush1.msra.mxu0 0.0
        %625 = vmatprep.subr.mxu0 0.0
        %626 = vmatpush1.msra.mxu0 0.0
        %627 = vmatprep.subr.mxu0 0.0
        %628 = vmatpush1.msra.mxu0 0.0
        %629 = vmatprep.subr.mxu0 0.0
        %630 = vmatpush1.msra.mxu0 0.0
        %631 = vmatprep.subr.mxu0 0.0
        %632 = vmatpush1.msra.mxu0 0.0
        %633 = vmatprep.subr.mxu0 %v373
        %634 = vmatpush1.msra.mxu0 %v372
        %635 = vmatprep.subr.mxu0 %v369
        %636 = vmatpush1.msra.mxu0 %v368
        %637 = vmatprep.subr.mxu0 0.0
        %638 = vmatpush2.msra.mxu0 0.0
        %639 = vmatprep.subr.mxu0 0.0
        %640 = vmatpush2.msra.mxu0 0.0
        %641 = vmatprep.subr.mxu0 0.0
        %642 = vmatpush2.msra.mxu0 0.0
        %643 = vmatprep.subr.mxu0 0.0
        %644 = vmatpush2.msra.mxu0 0.0
        %645 = vmatprep.subr.mxu0 0.0
        %646 = vmatpush2.msra.mxu0 0.0
        %647 = vmatprep.subr.mxu0 0.0
        %648 = vmatpush2.msra.mxu0 0.0
        %649 = vmatprep.subr.mxu0 0.0
        %650 = vmatpush2.msra.mxu0 0.0
        %651 = vmatprep.subr.mxu0 0.0
        %652 = vmatpush2.msra.mxu0 0.0
        %653 = vmatprep.subr.mxu0 0.0
        %654 = vmatpush2.msra.mxu0 0.0
        %655 = vmatprep.subr.mxu0 0.0
        %656 = vmatpush2.msra.mxu0 0.0
        %657 = vmatprep.subr.mxu0 0.0
        %658 = vmatpush2.msra.mxu0 0.0
        %659 = vmatprep.subr.mxu0 0.0
        %660 = vmatpush2.msra.mxu0 0.0
        %661 = vmatprep.subr.mxu0 0.0
        %662 = vmatpush2.msra.mxu0 0.0
        %663 = vmatprep.subr.mxu0 0.0
        %664 = vmatpush2.msra.mxu0 0.0
        %665 = vmatprep.subr.mxu0 0.0
        %666 = vmatpush2.msra.mxu0 0.0
        %667 = vmatprep.subr.mxu0 0.0
        %668 = vmatpush2.msra.mxu0 0.0
        %669 = vmatprep.mubr.f32.mxu0 0.0
        %670 = vmatmul.mubr.f32.gmra.mxu0 %v600
        %v671 = vpop.f32.mrf.mxu0
        %v672 = vadd.f32 %v512, %v671
        %v673 = vpop.f32.mrf.mxu0
        %v674 = vadd.f32 %v514, %v673
        %675 = vmatprep.mubr.f32.mxu0 0.0
        %676 = vmatmul.mubr.f32.gmra.mxu0 %v603
        %v677 = vpop.f32.mrf.mxu0
        %v678 = vadd.f32 %v518, %v677
        %v679 = vpop.f32.mrf.mxu0
        %v680 = vadd.f32 %v520, %v679
        %681 = vdwg.mxu0
        %682 = vmatprep.subr.mxu0 0.0
        %683 = vmatpush1.msra.mxu0 0.0
        %684 = vmatprep.subr.mxu0 0.0
        %685 = vmatpush1.msra.mxu0 0.0
        %686 = vmatprep.subr.mxu0 0.0
        %687 = vmatpush1.msra.mxu0 0.0
        %688 = vmatprep.subr.mxu0 0.0
        %689 = vmatpush1.msra.mxu0 0.0
        %690 = vmatprep.subr.mxu0 0.0
        %691 = vmatpush1.msra.mxu0 0.0
        %692 = vmatprep.subr.mxu0 0.0
        %693 = vmatpush1.msra.mxu0 0.0
        %694 = vmatprep.subr.mxu0 0.0
        %695 = vmatpush1.msra.mxu0 0.0
        %696 = vmatprep.subr.mxu0 0.0
        %697 = vmatpush1.msra.mxu0 0.0
        %698 = vmatprep.subr.mxu0 0.0
        %699 = vmatpush1.msra.mxu0 0.0
        %700 = vmatprep.subr.mxu0 0.0
        %701 = vmatpush1.msra.mxu0 0.0
        %702 = vmatprep.subr.mxu0 0.0
        %703 = vmatpush1.msra.mxu0 0.0
        %704 = vmatprep.subr.mxu0 0.0
        %705 = vmatpush1.msra.mxu0 0.0
        %706 = vmatprep.subr.mxu0 0.0
        %707 = vmatpush1.msra.mxu0 0.0
        %708 = vmatprep.subr.mxu0 0.0
        %709 = vmatpush1.msra.mxu0 0.0
        %710 = vmatprep.subr.mxu0 %v375
        %711 = vmatpush1.msra.mxu0 %v374
        %712 = vmatprep.subr.mxu0 %v371
        %713 = vmatpush1.msra.mxu0 %v370
        %714 = vmatprep.subr.mxu0 0.0
        %715 = vmatpush2.msra.mxu0 0.0
        %716 = vmatprep.subr.mxu0 0.0
        %717 = vmatpush2.msra.mxu0 0.0
        %718 = vmatprep.subr.mxu0 0.0
        %719 = vmatpush2.msra.mxu0 0.0
        %720 = vmatprep.subr.mxu0 0.0
        %721 = vmatpush2.msra.mxu0 0.0
        %722 = vmatprep.subr.mxu0 0.0
        %723 = vmatpush2.msra.mxu0 0.0
        %724 = vmatprep.subr.mxu0 0.0
        %725 = vmatpush2.msra.mxu0 0.0
        %726 = vmatprep.subr.mxu0 0.0
        %727 = vmatpush2.msra.mxu0 0.0
        %728 = vmatprep.subr.mxu0 0.0
        %729 = vmatpush2.msra.mxu0 0.0
        %730 = vmatprep.subr.mxu0 0.0
        %731 = vmatpush2.msra.mxu0 0.0
        %732 = vmatprep.subr.mxu0 0.0
        %733 = vmatpush2.msra.mxu0 0.0
        %734 = vmatprep.subr.mxu0 0.0
        %735 = vmatpush2.msra.mxu0 0.0
        %736 = vmatprep.subr.mxu0 0.0
        %737 = vmatpush2.msra.mxu0 0.0
        %738 = vmatprep.subr.mxu0 0.0
        %739 = vmatpush2.msra.mxu0 0.0
        %740 = vmatprep.subr.mxu0 0.0
        %741 = vmatpush2.msra.mxu0 0.0
        %742 = vmatprep.subr.mxu0 0.0
        %743 = vmatpush2.msra.mxu0 0.0
        %744 = vmatprep.subr.mxu0 0.0
        %745 = vmatpush2.msra.mxu0 0.0
        %746 = vmatprep.mubr.f32.mxu0 0.0
        %747 = vmatmul.mubr.f32.gmra.mxu0 %v600
        %v748 = vpop.f32.mrf.mxu0
        %v749 = vadd.f32 %v589, %v748
        %v750 = vpop.f32.mrf.mxu0
        %v751 = vadd.f32 %v591, %v750
        %752 = vmatprep.mubr.f32.mxu0 0.0
        %753 = vmatmul.mubr.f32.gmra.mxu0 %v603
        %v754 = vpop.f32.mrf.mxu0
        %v755 = vadd.f32 %v595, %v754
        %v756 = vpop.f32.mrf.mxu0
        %v757 = vadd.f32 %v597, %v756
        %758 = vdwg.mxu0
        %759 = vrot.lane.b32.xlu0 %v274, 15
        %v760 = vpop.permute.xlu0 %759
        %761 = vrot.lane.b32.xlu0 %v278, 15
        %v762 = vpop.permute.xlu0 %761
        %763 = vrot.lane.b32.xlu0 %v275, 15
        %v764 = vpop.permute.xlu0 %763
        %765 = vrot.lane.b32.xlu0 %v279, 15
        %v766 = vpop.permute.xlu0 %765
        %767 = vrot.lane.b32.xlu0 %v276, 15
        %v768 = vpop.permute.xlu0 %767
        %769 = vrot.lane.b32.xlu0 %v280, 15
        %v770 = vpop.permute.xlu0 %769
        %771 = vrot.lane.b32.xlu0 %v277, 15
        %v772 = vpop.permute.xlu0 %771
        %773 = vrot.lane.b32.xlu0 %v281, 15
        %v774 = vpop.permute.xlu0 %773
        %vm775 = vcmp.lt.s32.totalorder %v283, 15
        %v776 = vsel %vm775, %v768, %v772
        %v777 = vsel %vm775, %v770, %v774
        %v778 = vsel %vm775, %v764, %v768
        %v779 = vsel %vm775, %v766, %v770
        %v780 = vsel %vm775, %v760, %v764
        %v781 = vsel %vm775, %v762, %v766
        %v782 = vsel %vm775, %v772, %v760
        %v783 = vsel %vm775, %v774, %v762
        %v784 = vadd.s32 %v295, 1
        %v785 = vadd.s32 %v296, 1
        %v786 = vadd.s32 %v297, 1
        %v787 = vadd.s32 %v298, 1
        %vm788 = vcmp.ge.s32.totalorder %v784, 0
        %vm789 = vcmp.ge.s32.totalorder %v785, 0
        %vm790 = vcmp.ge.s32.totalorder %v786, 0
        %vm791 = vcmp.ge.s32.totalorder %v787, 0
        %vm792 = vmand %vm336, %vm788
        %vm793 = vmand %vm337, %vm789
        %vm794 = vmand %vm338, %vm790
        %vm795 = vmand %vm339, %vm791
        %vm796 = vcmp.lt.s32.totalorder %v784, 16
        %vm797 = vcmp.lt.s32.totalorder %v785, 16
        %vm798 = vcmp.lt.s32.totalorder %v786, 16
        %vm799 = vcmp.lt.s32.totalorder %v787, 16
        %vm800 = vmand %vm792, %vm796
        %vm801 = vmand %vm793, %vm797
        %vm802 = vmand %vm794, %vm798
        %vm803 = vmand %vm795, %vm799
        %v804 = vsel %vm800, 1, 0
        %v805 = vsel %vm801, 1, 0
        %v806 = vsel %vm802, 1, 0
        %v807 = vsel %vm803, 1, 0
        %v808 = vcvt.s32.f32 %v804
        %v809 = vcvt.s32.f32 %v805
        %v810 = vcvt.s32.f32 %v806
        %v811 = vcvt.s32.f32 %v807
        %v812 = vmul.f32 %v782, %v808
        %v813 = vmul.f32 %v780, %v809
        %v814 = vmul.f32 %v778, %v810
        %v815 = vmul.f32 %v776, %v811
        %v816 = vmul.f32 %v783, %v808
        %v817 = vmul.f32 %v781, %v809
        %v818 = vmul.f32 %v779, %v810
        %v819 = vmul.f32 %v777, %v811
        %s820 = scalar_lea.vmem [#allocation5], 32
        %v821 = vld [vmem:[%s820] sm:$0xff]
        %v822 = vld [vmem:[%s820 + $0x8] sm:$0xff]
        %v824 = vsel %vm438, %v821, 0
        %v827 = vsel %vm438, %v822, 0
        %829 = vmatprep.subr.mxu0 0.0
        %830 = vmatpush1.msra.mxu0 0.0
        %831 = vmatprep.subr.mxu0 0.0
        %832 = vmatpush1.msra.mxu0 0.0
        %833 = vmatprep.subr.mxu0 0.0
        %834 = vmatpush1.msra.mxu0 0.0
        %835 = vmatprep.subr.mxu0 0.0
        %836 = vmatpush1.msra.mxu0 0.0
        %837 = vmatprep.subr.mxu0 0.0
        %838 = vmatpush1.msra.mxu0 0.0
        %839 = vmatprep.subr.mxu0 0.0
        %840 = vmatpush1.msra.mxu0 0.0
        %841 = vmatprep.subr.mxu0 0.0
        %842 = vmatpush1.msra.mxu0 0.0
        %843 = vmatprep.subr.mxu0 0.0
        %844 = vmatpush1.msra.mxu0 0.0
        %845 = vmatprep.subr.mxu0 0.0
        %846 = vmatpush1.msra.mxu0 0.0
        %847 = vmatprep.subr.mxu0 0.0
        %848 = vmatpush1.msra.mxu0 0.0
        %849 = vmatprep.subr.mxu0 0.0
        %850 = vmatpush1.msra.mxu0 0.0
        %851 = vmatprep.subr.mxu0 0.0
        %852 = vmatpush1.msra.mxu0 0.0
        %853 = vmatprep.subr.mxu0 0.0
        %854 = vmatpush1.msra.mxu0 0.0
        %855 = vmatprep.subr.mxu0 0.0
        %856 = vmatpush1.msra.mxu0 0.0
        %857 = vmatprep.subr.mxu0 %v817
        %858 = vmatpush1.msra.mxu0 %v816
        %859 = vmatprep.subr.mxu0 %v813
        %860 = vmatpush1.msra.mxu0 %v812
        %861 = vmatprep.subr.mxu0 0.0
        %862 = vmatpush2.msra.mxu0 0.0
        %863 = vmatprep.subr.mxu0 0.0
        %864 = vmatpush2.msra.mxu0 0.0
        %865 = vmatprep.subr.mxu0 0.0
        %866 = vmatpush2.msra.mxu0 0.0
        %867 = vmatprep.subr.mxu0 0.0
        %868 = vmatpush2.msra.mxu0 0.0
        %869 = vmatprep.subr.mxu0 0.0
        %870 = vmatpush2.msra.mxu0 0.0
        %871 = vmatprep.subr.mxu0 0.0
        %872 = vmatpush2.msra.mxu0 0.0
        %873 = vmatprep.subr.mxu0 0.0
        %874 = vmatpush2.msra.mxu0 0.0
        %875 = vmatprep.subr.mxu0 0.0
        %876 = vmatpush2.msra.mxu0 0.0
        %877 = vmatprep.subr.mxu0 0.0
        %878 = vmatpush2.msra.mxu0 0.0
        %879 = vmatprep.subr.mxu0 0.0
        %880 = vmatpush2.msra.mxu0 0.0
        %881 = vmatprep.subr.mxu0 0.0
        %882 = vmatpush2.msra.mxu0 0.0
        %883 = vmatprep.subr.mxu0 0.0
        %884 = vmatpush2.msra.mxu0 0.0
        %885 = vmatprep.subr.mxu0 0.0
        %886 = vmatpush2.msra.mxu0 0.0
        %887 = vmatprep.subr.mxu0 0.0
        %888 = vmatpush2.msra.mxu0 0.0
        %889 = vmatprep.subr.mxu0 0.0
        %890 = vmatpush2.msra.mxu0 0.0
        %891 = vmatprep.subr.mxu0 0.0
        %892 = vmatpush2.msra.mxu0 0.0
        %893 = vmatprep.mubr.f32.mxu0 0.0
        %894 = vmatmul.mubr.f32.gmra.mxu0 %v824
        %v895 = vpop.f32.mrf.mxu0
        %v896 = vadd.f32 0.0, %v895
        %v897 = vpop.f32.mrf.mxu0
        %v898 = vadd.f32 0.0, %v897
        %899 = vmatprep.mubr.f32.mxu0 0.0
        %900 = vmatmul.mubr.f32.gmra.mxu0 %v827
        %v901 = vpop.f32.mrf.mxu0
        %v902 = vadd.f32 0.0, %v901
        %v903 = vpop.f32.mrf.mxu0
        %v904 = vadd.f32 0.0, %v903
        %905 = vdwg.mxu0
        %906 = vmatprep.subr.mxu0 0.0
        %907 = vmatpush1.msra.mxu0 0.0
        %908 = vmatprep.subr.mxu0 0.0
        %909 = vmatpush1.msra.mxu0 0.0
        %910 = vmatprep.subr.mxu0 0.0
        %911 = vmatpush1.msra.mxu0 0.0
        %912 = vmatprep.subr.mxu0 0.0
        %913 = vmatpush1.msra.mxu0 0.0
        %914 = vmatprep.subr.mxu0 0.0
        %915 = vmatpush1.msra.mxu0 0.0
        %916 = vmatprep.subr.mxu0 0.0
        %917 = vmatpush1.msra.mxu0 0.0
        %918 = vmatprep.subr.mxu0 0.0
        %919 = vmatpush1.msra.mxu0 0.0
        %920 = vmatprep.subr.mxu0 0.0
        %921 = vmatpush1.msra.mxu0 0.0
        %922 = vmatprep.subr.mxu0 0.0
        %923 = vmatpush1.msra.mxu0 0.0
        %924 = vmatprep.subr.mxu0 0.0
        %925 = vmatpush1.msra.mxu0 0.0
        %926 = vmatprep.subr.mxu0 0.0
        %927 = vmatpush1.msra.mxu0 0.0
        %928 = vmatprep.subr.mxu0 0.0
        %929 = vmatpush1.msra.mxu0 0.0
        %930 = vmatprep.subr.mxu0 0.0
        %931 = vmatpush1.msra.mxu0 0.0
        %932 = vmatprep.subr.mxu0 0.0
        %933 = vmatpush1.msra.mxu0 0.0
        %934 = vmatprep.subr.mxu0 %v819
        %935 = vmatpush1.msra.mxu0 %v818
        %936 = vmatprep.subr.mxu0 %v815
        %937 = vmatpush1.msra.mxu0 %v814
        %938 = vmatprep.subr.mxu0 0.0
        %939 = vmatpush2.msra.mxu0 0.0
        %940 = vmatprep.subr.mxu0 0.0
        %941 = vmatpush2.msra.mxu0 0.0
        %942 = vmatprep.subr.mxu0 0.0
        %943 = vmatpush2.msra.mxu0 0.0
        %944 = vmatprep.subr.mxu0 0.0
        %945 = vmatpush2.msra.mxu0 0.0
        %946 = vmatprep.subr.mxu0 0.0
        %947 = vmatpush2.msra.mxu0 0.0
        %948 = vmatprep.subr.mxu0 0.0
        %949 = vmatpush2.msra.mxu0 0.0
        %950 = vmatprep.subr.mxu0 0.0
        %951 = vmatpush2.msra.mxu0 0.0
        %952 = vmatprep.subr.mxu0 0.0
        %953 = vmatpush2.msra.mxu0 0.0
        %954 = vmatprep.subr.mxu0 0.0
        %955 = vmatpush2.msra.mxu0 0.0
        %956 = vmatprep.subr.mxu0 0.0
        %957 = vmatpush2.msra.mxu0 0.0
        %958 = vmatprep.subr.mxu0 0.0
        %959 = vmatpush2.msra.mxu0 0.0
        %960 = vmatprep.subr.mxu0 0.0
        %961 = vmatpush2.msra.mxu0 0.0
        %962 = vmatprep.subr.mxu0 0.0
        %963 = vmatpush2.msra.mxu0 0.0
        %964 = vmatprep.subr.mxu0 0.0
        %965 = vmatpush2.msra.mxu0 0.0
        %966 = vmatprep.subr.mxu0 0.0
        %967 = vmatpush2.msra.mxu0 0.0
        %968 = vmatprep.subr.mxu0 0.0
        %969 = vmatpush2.msra.mxu0 0.0
        %970 = vmatprep.mubr.f32.mxu0 0.0
        %971 = vmatmul.mubr.f32.gmra.mxu0 %v824
        %v972 = vpop.f32.mrf.mxu0
        %v973 = vadd.f32 0.0, %v972
        %v974 = vpop.f32.mrf.mxu0
        %v975 = vadd.f32 0.0, %v974
        %976 = vmatprep.mubr.f32.mxu0 0.0
        %977 = vmatmul.mubr.f32.gmra.mxu0 %v827
        %v978 = vpop.f32.mrf.mxu0
        %v979 = vadd.f32 0.0, %v978
        %v980 = vpop.f32.mrf.mxu0
        %v981 = vadd.f32 0.0, %v980
        %982 = vdwg.mxu0
        %v983 = vadd.f32 %v672, %v896
        %v984 = vadd.f32 %v674, %v898
        %v985 = vadd.f32 %v749, %v973
        %v986 = vadd.f32 %v751, %v975
        %v987 = vadd.f32 %v678, %v902
        %v988 = vadd.f32 %v680, %v904
        %v989 = vadd.f32 %v755, %v979
        %v990 = vadd.f32 %v757, %v981
        %991 = vrot.lane.b32.xlu0 %v274, 1
        %v992 = vpop.permute.xlu0 %991
        %993 = vrot.lane.b32.xlu0 %v278, 1
        %v994 = vpop.permute.xlu0 %993
        %995 = vrot.lane.b32.xlu0 %v275, 1
        %v996 = vpop.permute.xlu0 %995
        %997 = vrot.lane.b32.xlu0 %v279, 1
        %v998 = vpop.permute.xlu0 %997
        %999 = vrot.lane.b32.xlu0 %v276, 1
        %v1000 = vpop.permute.xlu0 %999
        %1001 = vrot.lane.b32.xlu0 %v280, 1
        %v1002 = vpop.permute.xlu0 %1001
        %1003 = vrot.lane.b32.xlu0 %v277, 1
        %v1004 = vpop.permute.xlu0 %1003
        %1005 = vrot.lane.b32.xlu0 %v281, 1
        %v1006 = vpop.permute.xlu0 %1005
        %vm1007 = vcmp.lt.s32.totalorder %v283, 1
        %v1008 = vsel %vm1007, %v1000, %v1004
        %v1009 = vsel %vm1007, %v1002, %v1006
        %v1010 = vsel %vm1007, %v996, %v1000
        %v1011 = vsel %vm1007, %v998, %v1002
        %v1012 = vsel %vm1007, %v992, %v996
        %v1013 = vsel %vm1007, %v994, %v998
        %v1014 = vsel %vm1007, %v1004, %v992
        %v1015 = vsel %vm1007, %v1006, %v994
        %vm1016 = vcmp.ge.s32.totalorder %v291, 0
        %vm1017 = vcmp.ge.s32.totalorder %v292, 0
        %vm1018 = vcmp.ge.s32.totalorder %v293, 0
        %vm1019 = vcmp.ge.s32.totalorder %v294, 0
        %vm1020 = vcmp.lt.s32.totalorder %v291, 16
        %vm1021 = vcmp.lt.s32.totalorder %v292, 16
        %vm1022 = vcmp.lt.s32.totalorder %v293, 16
        %vm1023 = vcmp.lt.s32.totalorder %v294, 16
        %vm1024 = vmand %vm1016, %vm1020
        %vm1025 = vmand %vm1017, %vm1021
        %vm1026 = vmand %vm1018, %vm1022
        %vm1027 = vmand %vm1019, %vm1023
        %vm1028 = vmand %vm1024, %vm344
        %vm1029 = vmand %vm1025, %vm345
        %vm1030 = vmand %vm1026, %vm346
        %vm1031 = vmand %vm1027, %vm347
        %vm1032 = vmand %vm1028, %vm352
        %vm1033 = vmand %vm1029, %vm353
        %vm1034 = vmand %vm1030, %vm354
        %vm1035 = vmand %vm1031, %vm355
        %v1036 = vsel %vm1032, 1, 0
        %v1037 = vsel %vm1033, 1, 0
        %v1038 = vsel %vm1034, 1, 0
        %v1039 = vsel %vm1035, 1, 0
        %v1040 = vcvt.s32.f32 %v1036
        %v1041 = vcvt.s32.f32 %v1037
        %v1042 = vcvt.s32.f32 %v1038
        %v1043 = vcvt.s32.f32 %v1039
        %v1044 = vmul.f32 %v1014, %v1040
        %v1045 = vmul.f32 %v1012, %v1041
        %v1046 = vmul.f32 %v1010, %v1042
        %v1047 = vmul.f32 %v1008, %v1043
        %v1048 = vmul.f32 %v1015, %v1040
        %v1049 = vmul.f32 %v1013, %v1041
        %v1050 = vmul.f32 %v1011, %v1042
        %v1051 = vmul.f32 %v1009, %v1043
        %s1052 = scalar_lea.vmem [#allocation5], 48
        %v1053 = vld [vmem:[%s1052] sm:$0xff]
        %v1054 = vld [vmem:[%s1052 + $0x8] sm:$0xff]
        %v1056 = vsel %vm438, %v1053, 0
        %v1059 = vsel %vm438, %v1054, 0
        %1061 = vmatprep.subr.mxu0 0.0
        %1062 = vmatpush1.msra.mxu0 0.0
        %1063 = vmatprep.subr.mxu0 0.0
        %1064 = vmatpush1.msra.mxu0 0.0
        %1065 = vmatprep.subr.mxu0 0.0
        %1066 = vmatpush1.msra.mxu0 0.0
        %1067 = vmatprep.subr.mxu0 0.0
        %1068 = vmatpush1.msra.mxu0 0.0
        %1069 = vmatprep.subr.mxu0 0.0
        %1070 = vmatpush1.msra.mxu0 0.0
        %1071 = vmatprep.subr.mxu0 0.0
        %1072 = vmatpush1.msra.mxu0 0.0
        %1073 = vmatprep.subr.mxu0 0.0
        %1074 = vmatpush1.msra.mxu0 0.0
        %1075 = vmatprep.subr.mxu0 0.0
        %1076 = vmatpush1.msra.mxu0 0.0
        %1077 = vmatprep.subr.mxu0 0.0
        %1078 = vmatpush1.msra.mxu0 0.0
        %1079 = vmatprep.subr.mxu0 0.0
        %1080 = vmatpush1.msra.mxu0 0.0
        %1081 = vmatprep.subr.mxu0 0.0
        %1082 = vmatpush1.msra.mxu0 0.0
        %1083 = vmatprep.subr.mxu0 0.0
        %1084 = vmatpush1.msra.mxu0 0.0
        %1085 = vmatprep.subr.mxu0 0.0
        %1086 = vmatpush1.msra.mxu0 0.0
        %1087 = vmatprep.subr.mxu0 0.0
        %1088 = vmatpush1.msra.mxu0 0.0
        %1089 = vmatprep.subr.mxu0 %v1049
        %1090 = vmatpush1.msra.mxu0 %v1048
        %1091 = vmatprep.subr.mxu0 %v1045
        %1092 = vmatpush1.msra.mxu0 %v1044
        %1093 = vmatprep.subr.mxu0 0.0
        %1094 = vmatpush2.msra.mxu0 0.0
        %1095 = vmatprep.subr.mxu0 0.0
        %1096 = vmatpush2.msra.mxu0 0.0
        %1097 = vmatprep.subr.mxu0 0.0
        %1098 = vmatpush2.msra.mxu0 0.0
        %1099 = vmatprep.subr.mxu0 0.0
        %1100 = vmatpush2.msra.mxu0 0.0
        %1101 = vmatprep.subr.mxu0 0.0
        %1102 = vmatpush2.msra.mxu0 0.0
        %1103 = vmatprep.subr.mxu0 0.0
        %1104 = vmatpush2.msra.mxu0 0.0
        %1105 = vmatprep.subr.mxu0 0.0
        %1106 = vmatpush2.msra.mxu0 0.0
        %1107 = vmatprep.subr.mxu0 0.0
        %1108 = vmatpush2.msra.mxu0 0.0
        %1109 = vmatprep.subr.mxu0 0.0
        %1110 = vmatpush2.msra.mxu0 0.0
        %1111 = vmatprep.subr.mxu0 0.0
        %1112 = vmatpush2.msra.mxu0 0.0
        %1113 = vmatprep.subr.mxu0 0.0
        %1114 = vmatpush2.msra.mxu0 0.0
        %1115 = vmatprep.subr.mxu0 0.0
        %1116 = vmatpush2.msra.mxu0 0.0
        %1117 = vmatprep.subr.mxu0 0.0
        %1118 = vmatpush2.msra.mxu0 0.0
        %1119 = vmatprep.subr.mxu0 0.0
        %1120 = vmatpush2.msra.mxu0 0.0
        %1121 = vmatprep.subr.mxu0 0.0
        %1122 = vmatpush2.msra.mxu0 0.0
        %1123 = vmatprep.subr.mxu0 0.0
        %1124 = vmatpush2.msra.mxu0 0.0
        %1125 = vmatprep.mubr.f32.mxu0 0.0
        %1126 = vmatmul.mubr.f32.gmra.mxu0 %v1056
        %v1127 = vpop.f32.mrf.mxu0
        %v1128 = vadd.f32 0.0, %v1127
        %v1129 = vpop.f32.mrf.mxu0
        %v1130 = vadd.f32 0.0, %v1129
        %1131 = vmatprep.mubr.f32.mxu0 0.0
        %1132 = vmatmul.mubr.f32.gmra.mxu0 %v1059
        %v1133 = vpop.f32.mrf.mxu0
        %v1134 = vadd.f32 0.0, %v1133
        %v1135 = vpop.f32.mrf.mxu0
        %v1136 = vadd.f32 0.0, %v1135
        %1137 = vdwg.mxu0
        %1138 = vmatprep.subr.mxu0 0.0
        %1139 = vmatpush1.msra.mxu0 0.0
        %1140 = vmatprep.subr.mxu0 0.0
        %1141 = vmatpush1.msra.mxu0 0.0
        %1142 = vmatprep.subr.mxu0 0.0
        %1143 = vmatpush1.msra.mxu0 0.0
        %1144 = vmatprep.subr.mxu0 0.0
        %1145 = vmatpush1.msra.mxu0 0.0
        %1146 = vmatprep.subr.mxu0 0.0
        %1147 = vmatpush1.msra.mxu0 0.0
        %1148 = vmatprep.subr.mxu0 0.0
        %1149 = vmatpush1.msra.mxu0 0.0
        %1150 = vmatprep.subr.mxu0 0.0
        %1151 = vmatpush1.msra.mxu0 0.0
        %1152 = vmatprep.subr.mxu0 0.0
        %1153 = vmatpush1.msra.mxu0 0.0
        %1154 = vmatprep.subr.mxu0 0.0
        %1155 = vmatpush1.msra.mxu0 0.0
        %1156 = vmatprep.subr.mxu0 0.0
        %1157 = vmatpush1.msra.mxu0 0.0
        %1158 = vmatprep.subr.mxu0 0.0
        %1159 = vmatpush1.msra.mxu0 0.0
        %1160 = vmatprep.subr.mxu0 0.0
        %1161 = vmatpush1.msra.mxu0 0.0
        %1162 = vmatprep.subr.mxu0 0.0
        %1163 = vmatpush1.msra.mxu0 0.0
        %1164 = vmatprep.subr.mxu0 0.0
        %1165 = vmatpush1.msra.mxu0 0.0
        %1166 = vmatprep.subr.mxu0 %v1051
        %1167 = vmatpush1.msra.mxu0 %v1050
        %1168 = vmatprep.subr.mxu0 %v1047
        %1169 = vmatpush1.msra.mxu0 %v1046
        %1170 = vmatprep.subr.mxu0 0.0
        %1171 = vmatpush2.msra.mxu0 0.0
        %1172 = vmatprep.subr.mxu0 0.0
        %1173 = vmatpush2.msra.mxu0 0.0
        %1174 = vmatprep.subr.mxu0 0.0
        %1175 = vmatpush2.msra.mxu0 0.0
        %1176 = vmatprep.subr.mxu0 0.0
        %1177 = vmatpush2.msra.mxu0 0.0
        %1178 = vmatprep.subr.mxu0 0.0
        %1179 = vmatpush2.msra.mxu0 0.0
        %1180 = vmatprep.subr.mxu0 0.0
        %1181 = vmatpush2.msra.mxu0 0.0
        %1182 = vmatprep.subr.mxu0 0.0
        %1183 = vmatpush2.msra.mxu0 0.0
        %1184 = vmatprep.subr.mxu0 0.0
        %1185 = vmatpush2.msra.mxu0 0.0
        %1186 = vmatprep.subr.mxu0 0.0
        %1187 = vmatpush2.msra.mxu0 0.0
        %1188 = vmatprep.subr.mxu0 0.0
        %1189 = vmatpush2.msra.mxu0 0.0
        %1190 = vmatprep.subr.mxu0 0.0
        %1191 = vmatpush2.msra.mxu0 0.0
        %1192 = vmatprep.subr.mxu0 0.0
        %1193 = vmatpush2.msra.mxu0 0.0
        %1194 = vmatprep.subr.mxu0 0.0
        %1195 = vmatpush2.msra.mxu0 0.0
        %1196 = vmatprep.subr.mxu0 0.0
        %1197 = vmatpush2.msra.mxu0 0.0
        %1198 = vmatprep.subr.mxu0 0.0
        %1199 = vmatpush2.msra.mxu0 0.0
        %1200 = vmatprep.subr.mxu0 0.0
        %1201 = vmatpush2.msra.mxu0 0.0
        %1202 = vmatprep.mubr.f32.mxu0 0.0
        %1203 = vmatmul.mubr.f32.gmra.mxu0 %v1056
        %v1204 = vpop.f32.mrf.mxu0
        %v1205 = vadd.f32 0.0, %v1204
        %v1206 = vpop.f32.mrf.mxu0
        %v1207 = vadd.f32 0.0, %v1206
        %1208 = vmatprep.mubr.f32.mxu0 0.0
        %1209 = vmatmul.mubr.f32.gmra.mxu0 %v1059
        %v1210 = vpop.f32.mrf.mxu0
        %v1211 = vadd.f32 0.0, %v1210
        %v1212 = vpop.f32.mrf.mxu0
        %v1213 = vadd.f32 0.0, %v1212
        %1214 = vdwg.mxu0
        %v1215 = vadd.f32 %v983, %v1128
        %v1216 = vadd.f32 %v984, %v1130
        %v1217 = vadd.f32 %v985, %v1205
        %v1218 = vadd.f32 %v986, %v1207
        %v1219 = vadd.f32 %v987, %v1134
        %v1220 = vadd.f32 %v988, %v1136
        %v1221 = vadd.f32 %v989, %v1211
        %v1222 = vadd.f32 %v990, %v1213
        %vm1223 = vmand %vm1024, %vm403
        %vm1224 = vmand %vm1025, %vm404
        %vm1225 = vmand %vm1026, %vm405
        %vm1226 = vmand %vm1027, %vm406
        %vm1227 = vmand %vm1223, %vm411
        %vm1228 = vmand %vm1224, %vm412
        %vm1229 = vmand %vm1225, %vm413
        %vm1230 = vmand %vm1226, %vm414
        %v1231 = vsel %vm1227, 1, 0
        %v1232 = vsel %vm1228, 1, 0
        %v1233 = vsel %vm1229, 1, 0
        %v1234 = vsel %vm1230, 1, 0
        %v1235 = vcvt.s32.f32 %v1231
        %v1236 = vcvt.s32.f32 %v1232
        %v1237 = vcvt.s32.f32 %v1233
        %v1238 = vcvt.s32.f32 %v1234
        %v1239 = vmul.f32 %v274, %v1235
        %v1240 = vmul.f32 %v275, %v1236
        %v1241 = vmul.f32 %v276, %v1237
        %v1242 = vmul.f32 %v277, %v1238
        %v1243 = vmul.f32 %v278, %v1235
        %v1244 = vmul.f32 %v279, %v1236
        %v1245 = vmul.f32 %v280, %v1237
        %v1246 = vmul.f32 %v281, %v1238
        %s1247 = scalar_lea.vmem [#allocation5], 64
        %v1248 = vld [vmem:[%s1247] sm:$0xff]
        %v1249 = vld [vmem:[%s1247 + $0x8] sm:$0xff]
        %v1251 = vsel %vm438, %v1248, 0
        %v1254 = vsel %vm438, %v1249, 0
        %1256 = vmatprep.subr.mxu0 0.0
        %1257 = vmatpush1.msra.mxu0 0.0
        %1258 = vmatprep.subr.mxu0 0.0
        %1259 = vmatpush1.msra.mxu0 0.0
        %1260 = vmatprep.subr.mxu0 0.0
        %1261 = vmatpush1.msra.mxu0 0.0
        %1262 = vmatprep.subr.mxu0 0.0
        %1263 = vmatpush1.msra.mxu0 0.0
        %1264 = vmatprep.subr.mxu0 0.0
        %1265 = vmatpush1.msra.mxu0 0.0
        %1266 = vmatprep.subr.mxu0 0.0
        %1267 = vmatpush1.msra.mxu0 0.0
        %1268 = vmatprep.subr.mxu0 0.0
        %1269 = vmatpush1.msra.mxu0 0.0
        %1270 = vmatprep.subr.mxu0 0.0
        %1271 = vmatpush1.msra.mxu0 0.0
        %1272 = vmatprep.subr.mxu0 0.0
        %1273 = vmatpush1.msra.mxu0 0.0
        %1274 = vmatprep.subr.mxu0 0.0
        %1275 = vmatpush1.msra.mxu0 0.0
        %1276 = vmatprep.subr.mxu0 0.0
        %1277 = vmatpush1.msra.mxu0 0.0
        %1278 = vmatprep.subr.mxu0 0.0
        %1279 = vmatpush1.msra.mxu0 0.0
        %1280 = vmatprep.subr.mxu0 0.0
        %1281 = vmatpush1.msra.mxu0 0.0
        %1282 = vmatprep.subr.mxu0 0.0
        %1283 = vmatpush1.msra.mxu0 0.0
        %1284 = vmatprep.subr.mxu0 %v1244
        %1285 = vmatpush1.msra.mxu0 %v1243
        %1286 = vmatprep.subr.mxu0 %v1240
        %1287 = vmatpush1.msra.mxu0 %v1239
        %1288 = vmatprep.subr.mxu0 0.0
        %1289 = vmatpush2.msra.mxu0 0.0
        %1290 = vmatprep.subr.mxu0 0.0
        %1291 = vmatpush2.msra.mxu0 0.0
        %1292 = vmatprep.subr.mxu0 0.0
        %1293 = vmatpush2.msra.mxu0 0.0
        %1294 = vmatprep.subr.mxu0 0.0
        %1295 = vmatpush2.msra.mxu0 0.0
        %1296 = vmatprep.subr.mxu0 0.0
        %1297 = vmatpush2.msra.mxu0 0.0
        %1298 = vmatprep.subr.mxu0 0.0
        %1299 = vmatpush2.msra.mxu0 0.0
        %1300 = vmatprep.subr.mxu0 0.0
        %1301 = vmatpush2.msra.mxu0 0.0
        %1302 = vmatprep.subr.mxu0 0.0
        %1303 = vmatpush2.msra.mxu0 0.0
        %1304 = vmatprep.subr.mxu0 0.0
        %1305 = vmatpush2.msra.mxu0 0.0
        %1306 = vmatprep.subr.mxu0 0.0
        %1307 = vmatpush2.msra.mxu0 0.0
        %1308 = vmatprep.subr.mxu0 0.0
        %1309 = vmatpush2.msra.mxu0 0.0
        %1310 = vmatprep.subr.mxu0 0.0
        %1311 = vmatpush2.msra.mxu0 0.0
        %1312 = vmatprep.subr.mxu0 0.0
        %1313 = vmatpush2.msra.mxu0 0.0
        %1314 = vmatprep.subr.mxu0 0.0
        %1315 = vmatpush2.msra.mxu0 0.0
        %1316 = vmatprep.subr.mxu0 0.0
        %1317 = vmatpush2.msra.mxu0 0.0
        %1318 = vmatprep.subr.mxu0 0.0
        %1319 = vmatpush2.msra.mxu0 0.0
        %1320 = vmatprep.mubr.f32.mxu0 0.0
        %1321 = vmatmul.mubr.f32.gmra.mxu0 %v1251
        %v1322 = vpop.f32.mrf.mxu0
        %v1323 = vadd.f32 0.0, %v1322
        %v1324 = vpop.f32.mrf.mxu0
        %v1325 = vadd.f32 0.0, %v1324
        %1326 = vmatprep.mubr.f32.mxu0 0.0
        %1327 = vmatmul.mubr.f32.gmra.mxu0 %v1254
        %v1328 = vpop.f32.mrf.mxu0
        %v1329 = vadd.f32 0.0, %v1328
        %v1330 = vpop.f32.mrf.mxu0
        %v1331 = vadd.f32 0.0, %v1330
        %1332 = vdwg.mxu0
        %1333 = vmatprep.subr.mxu0 0.0
        %1334 = vmatpush1.msra.mxu0 0.0
        %1335 = vmatprep.subr.mxu0 0.0
        %1336 = vmatpush1.msra.mxu0 0.0
        %1337 = vmatprep.subr.mxu0 0.0
        %1338 = vmatpush1.msra.mxu0 0.0
        %1339 = vmatprep.subr.mxu0 0.0
        %1340 = vmatpush1.msra.mxu0 0.0
        %1341 = vmatprep.subr.mxu0 0.0
        %1342 = vmatpush1.msra.mxu0 0.0
        %1343 = vmatprep.subr.mxu0 0.0
        %1344 = vmatpush1.msra.mxu0 0.0
        %1345 = vmatprep.subr.mxu0 0.0
        %1346 = vmatpush1.msra.mxu0 0.0
        %1347 = vmatprep.subr.mxu0 0.0
        %1348 = vmatpush1.msra.mxu0 0.0
        %1349 = vmatprep.subr.mxu0 0.0
        %1350 = vmatpush1.msra.mxu0 0.0
        %1351 = vmatprep.subr.mxu0 0.0
        %1352 = vmatpush1.msra.mxu0 0.0
        %1353 = vmatprep.subr.mxu0 0.0
        %1354 = vmatpush1.msra.mxu0 0.0
        %1355 = vmatprep.subr.mxu0 0.0
        %1356 = vmatpush1.msra.mxu0 0.0
        %1357 = vmatprep.subr.mxu0 0.0
        %1358 = vmatpush1.msra.mxu0 0.0
        %1359 = vmatprep.subr.mxu0 0.0
        %1360 = vmatpush1.msra.mxu0 0.0
        %1361 = vmatprep.subr.mxu0 %v1246
        %1362 = vmatpush1.msra.mxu0 %v1245
        %1363 = vmatprep.subr.mxu0 %v1242
        %1364 = vmatpush1.msra.mxu0 %v1241
        %1365 = vmatprep.subr.mxu0 0.0
        %1366 = vmatpush2.msra.mxu0 0.0
        %1367 = vmatprep.subr.mxu0 0.0
        %1368 = vmatpush2.msra.mxu0 0.0
        %1369 = vmatprep.subr.mxu0 0.0
        %1370 = vmatpush2.msra.mxu0 0.0
        %1371 = vmatprep.subr.mxu0 0.0
        %1372 = vmatpush2.msra.mxu0 0.0
        %1373 = vmatprep.subr.mxu0 0.0
        %1374 = vmatpush2.msra.mxu0 0.0
        %1375 = vmatprep.subr.mxu0 0.0
        %1376 = vmatpush2.msra.mxu0 0.0
        %1377 = vmatprep.subr.mxu0 0.0
        %1378 = vmatpush2.msra.mxu0 0.0
        %1379 = vmatprep.subr.mxu0 0.0
        %1380 = vmatpush2.msra.mxu0 0.0
        %1381 = vmatprep.subr.mxu0 0.0
        %1382 = vmatpush2.msra.mxu0 0.0
        %1383 = vmatprep.subr.mxu0 0.0
        %1384 = vmatpush2.msra.mxu0 0.0
        %1385 = vmatprep.subr.mxu0 0.0
        %1386 = vmatpush2.msra.mxu0 0.0
        %1387 = vmatprep.subr.mxu0 0.0
        %1388 = vmatpush2.msra.mxu0 0.0
        %1389 = vmatprep.subr.mxu0 0.0
        %1390 = vmatpush2.msra.mxu0 0.0
        %1391 = vmatprep.subr.mxu0 0.0
        %1392 = vmatpush2.msra.mxu0 0.0
        %1393 = vmatprep.subr.mxu0 0.0
        %1394 = vmatpush2.msra.mxu0 0.0
        %1395 = vmatprep.subr.mxu0 0.0
        %1396 = vmatpush2.msra.mxu0 0.0
        %1397 = vmatprep.mubr.f32.mxu0 0.0
        %1398 = vmatmul.mubr.f32.gmra.mxu0 %v1251
        %v1399 = vpop.f32.mrf.mxu0
        %v1400 = vadd.f32 0.0, %v1399
        %v1401 = vpop.f32.mrf.mxu0
        %v1402 = vadd.f32 0.0, %v1401
        %1403 = vmatprep.mubr.f32.mxu0 0.0
        %1404 = vmatmul.mubr.f32.gmra.mxu0 %v1254
        %v1405 = vpop.f32.mrf.mxu0
        %v1406 = vadd.f32 0.0, %v1405
        %v1407 = vpop.f32.mrf.mxu0
        %v1408 = vadd.f32 0.0, %v1407
        %1409 = vdwg.mxu0
        %v1410 = vadd.f32 %v1215, %v1323
        %v1411 = vadd.f32 %v1216, %v1325
        %v1412 = vadd.f32 %v1217, %v1400
        %v1413 = vadd.f32 %v1218, %v1402
        %v1414 = vadd.f32 %v1219, %v1329
        %v1415 = vadd.f32 %v1220, %v1331
        %v1416 = vadd.f32 %v1221, %v1406
        %v1417 = vadd.f32 %v1222, %v1408
        %1418 = vrot.lane.b32.xlu0 %v274, 127
        %v1419 = vpop.permute.xlu0 %1418
        %1420 = vrot.lane.b32.xlu0 %v278, 127
        %v1421 = vpop.permute.xlu0 %1420
        %1422 = vrot.lane.b32.xlu0 %v275, 127
        %v1423 = vpop.permute.xlu0 %1422
        %1424 = vrot.lane.b32.xlu0 %v279, 127
        %v1425 = vpop.permute.xlu0 %1424
        %1426 = vrot.lane.b32.xlu0 %v276, 127
        %v1427 = vpop.permute.xlu0 %1426
        %1428 = vrot.lane.b32.xlu0 %v280, 127
        %v1429 = vpop.permute.xlu0 %1428
        %1430 = vrot.lane.b32.xlu0 %v277, 127
        %v1431 = vpop.permute.xlu0 %1430
        %1432 = vrot.lane.b32.xlu0 %v281, 127
        %v1433 = vpop.permute.xlu0 %1432
        %vm1434 = vcmp.lt.s32.totalorder %v283, 127
        %v1435 = vsel %vm1434, %v1427, %v1431
        %v1436 = vsel %vm1434, %v1429, %v1433
        %v1437 = vsel %vm1434, %v1423, %v1427
        %v1438 = vsel %vm1434, %v1425, %v1429
        %v1439 = vsel %vm1434, %v1419, %v1423
        %v1440 = vsel %vm1434, %v1421, %v1425
        %v1441 = vsel %vm1434, %v1431, %v1419
        %v1442 = vsel %vm1434, %v1433, %v1421
        %vm1443 = vmand %vm1024, %vm788
        %vm1444 = vmand %vm1025, %vm789
        %vm1445 = vmand %vm1026, %vm790
        %vm1446 = vmand %vm1027, %vm791
        %vm1447 = vmand %vm1443, %vm796
        %vm1448 = vmand %vm1444, %vm797
        %vm1449 = vmand %vm1445, %vm798
        %vm1450 = vmand %vm1446, %vm799
        %v1451 = vsel %vm1447, 1, 0
        %v1452 = vsel %vm1448, 1, 0
        %v1453 = vsel %vm1449, 1, 0
        %v1454 = vsel %vm1450, 1, 0
        %v1455 = vcvt.s32.f32 %v1451
        %v1456 = vcvt.s32.f32 %v1452
        %v1457 = vcvt.s32.f32 %v1453
        %v1458 = vcvt.s32.f32 %v1454
        %v1459 = vmul.f32 %v1439, %v1455
        %v1460 = vmul.f32 %v1437, %v1456
        %v1461 = vmul.f32 %v1435, %v1457
        %v1462 = vmul.f32 %v1441, %v1458
        %v1463 = vmul.f32 %v1440, %v1455
        %v1464 = vmul.f32 %v1438, %v1456
        %v1465 = vmul.f32 %v1436, %v1457
        %v1466 = vmul.f32 %v1442, %v1458
        %s1467 = scalar_lea.vmem [#allocation5], 80
        %v1468 = vld [vmem:[%s1467] sm:$0xff]
        %v1469 = vld [vmem:[%s1467 + $0x8] sm:$0xff]
        %v1471 = vsel %vm438, %v1468, 0
        %v1474 = vsel %vm438, %v1469, 0
        %1476 = vmatprep.subr.mxu0 0.0
        %1477 = vmatpush1.msra.mxu0 0.0
        %1478 = vmatprep.subr.mxu0 0.0
        %1479 = vmatpush1.msra.mxu0 0.0
        %1480 = vmatprep.subr.mxu0 0.0
        %1481 = vmatpush1.msra.mxu0 0.0
        %1482 = vmatprep.subr.mxu0 0.0
        %1483 = vmatpush1.msra.mxu0 0.0
        %1484 = vmatprep.subr.mxu0 0.0
        %1485 = vmatpush1.msra.mxu0 0.0
        %1486 = vmatprep.subr.mxu0 0.0
        %1487 = vmatpush1.msra.mxu0 0.0
        %1488 = vmatprep.subr.mxu0 0.0
        %1489 = vmatpush1.msra.mxu0 0.0
        %1490 = vmatprep.subr.mxu0 0.0
        %1491 = vmatpush1.msra.mxu0 0.0
        %1492 = vmatprep.subr.mxu0 0.0
        %1493 = vmatpush1.msra.mxu0 0.0
        %1494 = vmatprep.subr.mxu0 0.0
        %1495 = vmatpush1.msra.mxu0 0.0
        %1496 = vmatprep.subr.mxu0 0.0
        %1497 = vmatpush1.msra.mxu0 0.0
        %1498 = vmatprep.subr.mxu0 0.0
        %1499 = vmatpush1.msra.mxu0 0.0
        %1500 = vmatprep.subr.mxu0 0.0
        %1501 = vmatpush1.msra.mxu0 0.0
        %1502 = vmatprep.subr.mxu0 0.0
        %1503 = vmatpush1.msra.mxu0 0.0
        %1504 = vmatprep.subr.mxu0 %v1464
        %1505 = vmatpush1.msra.mxu0 %v1463
        %1506 = vmatprep.subr.mxu0 %v1460
        %1507 = vmatpush1.msra.mxu0 %v1459
        %1508 = vmatprep.subr.mxu0 0.0
        %1509 = vmatpush2.msra.mxu0 0.0
        %1510 = vmatprep.subr.mxu0 0.0
        %1511 = vmatpush2.msra.mxu0 0.0
        %1512 = vmatprep.subr.mxu0 0.0
        %1513 = vmatpush2.msra.mxu0 0.0
        %1514 = vmatprep.subr.mxu0 0.0
        %1515 = vmatpush2.msra.mxu0 0.0
        %1516 = vmatprep.subr.mxu0 0.0
        %1517 = vmatpush2.msra.mxu0 0.0
        %1518 = vmatprep.subr.mxu0 0.0
        %1519 = vmatpush2.msra.mxu0 0.0
        %1520 = vmatprep.subr.mxu0 0.0
        %1521 = vmatpush2.msra.mxu0 0.0
        %1522 = vmatprep.subr.mxu0 0.0
        %1523 = vmatpush2.msra.mxu0 0.0
        %1524 = vmatprep.subr.mxu0 0.0
        %1525 = vmatpush2.msra.mxu0 0.0
        %1526 = vmatprep.subr.mxu0 0.0
        %1527 = vmatpush2.msra.mxu0 0.0
        %1528 = vmatprep.subr.mxu0 0.0
        %1529 = vmatpush2.msra.mxu0 0.0
        %1530 = vmatprep.subr.mxu0 0.0
        %1531 = vmatpush2.msra.mxu0 0.0
        %1532 = vmatprep.subr.mxu0 0.0
        %1533 = vmatpush2.msra.mxu0 0.0
        %1534 = vmatprep.subr.mxu0 0.0
        %1535 = vmatpush2.msra.mxu0 0.0
        %1536 = vmatprep.subr.mxu0 0.0
        %1537 = vmatpush2.msra.mxu0 0.0
        %1538 = vmatprep.subr.mxu0 0.0
        %1539 = vmatpush2.msra.mxu0 0.0
        %1540 = vmatprep.mubr.f32.mxu0 0.0
        %1541 = vmatmul.mubr.f32.gmra.mxu0 %v1471
        %v1542 = vpop.f32.mrf.mxu0
        %v1543 = vadd.f32 0.0, %v1542
        %v1544 = vpop.f32.mrf.mxu0
        %v1545 = vadd.f32 0.0, %v1544
        %1546 = vmatprep.mubr.f32.mxu0 0.0
        %1547 = vmatmul.mubr.f32.gmra.mxu0 %v1474
        %v1548 = vpop.f32.mrf.mxu0
        %v1549 = vadd.f32 0.0, %v1548
        %v1550 = vpop.f32.mrf.mxu0
        %v1551 = vadd.f32 0.0, %v1550
        %1552 = vdwg.mxu0
        %1553 = vmatprep.subr.mxu0 0.0
        %1554 = vmatpush1.msra.mxu0 0.0
        %1555 = vmatprep.subr.mxu0 0.0
        %1556 = vmatpush1.msra.mxu0 0.0
        %1557 = vmatprep.subr.mxu0 0.0
        %1558 = vmatpush1.msra.mxu0 0.0
        %1559 = vmatprep.subr.mxu0 0.0
        %1560 = vmatpush1.msra.mxu0 0.0
        %1561 = vmatprep.subr.mxu0 0.0
        %1562 = vmatpush1.msra.mxu0 0.0
        %1563 = vmatprep.subr.mxu0 0.0
        %1564 = vmatpush1.msra.mxu0 0.0
        %1565 = vmatprep.subr.mxu0 0.0
        %1566 = vmatpush1.msra.mxu0 0.0
        %1567 = vmatprep.subr.mxu0 0.0
        %1568 = vmatpush1.msra.mxu0 0.0
        %1569 = vmatprep.subr.mxu0 0.0
        %1570 = vmatpush1.msra.mxu0 0.0
        %1571 = vmatprep.subr.mxu0 0.0
        %1572 = vmatpush1.msra.mxu0 0.0
        %1573 = vmatprep.subr.mxu0 0.0
        %1574 = vmatpush1.msra.mxu0 0.0
        %1575 = vmatprep.subr.mxu0 0.0
        %1576 = vmatpush1.msra.mxu0 0.0
        %1577 = vmatprep.subr.mxu0 0.0
        %1578 = vmatpush1.msra.mxu0 0.0
        %1579 = vmatprep.subr.mxu0 0.0
        %1580 = vmatpush1.msra.mxu0 0.0
        %1581 = vmatprep.subr.mxu0 %v1466
        %1582 = vmatpush1.msra.mxu0 %v1465
        %1583 = vmatprep.subr.mxu0 %v1462
        %1584 = vmatpush1.msra.mxu0 %v1461
        %1585 = vmatprep.subr.mxu0 0.0
        %1586 = vmatpush2.msra.mxu0 0.0
        %1587 = vmatprep.subr.mxu0 0.0
        %1588 = vmatpush2.msra.mxu0 0.0
        %1589 = vmatprep.subr.mxu0 0.0
        %1590 = vmatpush2.msra.mxu0 0.0
        %1591 = vmatprep.subr.mxu0 0.0
        %1592 = vmatpush2.msra.mxu0 0.0
        %1593 = vmatprep.subr.mxu0 0.0
        %1594 = vmatpush2.msra.mxu0 0.0
        %1595 = vmatprep.subr.mxu0 0.0
        %1596 = vmatpush2.msra.mxu0 0.0
        %1597 = vmatprep.subr.mxu0 0.0
        %1598 = vmatpush2.msra.mxu0 0.0
        %1599 = vmatprep.subr.mxu0 0.0
        %1600 = vmatpush2.msra.mxu0 0.0
        %1601 = vmatprep.subr.mxu0 0.0
        %1602 = vmatpush2.msra.mxu0 0.0
        %1603 = vmatprep.subr.mxu0 0.0
        %1604 = vmatpush2.msra.mxu0 0.0
        %1605 = vmatprep.subr.mxu0 0.0
        %1606 = vmatpush2.msra.mxu0 0.0
        %1607 = vmatprep.subr.mxu0 0.0
        %1608 = vmatpush2.msra.mxu0 0.0
        %1609 = vmatprep.subr.mxu0 0.0
        %1610 = vmatpush2.msra.mxu0 0.0
        %1611 = vmatprep.subr.mxu0 0.0
        %1612 = vmatpush2.msra.mxu0 0.0
        %1613 = vmatprep.subr.mxu0 0.0
        %1614 = vmatpush2.msra.mxu0 0.0
        %1615 = vmatprep.subr.mxu0 0.0
        %1616 = vmatpush2.msra.mxu0 0.0
        %1617 = vmatprep.mubr.f32.mxu0 0.0
        %1618 = vmatmul.mubr.f32.gmra.mxu0 %v1471
        %v1619 = vpop.f32.mrf.mxu0
        %v1620 = vadd.f32 0.0, %v1619
        %v1621 = vpop.f32.mrf.mxu0
        %v1622 = vadd.f32 0.0, %v1621
        %1623 = vmatprep.mubr.f32.mxu0 0.0
        %1624 = vmatmul.mubr.f32.gmra.mxu0 %v1474
        %v1625 = vpop.f32.mrf.mxu0
        %v1626 = vadd.f32 0.0, %v1625
        %v1627 = vpop.f32.mrf.mxu0
        %v1628 = vadd.f32 0.0, %v1627
        %1629 = vdwg.mxu0
        %v1630 = vadd.f32 %v1410, %v1543
        %v1631 = vadd.f32 %v1411, %v1545
        %v1632 = vadd.f32 %v1412, %v1620
        %v1633 = vadd.f32 %v1413, %v1622
        %v1634 = vadd.f32 %v1414, %v1549
        %v1635 = vadd.f32 %v1415, %v1551
        %v1636 = vadd.f32 %v1416, %v1626
        %v1637 = vadd.f32 %v1417, %v1628
        %1638 = vrot.lane.b32.xlu0 %v274, 113
        %v1639 = vpop.permute.xlu0 %1638
        %1640 = vrot.lane.b32.xlu0 %v278, 113
        %v1641 = vpop.permute.xlu0 %1640
        %1642 = vrot.lane.b32.xlu0 %v275, 113
        %v1643 = vpop.permute.xlu0 %1642
        %1644 = vrot.lane.b32.xlu0 %v279, 113
        %v1645 = vpop.permute.xlu0 %1644
        %1646 = vrot.lane.b32.xlu0 %v276, 113
        %v1647 = vpop.permute.xlu0 %1646
        %1648 = vrot.lane.b32.xlu0 %v280, 113
        %v1649 = vpop.permute.xlu0 %1648
        %1650 = vrot.lane.b32.xlu0 %v277, 113
        %v1651 = vpop.permute.xlu0 %1650
        %1652 = vrot.lane.b32.xlu0 %v281, 113
        %v1653 = vpop.permute.xlu0 %1652
        %vm1654 = vcmp.lt.s32.totalorder %v283, 113
        %v1655 = vsel %vm1654, %v1647, %v1651
        %v1656 = vsel %vm1654, %v1649, %v1653
        %v1657 = vsel %vm1654, %v1643, %v1647
        %v1658 = vsel %vm1654, %v1645, %v1649
        %v1659 = vsel %vm1654, %v1639, %v1643
        %v1660 = vsel %vm1654, %v1641, %v1645
        %v1661 = vsel %vm1654, %v1651, %v1639
        %v1662 = vsel %vm1654, %v1653, %v1641
        %v1663 = vadd.s32 %v291, 1
        %v1664 = vadd.s32 %v292, 1
        %v1665 = vadd.s32 %v293, 1
        %v1666 = vadd.s32 %v294, 1
        %vm1667 = vcmp.ge.s32.totalorder %v1663, 0
        %vm1668 = vcmp.ge.s32.totalorder %v1664, 0
        %vm1669 = vcmp.ge.s32.totalorder %v1665, 0
        %vm1670 = vcmp.ge.s32.totalorder %v1666, 0
        %vm1671 = vcmp.lt.s32.totalorder %v1663, 16
        %vm1672 = vcmp.lt.s32.totalorder %v1664, 16
        %vm1673 = vcmp.lt.s32.totalorder %v1665, 16
        %vm1674 = vcmp.lt.s32.totalorder %v1666, 16
        %vm1675 = vmand %vm1667, %vm1671
        %vm1676 = vmand %vm1668, %vm1672
        %vm1677 = vmand %vm1669, %vm1673
        %vm1678 = vmand %vm1670, %vm1674
        %vm1679 = vmand %vm1675, %vm344
        %vm1680 = vmand %vm1676, %vm345
        %vm1681 = vmand %vm1677, %vm346
        %vm1682 = vmand %vm1678, %vm347
        %vm1683 = vmand %vm1679, %vm352
        %vm1684 = vmand %vm1680, %vm353
        %vm1685 = vmand %vm1681, %vm354
        %vm1686 = vmand %vm1682, %vm355
        %v1687 = vsel %vm1683, 1, 0
        %v1688 = vsel %vm1684, 1, 0
        %v1689 = vsel %vm1685, 1, 0
        %v1690 = vsel %vm1686, 1, 0
        %v1691 = vcvt.s32.f32 %v1687
        %v1692 = vcvt.s32.f32 %v1688
        %v1693 = vcvt.s32.f32 %v1689
        %v1694 = vcvt.s32.f32 %v1690
        %v1695 = vmul.f32 %v1659, %v1691
        %v1696 = vmul.f32 %v1657, %v1692
        %v1697 = vmul.f32 %v1655, %v1693
        %v1698 = vmul.f32 %v1661, %v1694
        %v1699 = vmul.f32 %v1660, %v1691
        %v1700 = vmul.f32 %v1658, %v1692
        %v1701 = vmul.f32 %v1656, %v1693
        %v1702 = vmul.f32 %v1662, %v1694
        %s1703 = scalar_lea.vmem [#allocation5], 96
        %v1704 = vld [vmem:[%s1703] sm:$0xff]
        %v1705 = vld [vmem:[%s1703 + $0x8] sm:$0xff]
        %v1707 = vsel %vm438, %v1704, 0
        %v1710 = vsel %vm438, %v1705, 0
        %1712 = vmatprep.subr.mxu0 0.0
        %1713 = vmatpush1.msra.mxu0 0.0
        %1714 = vmatprep.subr.mxu0 0.0
        %1715 = vmatpush1.msra.mxu0 0.0
        %1716 = vmatprep.subr.mxu0 0.0
        %1717 = vmatpush1.msra.mxu0 0.0
        %1718 = vmatprep.subr.mxu0 0.0
        %1719 = vmatpush1.msra.mxu0 0.0
        %1720 = vmatprep.subr.mxu0 0.0
        %1721 = vmatpush1.msra.mxu0 0.0
        %1722 = vmatprep.subr.mxu0 0.0
        %1723 = vmatpush1.msra.mxu0 0.0
        %1724 = vmatprep.subr.mxu0 0.0
        %1725 = vmatpush1.msra.mxu0 0.0
        %1726 = vmatprep.subr.mxu0 0.0
        %1727 = vmatpush1.msra.mxu0 0.0
        %1728 = vmatprep.subr.mxu0 0.0
        %1729 = vmatpush1.msra.mxu0 0.0
        %1730 = vmatprep.subr.mxu0 0.0
        %1731 = vmatpush1.msra.mxu0 0.0
        %1732 = vmatprep.subr.mxu0 0.0
        %1733 = vmatpush1.msra.mxu0 0.0
        %1734 = vmatprep.subr.mxu0 0.0
        %1735 = vmatpush1.msra.mxu0 0.0
        %1736 = vmatprep.subr.mxu0 0.0
        %1737 = vmatpush1.msra.mxu0 0.0
        %1738 = vmatprep.subr.mxu0 0.0
        %1739 = vmatpush1.msra.mxu0 0.0
        %1740 = vmatprep.subr.mxu0 %v1700
        %1741 = vmatpush1.msra.mxu0 %v1699
        %1742 = vmatprep.subr.mxu0 %v1696
        %1743 = vmatpush1.msra.mxu0 %v1695
        %1744 = vmatprep.subr.mxu0 0.0
        %1745 = vmatpush2.msra.mxu0 0.0
        %1746 = vmatprep.subr.mxu0 0.0
        %1747 = vmatpush2.msra.mxu0 0.0
        %1748 = vmatprep.subr.mxu0 0.0
        %1749 = vmatpush2.msra.mxu0 0.0
        %1750 = vmatprep.subr.mxu0 0.0
        %1751 = vmatpush2.msra.mxu0 0.0
        %1752 = vmatprep.subr.mxu0 0.0
        %1753 = vmatpush2.msra.mxu0 0.0
        %1754 = vmatprep.subr.mxu0 0.0
        %1755 = vmatpush2.msra.mxu0 0.0
        %1756 = vmatprep.subr.mxu0 0.0
        %1757 = vmatpush2.msra.mxu0 0.0
        %1758 = vmatprep.subr.mxu0 0.0
        %1759 = vmatpush2.msra.mxu0 0.0
        %1760 = vmatprep.subr.mxu0 0.0
        %1761 = vmatpush2.msra.mxu0 0.0
        %1762 = vmatprep.subr.mxu0 0.0
        %1763 = vmatpush2.msra.mxu0 0.0
        %1764 = vmatprep.subr.mxu0 0.0
        %1765 = vmatpush2.msra.mxu0 0.0
        %1766 = vmatprep.subr.mxu0 0.0
        %1767 = vmatpush2.msra.mxu0 0.0
        %1768 = vmatprep.subr.mxu0 0.0
        %1769 = vmatpush2.msra.mxu0 0.0
        %1770 = vmatprep.subr.mxu0 0.0
        %1771 = vmatpush2.msra.mxu0 0.0
        %1772 = vmatprep.subr.mxu0 0.0
        %1773 = vmatpush2.msra.mxu0 0.0
        %1774 = vmatprep.subr.mxu0 0.0
        %1775 = vmatpush2.msra.mxu0 0.0
        %1776 = vmatprep.mubr.f32.mxu0 0.0
        %1777 = vmatmul.mubr.f32.gmra.mxu0 %v1707
        %v1778 = vpop.f32.mrf.mxu0
        %v1779 = vadd.f32 0.0, %v1778
        %v1780 = vpop.f32.mrf.mxu0
        %v1781 = vadd.f32 0.0, %v1780
        %1782 = vmatprep.mubr.f32.mxu0 0.0
        %1783 = vmatmul.mubr.f32.gmra.mxu0 %v1710
        %v1784 = vpop.f32.mrf.mxu0
        %v1785 = vadd.f32 0.0, %v1784
        %v1786 = vpop.f32.mrf.mxu0
        %v1787 = vadd.f32 0.0, %v1786
        %1788 = vdwg.mxu0
        %1789 = vmatprep.subr.mxu0 0.0
        %1790 = vmatpush1.msra.mxu0 0.0
        %1791 = vmatprep.subr.mxu0 0.0
        %1792 = vmatpush1.msra.mxu0 0.0
        %1793 = vmatprep.subr.mxu0 0.0
        %1794 = vmatpush1.msra.mxu0 0.0
        %1795 = vmatprep.subr.mxu0 0.0
        %1796 = vmatpush1.msra.mxu0 0.0
        %1797 = vmatprep.subr.mxu0 0.0
        %1798 = vmatpush1.msra.mxu0 0.0
        %1799 = vmatprep.subr.mxu0 0.0
        %1800 = vmatpush1.msra.mxu0 0.0
        %1801 = vmatprep.subr.mxu0 0.0
        %1802 = vmatpush1.msra.mxu0 0.0
        %1803 = vmatprep.subr.mxu0 0.0
        %1804 = vmatpush1.msra.mxu0 0.0
        %1805 = vmatprep.subr.mxu0 0.0
        %1806 = vmatpush1.msra.mxu0 0.0
        %1807 = vmatprep.subr.mxu0 0.0
        %1808 = vmatpush1.msra.mxu0 0.0
        %1809 = vmatprep.subr.mxu0 0.0
        %1810 = vmatpush1.msra.mxu0 0.0
        %1811 = vmatprep.subr.mxu0 0.0
        %1812 = vmatpush1.msra.mxu0 0.0
        %1813 = vmatprep.subr.mxu0 0.0
        %1814 = vmatpush1.msra.mxu0 0.0
        %1815 = vmatprep.subr.mxu0 0.0
        %1816 = vmatpush1.msra.mxu0 0.0
        %1817 = vmatprep.subr.mxu0 %v1702
        %1818 = vmatpush1.msra.mxu0 %v1701
        %1819 = vmatprep.subr.mxu0 %v1698
        %1820 = vmatpush1.msra.mxu0 %v1697
        %1821 = vmatprep.subr.mxu0 0.0
        %1822 = vmatpush2.msra.mxu0 0.0
        %1823 = vmatprep.subr.mxu0 0.0
        %1824 = vmatpush2.msra.mxu0 0.0
        %1825 = vmatprep.subr.mxu0 0.0
        %1826 = vmatpush2.msra.mxu0 0.0
        %1827 = vmatprep.subr.mxu0 0.0
        %1828 = vmatpush2.msra.mxu0 0.0
        %1829 = vmatprep.subr.mxu0 0.0
        %1830 = vmatpush2.msra.mxu0 0.0
        %1831 = vmatprep.subr.mxu0 0.0
        %1832 = vmatpush2.msra.mxu0 0.0
        %1833 = vmatprep.subr.mxu0 0.0
        %1834 = vmatpush2.msra.mxu0 0.0
        %1835 = vmatprep.subr.mxu0 0.0
        %1836 = vmatpush2.msra.mxu0 0.0
        %1837 = vmatprep.subr.mxu0 0.0
        %1838 = vmatpush2.msra.mxu0 0.0
        %1839 = vmatprep.subr.mxu0 0.0
        %1840 = vmatpush2.msra.mxu0 0.0
        %1841 = vmatprep.subr.mxu0 0.0
        %1842 = vmatpush2.msra.mxu0 0.0
        %1843 = vmatprep.subr.mxu0 0.0
        %1844 = vmatpush2.msra.mxu0 0.0
        %1845 = vmatprep.subr.mxu0 0.0
        %1846 = vmatpush2.msra.mxu0 0.0
        %1847 = vmatprep.subr.mxu0 0.0
        %1848 = vmatpush2.msra.mxu0 0.0
        %1849 = vmatprep.subr.mxu0 0.0
        %1850 = vmatpush2.msra.mxu0 0.0
        %1851 = vmatprep.subr.mxu0 0.0
        %1852 = vmatpush2.msra.mxu0 0.0
        %1853 = vmatprep.mubr.f32.mxu0 0.0
        %1854 = vmatmul.mubr.f32.gmra.mxu0 %v1707
        %v1855 = vpop.f32.mrf.mxu0
        %v1856 = vadd.f32 0.0, %v1855
        %v1857 = vpop.f32.mrf.mxu0
        %v1858 = vadd.f32 0.0, %v1857
        %1859 = vmatprep.mubr.f32.mxu0 0.0
        %1860 = vmatmul.mubr.f32.gmra.mxu0 %v1710
        %v1861 = vpop.f32.mrf.mxu0
        %v1862 = vadd.f32 0.0, %v1861
        %v1863 = vpop.f32.mrf.mxu0
        %v1864 = vadd.f32 0.0, %v1863
        %1865 = vdwg.mxu0
        %v1866 = vadd.f32 %v1630, %v1779
        %v1867 = vadd.f32 %v1631, %v1781
        %v1868 = vadd.f32 %v1632, %v1856
        %v1869 = vadd.f32 %v1633, %v1858
        %v1870 = vadd.f32 %v1634, %v1785
        %v1871 = vadd.f32 %v1635, %v1787
        %v1872 = vadd.f32 %v1636, %v1862
        %v1873 = vadd.f32 %v1637, %v1864
        %1874 = vrot.lane.b32.xlu0 %v274, 112
        %v1875 = vpop.permute.xlu0 %1874
        %1876 = vrot.lane.b32.xlu0 %v278, 112
        %v1877 = vpop.permute.xlu0 %1876
        %1878 = vrot.lane.b32.xlu0 %v275, 112
        %v1879 = vpop.permute.xlu0 %1878
        %1880 = vrot.lane.b32.xlu0 %v279, 112
        %v1881 = vpop.permute.xlu0 %1880
        %1882 = vrot.lane.b32.xlu0 %v276, 112
        %v1883 = vpop.permute.xlu0 %1882
        %1884 = vrot.lane.b32.xlu0 %v280, 112
        %v1885 = vpop.permute.xlu0 %1884
        %1886 = vrot.lane.b32.xlu0 %v277, 112
        %v1887 = vpop.permute.xlu0 %1886
        %1888 = vrot.lane.b32.xlu0 %v281, 112
        %v1889 = vpop.permute.xlu0 %1888
        %vm1890 = vcmp.lt.s32.totalorder %v283, 112
        %v1891 = vsel %vm1890, %v1883, %v1887
        %v1892 = vsel %vm1890, %v1885, %v1889
        %v1893 = vsel %vm1890, %v1879, %v1883
        %v1894 = vsel %vm1890, %v1881, %v1885
        %v1895 = vsel %vm1890, %v1875, %v1879
        %v1896 = vsel %vm1890, %v1877, %v1881
        %v1897 = vsel %vm1890, %v1887, %v1875
        %v1898 = vsel %vm1890, %v1889, %v1877
        %vm1899 = vmand %vm1675, %vm403
        %vm1900 = vmand %vm1676, %vm404
        %vm1901 = vmand %vm1677, %vm405
        %vm1902 = vmand %vm1678, %vm406
        %vm1903 = vmand %vm1899, %vm411
        %vm1904 = vmand %vm1900, %vm412
        %vm1905 = vmand %vm1901, %vm413
        %vm1906 = vmand %vm1902, %vm414
        %v1907 = vsel %vm1903, 1, 0
        %v1908 = vsel %vm1904, 1, 0
        %v1909 = vsel %vm1905, 1, 0
        %v1910 = vsel %vm1906, 1, 0
        %v1911 = vcvt.s32.f32 %v1907
        %v1912 = vcvt.s32.f32 %v1908
        %v1913 = vcvt.s32.f32 %v1909
        %v1914 = vcvt.s32.f32 %v1910
        %v1915 = vmul.f32 %v1895, %v1911
        %v1916 = vmul.f32 %v1893, %v1912
        %v1917 = vmul.f32 %v1891, %v1913
        %v1918 = vmul.f32 %v1897, %v1914
        %v1919 = vmul.f32 %v1896, %v1911
        %v1920 = vmul.f32 %v1894, %v1912
        %v1921 = vmul.f32 %v1892, %v1913
        %v1922 = vmul.f32 %v1898, %v1914
        %s1923 = scalar_lea.vmem [#allocation5], 112
        %v1924 = vld [vmem:[%s1923] sm:$0xff]
        %v1925 = vld [vmem:[%s1923 + $0x8] sm:$0xff]
        %v1927 = vsel %vm438, %v1924, 0
        %v1930 = vsel %vm438, %v1925, 0
        %1932 = vmatprep.subr.mxu0 0.0
        %1933 = vmatpush1.msra.mxu0 0.0
        %1934 = vmatprep.subr.mxu0 0.0
        %1935 = vmatpush1.msra.mxu0 0.0
        %1936 = vmatprep.subr.mxu0 0.0
        %1937 = vmatpush1.msra.mxu0 0.0
        %1938 = vmatprep.subr.mxu0 0.0
        %1939 = vmatpush1.msra.mxu0 0.0
        %1940 = vmatprep.subr.mxu0 0.0
        %1941 = vmatpush1.msra.mxu0 0.0
        %1942 = vmatprep.subr.mxu0 0.0
        %1943 = vmatpush1.msra.mxu0 0.0
        %1944 = vmatprep.subr.mxu0 0.0
        %1945 = vmatpush1.msra.mxu0 0.0
        %1946 = vmatprep.subr.mxu0 0.0
        %1947 = vmatpush1.msra.mxu0 0.0
        %1948 = vmatprep.subr.mxu0 0.0
        %1949 = vmatpush1.msra.mxu0 0.0
        %1950 = vmatprep.subr.mxu0 0.0
        %1951 = vmatpush1.msra.mxu0 0.0
        %1952 = vmatprep.subr.mxu0 0.0
        %1953 = vmatpush1.msra.mxu0 0.0
        %1954 = vmatprep.subr.mxu0 0.0
        %1955 = vmatpush1.msra.mxu0 0.0
        %1956 = vmatprep.subr.mxu0 0.0
        %1957 = vmatpush1.msra.mxu0 0.0
        %1958 = vmatprep.subr.mxu0 0.0
        %1959 = vmatpush1.msra.mxu0 0.0
        %1960 = vmatprep.subr.mxu0 %v1920
        %1961 = vmatpush1.msra.mxu0 %v1919
        %1962 = vmatprep.subr.mxu0 %v1916
        %1963 = vmatpush1.msra.mxu0 %v1915
        %1964 = vmatprep.subr.mxu0 0.0
        %1965 = vmatpush2.msra.mxu0 0.0
        %1966 = vmatprep.subr.mxu0 0.0
        %1967 = vmatpush2.msra.mxu0 0.0
        %1968 = vmatprep.subr.mxu0 0.0
        %1969 = vmatpush2.msra.mxu0 0.0
        %1970 = vmatprep.subr.mxu0 0.0
        %1971 = vmatpush2.msra.mxu0 0.0
        %1972 = vmatprep.subr.mxu0 0.0
        %1973 = vmatpush2.msra.mxu0 0.0
        %1974 = vmatprep.subr.mxu0 0.0
        %1975 = vmatpush2.msra.mxu0 0.0
        %1976 = vmatprep.subr.mxu0 0.0
        %1977 = vmatpush2.msra.mxu0 0.0
        %1978 = vmatprep.subr.mxu0 0.0
        %1979 = vmatpush2.msra.mxu0 0.0
        %1980 = vmatprep.subr.mxu0 0.0
        %1981 = vmatpush2.msra.mxu0 0.0
        %1982 = vmatprep.subr.mxu0 0.0
        %1983 = vmatpush2.msra.mxu0 0.0
        %1984 = vmatprep.subr.mxu0 0.0
        %1985 = vmatpush2.msra.mxu0 0.0
        %1986 = vmatprep.subr.mxu0 0.0
        %1987 = vmatpush2.msra.mxu0 0.0
        %1988 = vmatprep.subr.mxu0 0.0
        %1989 = vmatpush2.msra.mxu0 0.0
        %1990 = vmatprep.subr.mxu0 0.0
        %1991 = vmatpush2.msra.mxu0 0.0
        %1992 = vmatprep.subr.mxu0 0.0
        %1993 = vmatpush2.msra.mxu0 0.0
        %1994 = vmatprep.subr.mxu0 0.0
        %1995 = vmatpush2.msra.mxu0 0.0
        %1996 = vmatprep.mubr.f32.mxu0 0.0
        %1997 = vmatmul.mubr.f32.gmra.mxu0 %v1927
        %v1998 = vpop.f32.mrf.mxu0
        %v1999 = vadd.f32 0.0, %v1998
        %v2000 = vpop.f32.mrf.mxu0
        %v2001 = vadd.f32 0.0, %v2000
        %2002 = vmatprep.mubr.f32.mxu0 0.0
        %2003 = vmatmul.mubr.f32.gmra.mxu0 %v1930
        %v2004 = vpop.f32.mrf.mxu0
        %v2005 = vadd.f32 0.0, %v2004
        %v2006 = vpop.f32.mrf.mxu0
        %v2007 = vadd.f32 0.0, %v2006
        %2008 = vdwg.mxu0
        %2009 = vmatprep.subr.mxu0 0.0
        %2010 = vmatpush1.msra.mxu0 0.0
        %2011 = vmatprep.subr.mxu0 0.0
        %2012 = vmatpush1.msra.mxu0 0.0
        %2013 = vmatprep.subr.mxu0 0.0
        %2014 = vmatpush1.msra.mxu0 0.0
        %2015 = vmatprep.subr.mxu0 0.0
        %2016 = vmatpush1.msra.mxu0 0.0
        %2017 = vmatprep.subr.mxu0 0.0
        %2018 = vmatpush1.msra.mxu0 0.0
        %2019 = vmatprep.subr.mxu0 0.0
        %2020 = vmatpush1.msra.mxu0 0.0
        %2021 = vmatprep.subr.mxu0 0.0
        %2022 = vmatpush1.msra.mxu0 0.0
        %2023 = vmatprep.subr.mxu0 0.0
        %2024 = vmatpush1.msra.mxu0 0.0
        %2025 = vmatprep.subr.mxu0 0.0
        %2026 = vmatpush1.msra.mxu0 0.0
        %2027 = vmatprep.subr.mxu0 0.0
        %2028 = vmatpush1.msra.mxu0 0.0
        %2029 = vmatprep.subr.mxu0 0.0
        %2030 = vmatpush1.msra.mxu0 0.0
        %2031 = vmatprep.subr.mxu0 0.0
        %2032 = vmatpush1.msra.mxu0 0.0
        %2033 = vmatprep.subr.mxu0 0.0
        %2034 = vmatpush1.msra.mxu0 0.0
        %2035 = vmatprep.subr.mxu0 0.0
        %2036 = vmatpush1.msra.mxu0 0.0
        %2037 = vmatprep.subr.mxu0 %v1922
        %2038 = vmatpush1.msra.mxu0 %v1921
        %2039 = vmatprep.subr.mxu0 %v1918
        %2040 = vmatpush1.msra.mxu0 %v1917
        %2041 = vmatprep.subr.mxu0 0.0
        %2042 = vmatpush2.msra.mxu0 0.0
        %2043 = vmatprep.subr.mxu0 0.0
        %2044 = vmatpush2.msra.mxu0 0.0
        %2045 = vmatprep.subr.mxu0 0.0
        %2046 = vmatpush2.msra.mxu0 0.0
        %2047 = vmatprep.subr.mxu0 0.0
        %2048 = vmatpush2.msra.mxu0 0.0
        %2049 = vmatprep.subr.mxu0 0.0
        %2050 = vmatpush2.msra.mxu0 0.0
        %2051 = vmatprep.subr.mxu0 0.0
        %2052 = vmatpush2.msra.mxu0 0.0
        %2053 = vmatprep.subr.mxu0 0.0
        %2054 = vmatpush2.msra.mxu0 0.0
        %2055 = vmatprep.subr.mxu0 0.0
        %2056 = vmatpush2.msra.mxu0 0.0
        %2057 = vmatprep.subr.mxu0 0.0
        %2058 = vmatpush2.msra.mxu0 0.0
        %2059 = vmatprep.subr.mxu0 0.0
        %2060 = vmatpush2.msra.mxu0 0.0
        %2061 = vmatprep.subr.mxu0 0.0
        %2062 = vmatpush2.msra.mxu0 0.0
        %2063 = vmatprep.subr.mxu0 0.0
        %2064 = vmatpush2.msra.mxu0 0.0
        %2065 = vmatprep.subr.mxu0 0.0
        %2066 = vmatpush2.msra.mxu0 0.0
        %2067 = vmatprep.subr.mxu0 0.0
        %2068 = vmatpush2.msra.mxu0 0.0
        %2069 = vmatprep.subr.mxu0 0.0
        %2070 = vmatpush2.msra.mxu0 0.0
        %2071 = vmatprep.subr.mxu0 0.0
        %2072 = vmatpush2.msra.mxu0 0.0
        %2073 = vmatprep.mubr.f32.mxu0 0.0
        %2074 = vmatmul.mubr.f32.gmra.mxu0 %v1927
        %v2075 = vpop.f32.mrf.mxu0
        %v2076 = vadd.f32 0.0, %v2075
        %v2077 = vpop.f32.mrf.mxu0
        %v2078 = vadd.f32 0.0, %v2077
        %2079 = vmatprep.mubr.f32.mxu0 0.0
        %2080 = vmatmul.mubr.f32.gmra.mxu0 %v1930
        %v2081 = vpop.f32.mrf.mxu0
        %v2082 = vadd.f32 0.0, %v2081
        %v2083 = vpop.f32.mrf.mxu0
        %v2084 = vadd.f32 0.0, %v2083
        %2085 = vdwg.mxu0
        %v2086 = vadd.f32 %v1866, %v1999
        %v2087 = vadd.f32 %v1867, %v2001
        %v2088 = vadd.f32 %v1868, %v2076
        %v2089 = vadd.f32 %v1869, %v2078
        %v2090 = vadd.f32 %v1870, %v2005
        %v2091 = vadd.f32 %v1871, %v2007
        %v2092 = vadd.f32 %v1872, %v2082
        %v2093 = vadd.f32 %v1873, %v2084
        %2094 = vrot.lane.b32.xlu0 %v274, 111
        %v2095 = vpop.permute.xlu0 %2094
        %2096 = vrot.lane.b32.xlu0 %v278, 111
        %v2097 = vpop.permute.xlu0 %2096
        %2098 = vrot.lane.b32.xlu0 %v275, 111
        %v2099 = vpop.permute.xlu0 %2098
        %2100 = vrot.lane.b32.xlu0 %v279, 111
        %v2101 = vpop.permute.xlu0 %2100
        %2102 = vrot.lane.b32.xlu0 %v276, 111
        %v2103 = vpop.permute.xlu0 %2102
        %2104 = vrot.lane.b32.xlu0 %v280, 111
        %v2105 = vpop.permute.xlu0 %2104
        %2106 = vrot.lane.b32.xlu0 %v277, 111
        %v2107 = vpop.permute.xlu0 %2106
        %2108 = vrot.lane.b32.xlu0 %v281, 111
        %v2109 = vpop.permute.xlu0 %2108
        %vm2110 = vcmp.lt.s32.totalorder %v283, 111
        %v2111 = vsel %vm2110, %v2103, %v2107
        %v2112 = vsel %vm2110, %v2105, %v2109
        %v2113 = vsel %vm2110, %v2099, %v2103
        %v2114 = vsel %vm2110, %v2101, %v2105
        %v2115 = vsel %vm2110, %v2095, %v2099
        %v2116 = vsel %vm2110, %v2097, %v2101
        %v2117 = vsel %vm2110, %v2107, %v2095
        %v2118 = vsel %vm2110, %v2109, %v2097
        %vm2119 = vmand %vm1675, %vm788
        %vm2120 = vmand %vm1676, %vm789
        %vm2121 = vmand %vm1677, %vm790
        %vm2122 = vmand %vm1678, %vm791
        %vm2123 = vmand %vm2119, %vm796
        %vm2124 = vmand %vm2120, %vm797
        %vm2125 = vmand %vm2121, %vm798
        %vm2126 = vmand %vm2122, %vm799
        %v2127 = vsel %vm2123, 1, 0
        %v2128 = vsel %vm2124, 1, 0
        %v2129 = vsel %vm2125, 1, 0
        %v2130 = vsel %vm2126, 1, 0
        %v2131 = vcvt.s32.f32 %v2127
        %v2132 = vcvt.s32.f32 %v2128
        %v2133 = vcvt.s32.f32 %v2129
        %v2134 = vcvt.s32.f32 %v2130
        %v2135 = vmul.f32 %v2115, %v2131
        %v2136 = vmul.f32 %v2113, %v2132
        %v2137 = vmul.f32 %v2111, %v2133
        %v2138 = vmul.f32 %v2117, %v2134
        %v2139 = vmul.f32 %v2116, %v2131
        %v2140 = vmul.f32 %v2114, %v2132
        %v2141 = vmul.f32 %v2112, %v2133
        %v2142 = vmul.f32 %v2118, %v2134
        %s2143 = scalar_lea.vmem [#allocation5], 128
        %v2144 = vld [vmem:[%s2143] sm:$0xff]
        %v2145 = vld [vmem:[%s2143 + $0x8] sm:$0xff]
        %v2147 = vsel %vm438, %v2144, 0
        %v2150 = vsel %vm438, %v2145, 0
        %2152 = vmatprep.subr.mxu0 0.0
        %2153 = vmatpush1.msra.mxu0 0.0
        %2154 = vmatprep.subr.mxu0 0.0
        %2155 = vmatpush1.msra.mxu0 0.0
        %2156 = vmatprep.subr.mxu0 0.0
        %2157 = vmatpush1.msra.mxu0 0.0
        %2158 = vmatprep.subr.mxu0 0.0
        %2159 = vmatpush1.msra.mxu0 0.0
        %2160 = vmatprep.subr.mxu0 0.0
        %2161 = vmatpush1.msra.mxu0 0.0
        %2162 = vmatprep.subr.mxu0 0.0
        %2163 = vmatpush1.msra.mxu0 0.0
        %2164 = vmatprep.subr.mxu0 0.0
        %2165 = vmatpush1.msra.mxu0 0.0
        %2166 = vmatprep.subr.mxu0 0.0
        %2167 = vmatpush1.msra.mxu0 0.0
        %2168 = vmatprep.subr.mxu0 0.0
        %2169 = vmatpush1.msra.mxu0 0.0
        %2170 = vmatprep.subr.mxu0 0.0
        %2171 = vmatpush1.msra.mxu0 0.0
        %2172 = vmatprep.subr.mxu0 0.0
        %2173 = vmatpush1.msra.mxu0 0.0
        %2174 = vmatprep.subr.mxu0 0.0
        %2175 = vmatpush1.msra.mxu0 0.0
        %2176 = vmatprep.subr.mxu0 0.0
        %2177 = vmatpush1.msra.mxu0 0.0
        %2178 = vmatprep.subr.mxu0 0.0
        %2179 = vmatpush1.msra.mxu0 0.0
        %2180 = vmatprep.subr.mxu0 %v2140
        %2181 = vmatpush1.msra.mxu0 %v2139
        %2182 = vmatprep.subr.mxu0 %v2136
        %2183 = vmatpush1.msra.mxu0 %v2135
        %2184 = vmatprep.subr.mxu0 0.0
        %2185 = vmatpush2.msra.mxu0 0.0
        %2186 = vmatprep.subr.mxu0 0.0
        %2187 = vmatpush2.msra.mxu0 0.0
        %2188 = vmatprep.subr.mxu0 0.0
        %2189 = vmatpush2.msra.mxu0 0.0
        %2190 = vmatprep.subr.mxu0 0.0
        %2191 = vmatpush2.msra.mxu0 0.0
        %2192 = vmatprep.subr.mxu0 0.0
        %2193 = vmatpush2.msra.mxu0 0.0
        %2194 = vmatprep.subr.mxu0 0.0
        %2195 = vmatpush2.msra.mxu0 0.0
        %2196 = vmatprep.subr.mxu0 0.0
        %2197 = vmatpush2.msra.mxu0 0.0
        %2198 = vmatprep.subr.mxu0 0.0
        %2199 = vmatpush2.msra.mxu0 0.0
        %2200 = vmatprep.subr.mxu0 0.0
        %2201 = vmatpush2.msra.mxu0 0.0
        %2202 = vmatprep.subr.mxu0 0.0
        %2203 = vmatpush2.msra.mxu0 0.0
        %2204 = vmatprep.subr.mxu0 0.0
        %2205 = vmatpush2.msra.mxu0 0.0
        %2206 = vmatprep.subr.mxu0 0.0
        %2207 = vmatpush2.msra.mxu0 0.0
        %2208 = vmatprep.subr.mxu0 0.0
        %2209 = vmatpush2.msra.mxu0 0.0
        %2210 = vmatprep.subr.mxu0 0.0
        %2211 = vmatpush2.msra.mxu0 0.0
        %2212 = vmatprep.subr.mxu0 0.0
        %2213 = vmatpush2.msra.mxu0 0.0
        %2214 = vmatprep.subr.mxu0 0.0
        %2215 = vmatpush2.msra.mxu0 0.0
        %2216 = vmatprep.mubr.f32.mxu0 0.0
        %2217 = vmatmul.mubr.f32.gmra.mxu0 %v2147
        %v2218 = vpop.f32.mrf.mxu0
        %v2219 = vadd.f32 0.0, %v2218
        %v2220 = vpop.f32.mrf.mxu0
        %v2221 = vadd.f32 0.0, %v2220
        %2222 = vmatprep.mubr.f32.mxu0 0.0
        %2223 = vmatmul.mubr.f32.gmra.mxu0 %v2150
        %v2224 = vpop.f32.mrf.mxu0
        %v2225 = vadd.f32 0.0, %v2224
        %v2226 = vpop.f32.mrf.mxu0
        %v2227 = vadd.f32 0.0, %v2226
        %2228 = vdwg.mxu0
        %2229 = vmatprep.subr.mxu0 0.0
        %2230 = vmatpush1.msra.mxu0 0.0
        %2231 = vmatprep.subr.mxu0 0.0
        %2232 = vmatpush1.msra.mxu0 0.0
        %2233 = vmatprep.subr.mxu0 0.0
        %2234 = vmatpush1.msra.mxu0 0.0
        %2235 = vmatprep.subr.mxu0 0.0
        %2236 = vmatpush1.msra.mxu0 0.0
        %2237 = vmatprep.subr.mxu0 0.0
        %2238 = vmatpush1.msra.mxu0 0.0
        %2239 = vmatprep.subr.mxu0 0.0
        %2240 = vmatpush1.msra.mxu0 0.0
        %2241 = vmatprep.subr.mxu0 0.0
        %2242 = vmatpush1.msra.mxu0 0.0
        %2243 = vmatprep.subr.mxu0 0.0
        %2244 = vmatpush1.msra.mxu0 0.0
        %2245 = vmatprep.subr.mxu0 0.0
        %2246 = vmatpush1.msra.mxu0 0.0
        %2247 = vmatprep.subr.mxu0 0.0
        %2248 = vmatpush1.msra.mxu0 0.0
        %2249 = vmatprep.subr.mxu0 0.0
        %2250 = vmatpush1.msra.mxu0 0.0
        %2251 = vmatprep.subr.mxu0 0.0
        %2252 = vmatpush1.msra.mxu0 0.0
        %2253 = vmatprep.subr.mxu0 0.0
        %2254 = vmatpush1.msra.mxu0 0.0
        %2255 = vmatprep.subr.mxu0 0.0
        %2256 = vmatpush1.msra.mxu0 0.0
        %2257 = vmatprep.subr.mxu0 %v2142
        %2258 = vmatpush1.msra.mxu0 %v2141
        %2259 = vmatprep.subr.mxu0 %v2138
        %2260 = vmatpush1.msra.mxu0 %v2137
        %2261 = vmatprep.subr.mxu0 0.0
        %2262 = vmatpush2.msra.mxu0 0.0
        %2263 = vmatprep.subr.mxu0 0.0
        %2264 = vmatpush2.msra.mxu0 0.0
        %2265 = vmatprep.subr.mxu0 0.0
        %2266 = vmatpush2.msra.mxu0 0.0
        %2267 = vmatprep.subr.mxu0 0.0
        %2268 = vmatpush2.msra.mxu0 0.0
        %2269 = vmatprep.subr.mxu0 0.0
        %2270 = vmatpush2.msra.mxu0 0.0
        %2271 = vmatprep.subr.mxu0 0.0
        %2272 = vmatpush2.msra.mxu0 0.0
        %2273 = vmatprep.subr.mxu0 0.0
        %2274 = vmatpush2.msra.mxu0 0.0
        %2275 = vmatprep.subr.mxu0 0.0
        %2276 = vmatpush2.msra.mxu0 0.0
        %2277 = vmatprep.subr.mxu0 0.0
        %2278 = vmatpush2.msra.mxu0 0.0
        %2279 = vmatprep.subr.mxu0 0.0
        %2280 = vmatpush2.msra.mxu0 0.0
        %2281 = vmatprep.subr.mxu0 0.0
        %2282 = vmatpush2.msra.mxu0 0.0
        %2283 = vmatprep.subr.mxu0 0.0
        %2284 = vmatpush2.msra.mxu0 0.0
        %2285 = vmatprep.subr.mxu0 0.0
        %2286 = vmatpush2.msra.mxu0 0.0
        %2287 = vmatprep.subr.mxu0 0.0
        %2288 = vmatpush2.msra.mxu0 0.0
        %2289 = vmatprep.subr.mxu0 0.0
        %2290 = vmatpush2.msra.mxu0 0.0
        %2291 = vmatprep.subr.mxu0 0.0
        %2292 = vmatpush2.msra.mxu0 0.0
        %2293 = vmatprep.mubr.f32.mxu0 0.0
        %2294 = vmatmul.mubr.f32.gmra.mxu0 %v2147
        %v2295 = vpop.f32.mrf.mxu0
        %v2296 = vadd.f32 0.0, %v2295
        %v2297 = vpop.f32.mrf.mxu0
        %v2298 = vadd.f32 0.0, %v2297
        %2299 = vmatprep.mubr.f32.mxu0 0.0
        %2300 = vmatmul.mubr.f32.gmra.mxu0 %v2150
        %v2301 = vpop.f32.mrf.mxu0
        %v2302 = vadd.f32 0.0, %v2301
        %v2303 = vpop.f32.mrf.mxu0
        %v2304 = vadd.f32 0.0, %v2303
        %2305 = vdwg.mxu0
        %v2306 = vadd.f32 %v2086, %v2219
        %v2307 = vadd.f32 %v2087, %v2221
        %v2308 = vadd.f32 %v2088, %v2296
        %v2309 = vadd.f32 %v2089, %v2298
        %v2310 = vadd.f32 %v2090, %v2225
        %v2311 = vadd.f32 %v2091, %v2227
        %v2312 = vadd.f32 %v2092, %v2302
        %v2313 = vadd.f32 %v2093, %v2304
        %v2314 = vld [vmem:[%s2] sm:$0xff]
        %v2315 = vld [vmem:[%s2 + $0x8] sm:$0xff]
        %2317 = vset.pattern.permute.xlu0 0
        %2318 = vperm.xlu0 %2317, %v2314
        %v2319 = vpop.permute.xlu0 %2318
        %2322 = vset.pattern.permute.xlu0 0
        %2323 = vperm.xlu0 %2322, %v2315
        %v2324 = vpop.permute.xlu0 %2323
        %v2326 = vadd.f32 %v2306, %v2319
        %v2327 = vadd.f32 %v2307, %v2319
        %v2328 = vadd.f32 %v2308, %v2319
        %v2329 = vadd.f32 %v2309, %v2319
        %v2330 = vadd.f32 %v2310, %v2324
        %v2331 = vadd.f32 %v2311, %v2324
        %v2332 = vadd.f32 %v2312, %v2324
        %v2333 = vadd.f32 %v2313, %v2324
        %v2334 = vmax.f32 %v2326, 0.0
        %v2335 = vmax.f32 %v2327, 0.0
        %v2336 = vmax.f32 %v2328, 0.0
        %v2337 = vmax.f32 %v2329, 0.0
        %v2338 = vmax.f32 %v2330, 0.0
        %v2339 = vmax.f32 %v2331, 0.0
        %v2340 = vmax.f32 %v2332, 0.0
        %v2341 = vmax.f32 %v2333, 0.0
        %2342 = vrot.lane.b32.xlu0 %v2334, 17
        %v2343 = vpop.permute.xlu0 %2342
        %2344 = vrot.lane.b32.xlu0 %v2338, 17
        %v2345 = vpop.permute.xlu0 %2344
        %2346 = vrot.lane.b32.xlu0 %v2335, 17
        %v2347 = vpop.permute.xlu0 %2346
        %2348 = vrot.lane.b32.xlu0 %v2339, 17
        %v2349 = vpop.permute.xlu0 %2348
        %2350 = vrot.lane.b32.xlu0 %v2336, 17
        %v2351 = vpop.permute.xlu0 %2350
        %2352 = vrot.lane.b32.xlu0 %v2340, 17
        %v2353 = vpop.permute.xlu0 %2352
        %2354 = vrot.lane.b32.xlu0 %v2337, 17
        %v2355 = vpop.permute.xlu0 %2354
        %2356 = vrot.lane.b32.xlu0 %v2341, 17
        %v2357 = vpop.permute.xlu0 %2356
        %v2358 = vsel %vm315, %v2351, %v2355
        %v2359 = vsel %vm315, %v2353, %v2357
        %v2360 = vsel %vm315, %v2347, %v2351
        %v2361 = vsel %vm315, %v2349, %v2353
        %v2362 = vsel %vm315, %v2343, %v2347
        %v2363 = vsel %vm315, %v2345, %v2349
        %v2364 = vsel %vm315, %v2355, %v2343
        %v2365 = vsel %vm315, %v2357, %v2345
        %v2366 = vmul.f32 %v2364, %v364
        %v2367 = vmul.f32 %v2362, %v365
        %v2368 = vmul.f32 %v2360, %v366
        %v2369 = vmul.f32 %v2358, %v367
        %v2370 = vmul.f32 %v2365, %v364
        %v2371 = vmul.f32 %v2363, %v365
        %v2372 = vmul.f32 %v2361, %v366
        %v2373 = vmul.f32 %v2359, %v367
        %v2374 = vld [vmem:[#allocation7] sm:$0xff]
        %v2375 = vld [vmem:[#allocation7 + $0x8] sm:$0xff]
        %2376 = vrot.lane.b32.xlu0 %v2334, 16
        %v2377 = vpop.permute.xlu0 %2376
        %2378 = vrot.lane.b32.xlu0 %v2338, 16
        %v2379 = vpop.permute.xlu0 %2378
        %2380 = vrot.lane.b32.xlu0 %v2335, 16
        %v2381 = vpop.permute.xlu0 %2380
        %2382 = vrot.lane.b32.xlu0 %v2339, 16
        %v2383 = vpop.permute.xlu0 %2382
        %2384 = vrot.lane.b32.xlu0 %v2336, 16
        %v2385 = vpop.permute.xlu0 %2384
        %2386 = vrot.lane.b32.xlu0 %v2340, 16
        %v2387 = vpop.permute.xlu0 %2386
        %2388 = vrot.lane.b32.xlu0 %v2337, 16
        %v2389 = vpop.permute.xlu0 %2388
        %2390 = vrot.lane.b32.xlu0 %v2341, 16
        %v2391 = vpop.permute.xlu0 %2390
        %v2392 = vsel %vm394, %v2385, %v2389
        %v2393 = vsel %vm394, %v2387, %v2391
        %v2394 = vsel %vm394, %v2381, %v2385
        %v2395 = vsel %vm394, %v2383, %v2387
        %v2396 = vsel %vm394, %v2377, %v2381
        %v2397 = vsel %vm394, %v2379, %v2383
        %v2398 = vsel %vm394, %v2389, %v2377
        %v2399 = vsel %vm394, %v2391, %v2379
        %v2400 = vmul.f32 %v2398, %v423
        %v2401 = vmul.f32 %v2396, %v424
        %v2402 = vmul.f32 %v2394, %v425
        %v2403 = vmul.f32 %v2392, %v426
        %v2404 = vmul.f32 %v2399, %v423
        %v2405 = vmul.f32 %v2397, %v424
        %v2406 = vmul.f32 %v2395, %v425
        %v2407 = vmul.f32 %v2393, %v426
        %s2408 = scalar_lea.vmem [#allocation7], 16
        %v2409 = vld [vmem:[%s2408] sm:$0xff]
        %v2410 = vld [vmem:[%s2408 + $0x8] sm:$0xff]
        %v2412 = vsel %vm438, %v2409, 0
        %v2415 = vsel %vm438, %v2410, 0
        %2417 = vmatprep.subr.mxu0 0.0
        %2418 = vmatpush1.msra.mxu0 0.0
        %2419 = vmatprep.subr.mxu0 0.0
        %2420 = vmatpush1.msra.mxu0 0.0
        %2421 = vmatprep.subr.mxu0 0.0
        %2422 = vmatpush1.msra.mxu0 0.0
        %2423 = vmatprep.subr.mxu0 0.0
        %2424 = vmatpush1.msra.mxu0 0.0
        %2425 = vmatprep.subr.mxu0 0.0
        %2426 = vmatpush1.msra.mxu0 0.0
        %2427 = vmatprep.subr.mxu0 0.0
        %2428 = vmatpush1.msra.mxu0 0.0
        %2429 = vmatprep.subr.mxu0 0.0
        %2430 = vmatpush1.msra.mxu0 0.0
        %2431 = vmatprep.subr.mxu0 0.0
        %2432 = vmatpush1.msra.mxu0 0.0
        %2433 = vmatprep.subr.mxu0 0.0
        %2434 = vmatpush1.msra.mxu0 0.0
        %2435 = vmatprep.subr.mxu0 0.0
        %2436 = vmatpush1.msra.mxu0 0.0
        %2437 = vmatprep.subr.mxu0 0.0
        %2438 = vmatpush1.msra.mxu0 0.0
        %2439 = vmatprep.subr.mxu0 0.0
        %2440 = vmatpush1.msra.mxu0 0.0
        %2441 = vmatprep.subr.mxu0 0.0
        %2442 = vmatpush1.msra.mxu0 0.0
        %2443 = vmatprep.subr.mxu0 0.0
        %2444 = vmatpush1.msra.mxu0 0.0
        %2445 = vmatprep.subr.mxu0 %v2405
        %2446 = vmatpush1.msra.mxu0 %v2404
        %2447 = vmatprep.subr.mxu0 %v2401
        %2448 = vmatpush1.msra.mxu0 %v2400
        %2449 = vmatprep.subr.mxu0 0.0
        %2450 = vmatpush2.msra.mxu0 0.0
        %2451 = vmatprep.subr.mxu0 0.0
        %2452 = vmatpush2.msra.mxu0 0.0
        %2453 = vmatprep.subr.mxu0 0.0
        %2454 = vmatpush2.msra.mxu0 0.0
        %2455 = vmatprep.subr.mxu0 0.0
        %2456 = vmatpush2.msra.mxu0 0.0
        %2457 = vmatprep.subr.mxu0 0.0
        %2458 = vmatpush2.msra.mxu0 0.0
        %2459 = vmatprep.subr.mxu0 0.0
        %2460 = vmatpush2.msra.mxu0 0.0
        %2461 = vmatprep.subr.mxu0 0.0
        %2462 = vmatpush2.msra.mxu0 0.0
        %2463 = vmatprep.subr.mxu0 0.0
        %2464 = vmatpush2.msra.mxu0 0.0
        %2465 = vmatprep.subr.mxu0 0.0
        %2466 = vmatpush2.msra.mxu0 0.0
        %2467 = vmatprep.subr.mxu0 0.0
        %2468 = vmatpush2.msra.mxu0 0.0
        %2469 = vmatprep.subr.mxu0 0.0
        %2470 = vmatpush2.msra.mxu0 0.0
        %2471 = vmatprep.subr.mxu0 0.0
        %2472 = vmatpush2.msra.mxu0 0.0
        %2473 = vmatprep.subr.mxu0 0.0
        %2474 = vmatpush2.msra.mxu0 0.0
        %2475 = vmatprep.subr.mxu0 0.0
        %2476 = vmatpush2.msra.mxu0 0.0
        %2477 = vmatprep.subr.mxu0 0.0
        %2478 = vmatpush2.msra.mxu0 0.0
        %2479 = vmatprep.subr.mxu0 0.0
        %2480 = vmatpush2.msra.mxu0 0.0
        %2481 = vmatprep.mubr.f32.mxu0 0.0
        %2482 = vmatmul.mubr.f32.gmra.mxu0 %v2412
        %v2483 = vpop.f32.mrf.mxu0
        %v2484 = vadd.f32 0.0, %v2483
        %v2485 = vpop.f32.mrf.mxu0
        %v2486 = vadd.f32 0.0, %v2485
        %2487 = vmatprep.mubr.f32.mxu0 0.0
        %2488 = vmatmul.mubr.f32.gmra.mxu0 %v2415
        %v2489 = vpop.f32.mrf.mxu0
        %v2490 = vadd.f32 0.0, %v2489
        %v2491 = vpop.f32.mrf.mxu0
        %v2492 = vadd.f32 0.0, %v2491
        %2493 = vdwg.mxu0
        %2494 = vmatprep.subr.mxu0 0.0
        %2495 = vmatpush1.msra.mxu0 0.0
        %2496 = vmatprep.subr.mxu0 0.0
        %2497 = vmatpush1.msra.mxu0 0.0
        %2498 = vmatprep.subr.mxu0 0.0
        %2499 = vmatpush1.msra.mxu0 0.0
        %2500 = vmatprep.subr.mxu0 0.0
        %2501 = vmatpush1.msra.mxu0 0.0
        %2502 = vmatprep.subr.mxu0 0.0
        %2503 = vmatpush1.msra.mxu0 0.0
        %2504 = vmatprep.subr.mxu0 0.0
        %2505 = vmatpush1.msra.mxu0 0.0
        %2506 = vmatprep.subr.mxu0 0.0
        %2507 = vmatpush1.msra.mxu0 0.0
        %2508 = vmatprep.subr.mxu0 0.0
        %2509 = vmatpush1.msra.mxu0 0.0
        %2510 = vmatprep.subr.mxu0 0.0
        %2511 = vmatpush1.msra.mxu0 0.0
        %2512 = vmatprep.subr.mxu0 0.0
        %2513 = vmatpush1.msra.mxu0 0.0
        %2514 = vmatprep.subr.mxu0 0.0
        %2515 = vmatpush1.msra.mxu0 0.0
        %2516 = vmatprep.subr.mxu0 0.0
        %2517 = vmatpush1.msra.mxu0 0.0
        %2518 = vmatprep.subr.mxu0 0.0
        %2519 = vmatpush1.msra.mxu0 0.0
        %2520 = vmatprep.subr.mxu0 0.0
        %2521 = vmatpush1.msra.mxu0 0.0
        %2522 = vmatprep.subr.mxu0 %v2407
        %2523 = vmatpush1.msra.mxu0 %v2406
        %2524 = vmatprep.subr.mxu0 %v2403
        %2525 = vmatpush1.msra.mxu0 %v2402
        %2526 = vmatprep.subr.mxu0 0.0
        %2527 = vmatpush2.msra.mxu0 0.0
        %2528 = vmatprep.subr.mxu0 0.0
        %2529 = vmatpush2.msra.mxu0 0.0
        %2530 = vmatprep.subr.mxu0 0.0
        %2531 = vmatpush2.msra.mxu0 0.0
        %2532 = vmatprep.subr.mxu0 0.0
        %2533 = vmatpush2.msra.mxu0 0.0
        %2534 = vmatprep.subr.mxu0 0.0
        %2535 = vmatpush2.msra.mxu0 0.0
        %2536 = vmatprep.subr.mxu0 0.0
        %2537 = vmatpush2.msra.mxu0 0.0
        %2538 = vmatprep.subr.mxu0 0.0
        %2539 = vmatpush2.msra.mxu0 0.0
        %2540 = vmatprep.subr.mxu0 0.0
        %2541 = vmatpush2.msra.mxu0 0.0
        %2542 = vmatprep.subr.mxu0 0.0
        %2543 = vmatpush2.msra.mxu0 0.0
        %2544 = vmatprep.subr.mxu0 0.0
        %2545 = vmatpush2.msra.mxu0 0.0
        %2546 = vmatprep.subr.mxu0 0.0
        %2547 = vmatpush2.msra.mxu0 0.0
        %2548 = vmatprep.subr.mxu0 0.0
        %2549 = vmatpush2.msra.mxu0 0.0
        %2550 = vmatprep.subr.mxu0 0.0
        %2551 = vmatpush2.msra.mxu0 0.0
        %2552 = vmatprep.subr.mxu0 0.0
        %2553 = vmatpush2.msra.mxu0 0.0
        %2554 = vmatprep.subr.mxu0 0.0
        %2555 = vmatpush2.msra.mxu0 0.0
        %2556 = vmatprep.subr.mxu0 0.0
        %2557 = vmatpush2.msra.mxu0 0.0
        %2558 = vmatprep.mubr.f32.mxu0 0.0
        %2559 = vmatmul.mubr.f32.gmra.mxu0 %v2412
        %v2560 = vpop.f32.mrf.mxu0
        %v2561 = vadd.f32 0.0, %v2560
        %v2562 = vpop.f32.mrf.mxu0
        %v2563 = vadd.f32 0.0, %v2562
        %2564 = vmatprep.mubr.f32.mxu0 0.0
        %2565 = vmatmul.mubr.f32.gmra.mxu0 %v2415
        %v2566 = vpop.f32.mrf.mxu0
        %v2567 = vadd.f32 0.0, %v2566
        %v2568 = vpop.f32.mrf.mxu0
        %v2569 = vadd.f32 0.0, %v2568
        %2570 = vdwg.mxu0
        %v2572 = vsel %vm438, %v2374, 0
        %v2575 = vsel %vm438, %v2375, 0
        %2577 = vmatprep.subr.mxu0 0.0
        %2578 = vmatpush1.msra.mxu0 0.0
        %2579 = vmatprep.subr.mxu0 0.0
        %2580 = vmatpush1.msra.mxu0 0.0
        %2581 = vmatprep.subr.mxu0 0.0
        %2582 = vmatpush1.msra.mxu0 0.0
        %2583 = vmatprep.subr.mxu0 0.0
        %2584 = vmatpush1.msra.mxu0 0.0
        %2585 = vmatprep.subr.mxu0 0.0
        %2586 = vmatpush1.msra.mxu0 0.0
        %2587 = vmatprep.subr.mxu0 0.0
        %2588 = vmatpush1.msra.mxu0 0.0
        %2589 = vmatprep.subr.mxu0 0.0
        %2590 = vmatpush1.msra.mxu0 0.0
        %2591 = vmatprep.subr.mxu0 0.0
        %2592 = vmatpush1.msra.mxu0 0.0
        %2593 = vmatprep.subr.mxu0 0.0
        %2594 = vmatpush1.msra.mxu0 0.0
        %2595 = vmatprep.subr.mxu0 0.0
        %2596 = vmatpush1.msra.mxu0 0.0
        %2597 = vmatprep.subr.mxu0 0.0
        %2598 = vmatpush1.msra.mxu0 0.0
        %2599 = vmatprep.subr.mxu0 0.0
        %2600 = vmatpush1.msra.mxu0 0.0
        %2601 = vmatprep.subr.mxu0 0.0
        %2602 = vmatpush1.msra.mxu0 0.0
        %2603 = vmatprep.subr.mxu0 0.0
        %2604 = vmatpush1.msra.mxu0 0.0
        %2605 = vmatprep.subr.mxu0 %v2371
        %2606 = vmatpush1.msra.mxu0 %v2370
        %2607 = vmatprep.subr.mxu0 %v2367
        %2608 = vmatpush1.msra.mxu0 %v2366
        %2609 = vmatprep.subr.mxu0 0.0
        %2610 = vmatpush2.msra.mxu0 0.0
        %2611 = vmatprep.subr.mxu0 0.0
        %2612 = vmatpush2.msra.mxu0 0.0
        %2613 = vmatprep.subr.mxu0 0.0
        %2614 = vmatpush2.msra.mxu0 0.0
        %2615 = vmatprep.subr.mxu0 0.0
        %2616 = vmatpush2.msra.mxu0 0.0
        %2617 = vmatprep.subr.mxu0 0.0
        %2618 = vmatpush2.msra.mxu0 0.0
        %2619 = vmatprep.subr.mxu0 0.0
        %2620 = vmatpush2.msra.mxu0 0.0
        %2621 = vmatprep.subr.mxu0 0.0
        %2622 = vmatpush2.msra.mxu0 0.0
        %2623 = vmatprep.subr.mxu0 0.0
        %2624 = vmatpush2.msra.mxu0 0.0
        %2625 = vmatprep.subr.mxu0 0.0
        %2626 = vmatpush2.msra.mxu0 0.0
        %2627 = vmatprep.subr.mxu0 0.0
        %2628 = vmatpush2.msra.mxu0 0.0
        %2629 = vmatprep.subr.mxu0 0.0
        %2630 = vmatpush2.msra.mxu0 0.0
        %2631 = vmatprep.subr.mxu0 0.0
        %2632 = vmatpush2.msra.mxu0 0.0
        %2633 = vmatprep.subr.mxu0 0.0
        %2634 = vmatpush2.msra.mxu0 0.0
        %2635 = vmatprep.subr.mxu0 0.0
        %2636 = vmatpush2.msra.mxu0 0.0
        %2637 = vmatprep.subr.mxu0 0.0
        %2638 = vmatpush2.msra.mxu0 0.0
        %2639 = vmatprep.subr.mxu0 0.0
        %2640 = vmatpush2.msra.mxu0 0.0
        %2641 = vmatprep.mubr.f32.mxu0 0.0
        %2642 = vmatmul.mubr.f32.gmra.mxu0 %v2572
        %v2643 = vpop.f32.mrf.mxu0
        %v2644 = vadd.f32 %v2484, %v2643
        %v2645 = vpop.f32.mrf.mxu0
        %v2646 = vadd.f32 %v2486, %v2645
        %2647 = vmatprep.mubr.f32.mxu0 0.0
        %2648 = vmatmul.mubr.f32.gmra.mxu0 %v2575
        %v2649 = vpop.f32.mrf.mxu0
        %v2650 = vadd.f32 %v2490, %v2649
        %v2651 = vpop.f32.mrf.mxu0
        %v2652 = vadd.f32 %v2492, %v2651
        %2653 = vdwg.mxu0
        %2654 = vmatprep.subr.mxu0 0.0
        %2655 = vmatpush1.msra.mxu0 0.0
        %2656 = vmatprep.subr.mxu0 0.0
        %2657 = vmatpush1.msra.mxu0 0.0
        %2658 = vmatprep.subr.mxu0 0.0
        %2659 = vmatpush1.msra.mxu0 0.0
        %2660 = vmatprep.subr.mxu0 0.0
        %2661 = vmatpush1.msra.mxu0 0.0
        %2662 = vmatprep.subr.mxu0 0.0
        %2663 = vmatpush1.msra.mxu0 0.0
        %2664 = vmatprep.subr.mxu0 0.0
        %2665 = vmatpush1.msra.mxu0 0.0
        %2666 = vmatprep.subr.mxu0 0.0
        %2667 = vmatpush1.msra.mxu0 0.0
        %2668 = vmatprep.subr.mxu0 0.0
        %2669 = vmatpush1.msra.mxu0 0.0
        %2670 = vmatprep.subr.mxu0 0.0
        %2671 = vmatpush1.msra.mxu0 0.0
        %2672 = vmatprep.subr.mxu0 0.0
        %2673 = vmatpush1.msra.mxu0 0.0
        %2674 = vmatprep.subr.mxu0 0.0
        %2675 = vmatpush1.msra.mxu0 0.0
        %2676 = vmatprep.subr.mxu0 0.0
        %2677 = vmatpush1.msra.mxu0 0.0
        %2678 = vmatprep.subr.mxu0 0.0
        %2679 = vmatpush1.msra.mxu0 0.0
        %2680 = vmatprep.subr.mxu0 0.0
        %2681 = vmatpush1.msra.mxu0 0.0
        %2682 = vmatprep.subr.mxu0 %v2373
        %2683 = vmatpush1.msra.mxu0 %v2372
        %2684 = vmatprep.subr.mxu0 %v2369
        %2685 = vmatpush1.msra.mxu0 %v2368
        %2686 = vmatprep.subr.mxu0 0.0
        %2687 = vmatpush2.msra.mxu0 0.0
        %2688 = vmatprep.subr.mxu0 0.0
        %2689 = vmatpush2.msra.mxu0 0.0
        %2690 = vmatprep.subr.mxu0 0.0
        %2691 = vmatpush2.msra.mxu0 0.0
        %2692 = vmatprep.subr.mxu0 0.0
        %2693 = vmatpush2.msra.mxu0 0.0
        %2694 = vmatprep.subr.mxu0 0.0
        %2695 = vmatpush2.msra.mxu0 0.0
        %2696 = vmatprep.subr.mxu0 0.0
        %2697 = vmatpush2.msra.mxu0 0.0
        %2698 = vmatprep.subr.mxu0 0.0
        %2699 = vmatpush2.msra.mxu0 0.0
        %2700 = vmatprep.subr.mxu0 0.0
        %2701 = vmatpush2.msra.mxu0 0.0
        %2702 = vmatprep.subr.mxu0 0.0
        %2703 = vmatpush2.msra.mxu0 0.0
        %2704 = vmatprep.subr.mxu0 0.0
        %2705 = vmatpush2.msra.mxu0 0.0
        %2706 = vmatprep.subr.mxu0 0.0
        %2707 = vmatpush2.msra.mxu0 0.0
        %2708 = vmatprep.subr.mxu0 0.0
        %2709 = vmatpush2.msra.mxu0 0.0
        %2710 = vmatprep.subr.mxu0 0.0
        %2711 = vmatpush2.msra.mxu0 0.0
        %2712 = vmatprep.subr.mxu0 0.0
        %2713 = vmatpush2.msra.mxu0 0.0
        %2714 = vmatprep.subr.mxu0 0.0
        %2715 = vmatpush2.msra.mxu0 0.0
        %2716 = vmatprep.subr.mxu0 0.0
        %2717 = vmatpush2.msra.mxu0 0.0
        %2718 = vmatprep.mubr.f32.mxu0 0.0
        %2719 = vmatmul.mubr.f32.gmra.mxu0 %v2572
        %v2720 = vpop.f32.mrf.mxu0
        %v2721 = vadd.f32 %v2561, %v2720
        %v2722 = vpop.f32.mrf.mxu0
        %v2723 = vadd.f32 %v2563, %v2722
        %2724 = vmatprep.mubr.f32.mxu0 0.0
        %2725 = vmatmul.mubr.f32.gmra.mxu0 %v2575
        %v2726 = vpop.f32.mrf.mxu0
        %v2727 = vadd.f32 %v2567, %v2726
        %v2728 = vpop.f32.mrf.mxu0
        %v2729 = vadd.f32 %v2569, %v2728
        %2730 = vdwg.mxu0
        %2731 = vrot.lane.b32.xlu0 %v2334, 15
        %v2732 = vpop.permute.xlu0 %2731
        %2733 = vrot.lane.b32.xlu0 %v2338, 15
        %v2734 = vpop.permute.xlu0 %2733
        %2735 = vrot.lane.b32.xlu0 %v2335, 15
        %v2736 = vpop.permute.xlu0 %2735
        %2737 = vrot.lane.b32.xlu0 %v2339, 15
        %v2738 = vpop.permute.xlu0 %2737
        %2739 = vrot.lane.b32.xlu0 %v2336, 15
        %v2740 = vpop.permute.xlu0 %2739
        %2741 = vrot.lane.b32.xlu0 %v2340, 15
        %v2742 = vpop.permute.xlu0 %2741
        %2743 = vrot.lane.b32.xlu0 %v2337, 15
        %v2744 = vpop.permute.xlu0 %2743
        %2745 = vrot.lane.b32.xlu0 %v2341, 15
        %v2746 = vpop.permute.xlu0 %2745
        %v2747 = vsel %vm775, %v2740, %v2744
        %v2748 = vsel %vm775, %v2742, %v2746
        %v2749 = vsel %vm775, %v2736, %v2740
        %v2750 = vsel %vm775, %v2738, %v2742
        %v2751 = vsel %vm775, %v2732, %v2736
        %v2752 = vsel %vm775, %v2734, %v2738
        %v2753 = vsel %vm775, %v2744, %v2732
        %v2754 = vsel %vm775, %v2746, %v2734
        %v2755 = vmul.f32 %v2753, %v808
        %v2756 = vmul.f32 %v2751, %v809
        %v2757 = vmul.f32 %v2749, %v810
        %v2758 = vmul.f32 %v2747, %v811
        %v2759 = vmul.f32 %v2754, %v808
        %v2760 = vmul.f32 %v2752, %v809
        %v2761 = vmul.f32 %v2750, %v810
        %v2762 = vmul.f32 %v2748, %v811
        %s2763 = scalar_lea.vmem [#allocation7], 32
        %v2764 = vld [vmem:[%s2763] sm:$0xff]
        %v2765 = vld [vmem:[%s2763 + $0x8] sm:$0xff]
        %v2767 = vsel %vm438, %v2764, 0
        %v2770 = vsel %vm438, %v2765, 0
        %2772 = vmatprep.subr.mxu0 0.0
        %2773 = vmatpush1.msra.mxu0 0.0
        %2774 = vmatprep.subr.mxu0 0.0
        %2775 = vmatpush1.msra.mxu0 0.0
        %2776 = vmatprep.subr.mxu0 0.0
        %2777 = vmatpush1.msra.mxu0 0.0
        %2778 = vmatprep.subr.mxu0 0.0
        %2779 = vmatpush1.msra.mxu0 0.0
        %2780 = vmatprep.subr.mxu0 0.0
        %2781 = vmatpush1.msra.mxu0 0.0
        %2782 = vmatprep.subr.mxu0 0.0
        %2783 = vmatpush1.msra.mxu0 0.0
        %2784 = vmatprep.subr.mxu0 0.0
        %2785 = vmatpush1.msra.mxu0 0.0
        %2786 = vmatprep.subr.mxu0 0.0
        %2787 = vmatpush1.msra.mxu0 0.0
        %2788 = vmatprep.subr.mxu0 0.0
        %2789 = vmatpush1.msra.mxu0 0.0
        %2790 = vmatprep.subr.mxu0 0.0
        %2791 = vmatpush1.msra.mxu0 0.0
        %2792 = vmatprep.subr.mxu0 0.0
        %2793 = vmatpush1.msra.mxu0 0.0
        %2794 = vmatprep.subr.mxu0 0.0
        %2795 = vmatpush1.msra.mxu0 0.0
        %2796 = vmatprep.subr.mxu0 0.0
        %2797 = vmatpush1.msra.mxu0 0.0
        %2798 = vmatprep.subr.mxu0 0.0
        %2799 = vmatpush1.msra.mxu0 0.0
        %2800 = vmatprep.subr.mxu0 %v2760
        %2801 = vmatpush1.msra.mxu0 %v2759
        %2802 = vmatprep.subr.mxu0 %v2756
        %2803 = vmatpush1.msra.mxu0 %v2755
        %2804 = vmatprep.subr.mxu0 0.0
        %2805 = vmatpush2.msra.mxu0 0.0
        %2806 = vmatprep.subr.mxu0 0.0
        %2807 = vmatpush2.msra.mxu0 0.0
        %2808 = vmatprep.subr.mxu0 0.0
        %2809 = vmatpush2.msra.mxu0 0.0
        %2810 = vmatprep.subr.mxu0 0.0
        %2811 = vmatpush2.msra.mxu0 0.0
        %2812 = vmatprep.subr.mxu0 0.0
        %2813 = vmatpush2.msra.mxu0 0.0
        %2814 = vmatprep.subr.mxu0 0.0
        %2815 = vmatpush2.msra.mxu0 0.0
        %2816 = vmatprep.subr.mxu0 0.0
        %2817 = vmatpush2.msra.mxu0 0.0
        %2818 = vmatprep.subr.mxu0 0.0
        %2819 = vmatpush2.msra.mxu0 0.0
        %2820 = vmatprep.subr.mxu0 0.0
        %2821 = vmatpush2.msra.mxu0 0.0
        %2822 = vmatprep.subr.mxu0 0.0
        %2823 = vmatpush2.msra.mxu0 0.0
        %2824 = vmatprep.subr.mxu0 0.0
        %2825 = vmatpush2.msra.mxu0 0.0
        %2826 = vmatprep.subr.mxu0 0.0
        %2827 = vmatpush2.msra.mxu0 0.0
        %2828 = vmatprep.subr.mxu0 0.0
        %2829 = vmatpush2.msra.mxu0 0.0
        %2830 = vmatprep.subr.mxu0 0.0
        %2831 = vmatpush2.msra.mxu0 0.0
        %2832 = vmatprep.subr.mxu0 0.0
        %2833 = vmatpush2.msra.mxu0 0.0
        %2834 = vmatprep.subr.mxu0 0.0
        %2835 = vmatpush2.msra.mxu0 0.0
        %2836 = vmatprep.mubr.f32.mxu0 0.0
        %2837 = vmatmul.mubr.f32.gmra.mxu0 %v2767
        %v2838 = vpop.f32.mrf.mxu0
        %v2839 = vadd.f32 0.0, %v2838
        %v2840 = vpop.f32.mrf.mxu0
        %v2841 = vadd.f32 0.0, %v2840
        %2842 = vmatprep.mubr.f32.mxu0 0.0
        %2843 = vmatmul.mubr.f32.gmra.mxu0 %v2770
        %v2844 = vpop.f32.mrf.mxu0
        %v2845 = vadd.f32 0.0, %v2844
        %v2846 = vpop.f32.mrf.mxu0
        %v2847 = vadd.f32 0.0, %v2846
        %2848 = vdwg.mxu0
        %2849 = vmatprep.subr.mxu0 0.0
        %2850 = vmatpush1.msra.mxu0 0.0
        %2851 = vmatprep.subr.mxu0 0.0
        %2852 = vmatpush1.msra.mxu0 0.0
        %2853 = vmatprep.subr.mxu0 0.0
        %2854 = vmatpush1.msra.mxu0 0.0
        %2855 = vmatprep.subr.mxu0 0.0
        %2856 = vmatpush1.msra.mxu0 0.0
        %2857 = vmatprep.subr.mxu0 0.0
        %2858 = vmatpush1.msra.mxu0 0.0
        %2859 = vmatprep.subr.mxu0 0.0
        %2860 = vmatpush1.msra.mxu0 0.0
        %2861 = vmatprep.subr.mxu0 0.0
        %2862 = vmatpush1.msra.mxu0 0.0
        %2863 = vmatprep.subr.mxu0 0.0
        %2864 = vmatpush1.msra.mxu0 0.0
        %2865 = vmatprep.subr.mxu0 0.0
        %2866 = vmatpush1.msra.mxu0 0.0
        %2867 = vmatprep.subr.mxu0 0.0
        %2868 = vmatpush1.msra.mxu0 0.0
        %2869 = vmatprep.subr.mxu0 0.0
        %2870 = vmatpush1.msra.mxu0 0.0
        %2871 = vmatprep.subr.mxu0 0.0
        %2872 = vmatpush1.msra.mxu0 0.0
        %2873 = vmatprep.subr.mxu0 0.0
        %2874 = vmatpush1.msra.mxu0 0.0
        %2875 = vmatprep.subr.mxu0 0.0
        %2876 = vmatpush1.msra.mxu0 0.0
        %2877 = vmatprep.subr.mxu0 %v2762
        %2878 = vmatpush1.msra.mxu0 %v2761
        %2879 = vmatprep.subr.mxu0 %v2758
        %2880 = vmatpush1.msra.mxu0 %v2757
        %2881 = vmatprep.subr.mxu0 0.0
        %2882 = vmatpush2.msra.mxu0 0.0
        %2883 = vmatprep.subr.mxu0 0.0
        %2884 = vmatpush2.msra.mxu0 0.0
        %2885 = vmatprep.subr.mxu0 0.0
        %2886 = vmatpush2.msra.mxu0 0.0
        %2887 = vmatprep.subr.mxu0 0.0
        %2888 = vmatpush2.msra.mxu0 0.0
        %2889 = vmatprep.subr.mxu0 0.0
        %2890 = vmatpush2.msra.mxu0 0.0
        %2891 = vmatprep.subr.mxu0 0.0
        %2892 = vmatpush2.msra.mxu0 0.0
        %2893 = vmatprep.subr.mxu0 0.0
        %2894 = vmatpush2.msra.mxu0 0.0
        %2895 = vmatprep.subr.mxu0 0.0
        %2896 = vmatpush2.msra.mxu0 0.0
        %2897 = vmatprep.subr.mxu0 0.0
        %2898 = vmatpush2.msra.mxu0 0.0
        %2899 = vmatprep.subr.mxu0 0.0
        %2900 = vmatpush2.msra.mxu0 0.0
        %2901 = vmatprep.subr.mxu0 0.0
        %2902 = vmatpush2.msra.mxu0 0.0
        %2903 = vmatprep.subr.mxu0 0.0
        %2904 = vmatpush2.msra.mxu0 0.0
        %2905 = vmatprep.subr.mxu0 0.0
        %2906 = vmatpush2.msra.mxu0 0.0
        %2907 = vmatprep.subr.mxu0 0.0
        %2908 = vmatpush2.msra.mxu0 0.0
        %2909 = vmatprep.subr.mxu0 0.0
        %2910 = vmatpush2.msra.mxu0 0.0
        %2911 = vmatprep.subr.mxu0 0.0
        %2912 = vmatpush2.msra.mxu0 0.0
        %2913 = vmatprep.mubr.f32.mxu0 0.0
        %2914 = vmatmul.mubr.f32.gmra.mxu0 %v2767
        %v2915 = vpop.f32.mrf.mxu0
        %v2916 = vadd.f32 0.0, %v2915
        %v2917 = vpop.f32.mrf.mxu0
        %v2918 = vadd.f32 0.0, %v2917
        %2919 = vmatprep.mubr.f32.mxu0 0.0
        %2920 = vmatmul.mubr.f32.gmra.mxu0 %v2770
        %v2921 = vpop.f32.mrf.mxu0
        %v2922 = vadd.f32 0.0, %v2921
        %v2923 = vpop.f32.mrf.mxu0
        %v2924 = vadd.f32 0.0, %v2923
        %2925 = vdwg.mxu0
        %v2926 = vadd.f32 %v2644, %v2839
        %v2927 = vadd.f32 %v2646, %v2841
        %v2928 = vadd.f32 %v2721, %v2916
        %v2929 = vadd.f32 %v2723, %v2918
        %v2930 = vadd.f32 %v2650, %v2845
        %v2931 = vadd.f32 %v2652, %v2847
        %v2932 = vadd.f32 %v2727, %v2922
        %v2933 = vadd.f32 %v2729, %v2924
        %2934 = vrot.lane.b32.xlu0 %v2334, 1
        %v2935 = vpop.permute.xlu0 %2934
        %2936 = vrot.lane.b32.xlu0 %v2338, 1
        %v2937 = vpop.permute.xlu0 %2936
        %2938 = vrot.lane.b32.xlu0 %v2335, 1
        %v2939 = vpop.permute.xlu0 %2938
        %2940 = vrot.lane.b32.xlu0 %v2339, 1
        %v2941 = vpop.permute.xlu0 %2940
        %2942 = vrot.lane.b32.xlu0 %v2336, 1
        %v2943 = vpop.permute.xlu0 %2942
        %2944 = vrot.lane.b32.xlu0 %v2340, 1
        %v2945 = vpop.permute.xlu0 %2944
        %2946 = vrot.lane.b32.xlu0 %v2337, 1
        %v2947 = vpop.permute.xlu0 %2946
        %2948 = vrot.lane.b32.xlu0 %v2341, 1
        %v2949 = vpop.permute.xlu0 %2948
        %v2950 = vsel %vm1007, %v2943, %v2947
        %v2951 = vsel %vm1007, %v2945, %v2949
        %v2952 = vsel %vm1007, %v2939, %v2943
        %v2953 = vsel %vm1007, %v2941, %v2945
        %v2954 = vsel %vm1007, %v2935, %v2939
        %v2955 = vsel %vm1007, %v2937, %v2941
        %v2956 = vsel %vm1007, %v2947, %v2935
        %v2957 = vsel %vm1007, %v2949, %v2937
        %v2958 = vmul.f32 %v2956, %v1040
        %v2959 = vmul.f32 %v2954, %v1041
        %v2960 = vmul.f32 %v2952, %v1042
        %v2961 = vmul.f32 %v2950, %v1043
        %v2962 = vmul.f32 %v2957, %v1040
        %v2963 = vmul.f32 %v2955, %v1041
        %v2964 = vmul.f32 %v2953, %v1042
        %v2965 = vmul.f32 %v2951, %v1043
        %s2966 = scalar_lea.vmem [#allocation7], 48
        %v2967 = vld [vmem:[%s2966] sm:$0xff]
        %v2968 = vld [vmem:[%s2966 + $0x8] sm:$0xff]
        %v2970 = vsel %vm438, %v2967, 0
        %v2973 = vsel %vm438, %v2968, 0
        %2975 = vmatprep.subr.mxu0 0.0
        %2976 = vmatpush1.msra.mxu0 0.0
        %2977 = vmatprep.subr.mxu0 0.0
        %2978 = vmatpush1.msra.mxu0 0.0
        %2979 = vmatprep.subr.mxu0 0.0
        %2980 = vmatpush1.msra.mxu0 0.0
        %2981 = vmatprep.subr.mxu0 0.0
        %2982 = vmatpush1.msra.mxu0 0.0
        %2983 = vmatprep.subr.mxu0 0.0
        %2984 = vmatpush1.msra.mxu0 0.0
        %2985 = vmatprep.subr.mxu0 0.0
        %2986 = vmatpush1.msra.mxu0 0.0
        %2987 = vmatprep.subr.mxu0 0.0
        %2988 = vmatpush1.msra.mxu0 0.0
        %2989 = vmatprep.subr.mxu0 0.0
        %2990 = vmatpush1.msra.mxu0 0.0
        %2991 = vmatprep.subr.mxu0 0.0
        %2992 = vmatpush1.msra.mxu0 0.0
        %2993 = vmatprep.subr.mxu0 0.0
        %2994 = vmatpush1.msra.mxu0 0.0
        %2995 = vmatprep.subr.mxu0 0.0
        %2996 = vmatpush1.msra.mxu0 0.0
        %2997 = vmatprep.subr.mxu0 0.0
        %2998 = vmatpush1.msra.mxu0 0.0
        %2999 = vmatprep.subr.mxu0 0.0
        %3000 = vmatpush1.msra.mxu0 0.0
        %3001 = vmatprep.subr.mxu0 0.0
        %3002 = vmatpush1.msra.mxu0 0.0
        %3003 = vmatprep.subr.mxu0 %v2963
        %3004 = vmatpush1.msra.mxu0 %v2962
        %3005 = vmatprep.subr.mxu0 %v2959
        %3006 = vmatpush1.msra.mxu0 %v2958
        %3007 = vmatprep.subr.mxu0 0.0
        %3008 = vmatpush2.msra.mxu0 0.0
        %3009 = vmatprep.subr.mxu0 0.0
        %3010 = vmatpush2.msra.mxu0 0.0
        %3011 = vmatprep.subr.mxu0 0.0
        %3012 = vmatpush2.msra.mxu0 0.0
        %3013 = vmatprep.subr.mxu0 0.0
        %3014 = vmatpush2.msra.mxu0 0.0
        %3015 = vmatprep.subr.mxu0 0.0
        %3016 = vmatpush2.msra.mxu0 0.0
        %3017 = vmatprep.subr.mxu0 0.0
        %3018 = vmatpush2.msra.mxu0 0.0
        %3019 = vmatprep.subr.mxu0 0.0
        %3020 = vmatpush2.msra.mxu0 0.0
        %3021 = vmatprep.subr.mxu0 0.0
        %3022 = vmatpush2.msra.mxu0 0.0
        %3023 = vmatprep.subr.mxu0 0.0
        %3024 = vmatpush2.msra.mxu0 0.0
        %3025 = vmatprep.subr.mxu0 0.0
        %3026 = vmatpush2.msra.mxu0 0.0
        %3027 = vmatprep.subr.mxu0 0.0
        %3028 = vmatpush2.msra.mxu0 0.0
        %3029 = vmatprep.subr.mxu0 0.0
        %3030 = vmatpush2.msra.mxu0 0.0
        %3031 = vmatprep.subr.mxu0 0.0
        %3032 = vmatpush2.msra.mxu0 0.0
        %3033 = vmatprep.subr.mxu0 0.0
        %3034 = vmatpush2.msra.mxu0 0.0
        %3035 = vmatprep.subr.mxu0 0.0
        %3036 = vmatpush2.msra.mxu0 0.0
        %3037 = vmatprep.subr.mxu0 0.0
        %3038 = vmatpush2.msra.mxu0 0.0
        %3039 = vmatprep.mubr.f32.mxu0 0.0
        %3040 = vmatmul.mubr.f32.gmra.mxu0 %v2970
        %v3041 = vpop.f32.mrf.mxu0
        %v3042 = vadd.f32 0.0, %v3041
        %v3043 = vpop.f32.mrf.mxu0
        %v3044 = vadd.f32 0.0, %v3043
        %3045 = vmatprep.mubr.f32.mxu0 0.0
        %3046 = vmatmul.mubr.f32.gmra.mxu0 %v2973
        %v3047 = vpop.f32.mrf.mxu0
        %v3048 = vadd.f32 0.0, %v3047
        %v3049 = vpop.f32.mrf.mxu0
        %v3050 = vadd.f32 0.0, %v3049
        %3051 = vdwg.mxu0
        %3052 = vmatprep.subr.mxu0 0.0
        %3053 = vmatpush1.msra.mxu0 0.0
        %3054 = vmatprep.subr.mxu0 0.0
        %3055 = vmatpush1.msra.mxu0 0.0
        %3056 = vmatprep.subr.mxu0 0.0
        %3057 = vmatpush1.msra.mxu0 0.0
        %3058 = vmatprep.subr.mxu0 0.0
        %3059 = vmatpush1.msra.mxu0 0.0
        %3060 = vmatprep.subr.mxu0 0.0
        %3061 = vmatpush1.msra.mxu0 0.0
        %3062 = vmatprep.subr.mxu0 0.0
        %3063 = vmatpush1.msra.mxu0 0.0
        %3064 = vmatprep.subr.mxu0 0.0
        %3065 = vmatpush1.msra.mxu0 0.0
        %3066 = vmatprep.subr.mxu0 0.0
        %3067 = vmatpush1.msra.mxu0 0.0
        %3068 = vmatprep.subr.mxu0 0.0
        %3069 = vmatpush1.msra.mxu0 0.0
        %3070 = vmatprep.subr.mxu0 0.0
        %3071 = vmatpush1.msra.mxu0 0.0
        %3072 = vmatprep.subr.mxu0 0.0
        %3073 = vmatpush1.msra.mxu0 0.0
        %3074 = vmatprep.subr.mxu0 0.0
        %3075 = vmatpush1.msra.mxu0 0.0
        %3076 = vmatprep.subr.mxu0 0.0
        %3077 = vmatpush1.msra.mxu0 0.0
        %3078 = vmatprep.subr.mxu0 0.0
        %3079 = vmatpush1.msra.mxu0 0.0
        %3080 = vmatprep.subr.mxu0 %v2965
        %3081 = vmatpush1.msra.mxu0 %v2964
        %3082 = vmatprep.subr.mxu0 %v2961
        %3083 = vmatpush1.msra.mxu0 %v2960
        %3084 = vmatprep.subr.mxu0 0.0
        %3085 = vmatpush2.msra.mxu0 0.0
        %3086 = vmatprep.subr.mxu0 0.0
        %3087 = vmatpush2.msra.mxu0 0.0
        %3088 = vmatprep.subr.mxu0 0.0
        %3089 = vmatpush2.msra.mxu0 0.0
        %3090 = vmatprep.subr.mxu0 0.0
        %3091 = vmatpush2.msra.mxu0 0.0
        %3092 = vmatprep.subr.mxu0 0.0
        %3093 = vmatpush2.msra.mxu0 0.0
        %3094 = vmatprep.subr.mxu0 0.0
        %3095 = vmatpush2.msra.mxu0 0.0
        %3096 = vmatprep.subr.mxu0 0.0
        %3097 = vmatpush2.msra.mxu0 0.0
        %3098 = vmatprep.subr.mxu0 0.0
        %3099 = vmatpush2.msra.mxu0 0.0
        %3100 = vmatprep.subr.mxu0 0.0
        %3101 = vmatpush2.msra.mxu0 0.0
        %3102 = vmatprep.subr.mxu0 0.0
        %3103 = vmatpush2.msra.mxu0 0.0
        %3104 = vmatprep.subr.mxu0 0.0
        %3105 = vmatpush2.msra.mxu0 0.0
        %3106 = vmatprep.subr.mxu0 0.0
        %3107 = vmatpush2.msra.mxu0 0.0
        %3108 = vmatprep.subr.mxu0 0.0
        %3109 = vmatpush2.msra.mxu0 0.0
        %3110 = vmatprep.subr.mxu0 0.0
        %3111 = vmatpush2.msra.mxu0 0.0
        %3112 = vmatprep.subr.mxu0 0.0
        %3113 = vmatpush2.msra.mxu0 0.0
        %3114 = vmatprep.subr.mxu0 0.0
        %3115 = vmatpush2.msra.mxu0 0.0
        %3116 = vmatprep.mubr.f32.mxu0 0.0
        %3117 = vmatmul.mubr.f32.gmra.mxu0 %v2970
        %v3118 = vpop.f32.mrf.mxu0
        %v3119 = vadd.f32 0.0, %v3118
        %v3120 = vpop.f32.mrf.mxu0
        %v3121 = vadd.f32 0.0, %v3120
        %3122 = vmatprep.mubr.f32.mxu0 0.0
        %3123 = vmatmul.mubr.f32.gmra.mxu0 %v2973
        %v3124 = vpop.f32.mrf.mxu0
        %v3125 = vadd.f32 0.0, %v3124
        %v3126 = vpop.f32.mrf.mxu0
        %v3127 = vadd.f32 0.0, %v3126
        %3128 = vdwg.mxu0
        %v3129 = vadd.f32 %v2926, %v3042
        %v3130 = vadd.f32 %v2927, %v3044
        %v3131 = vadd.f32 %v2928, %v3119
        %v3132 = vadd.f32 %v2929, %v3121
        %v3133 = vadd.f32 %v2930, %v3048
        %v3134 = vadd.f32 %v2931, %v3050
        %v3135 = vadd.f32 %v2932, %v3125
        %v3136 = vadd.f32 %v2933, %v3127
        %v3137 = vmul.f32 %v2334, %v1235
        %v3138 = vmul.f32 %v2335, %v1236
        %v3139 = vmul.f32 %v2336, %v1237
        %v3140 = vmul.f32 %v2337, %v1238
        %v3141 = vmul.f32 %v2338, %v1235
        %v3142 = vmul.f32 %v2339, %v1236
        %v3143 = vmul.f32 %v2340, %v1237
        %v3144 = vmul.f32 %v2341, %v1238
        %s3145 = scalar_lea.vmem [#allocation7], 64
        %v3146 = vld [vmem:[%s3145] sm:$0xff]
        %v3147 = vld [vmem:[%s3145 + $0x8] sm:$0xff]
        %v3149 = vsel %vm438, %v3146, 0
        %v3152 = vsel %vm438, %v3147, 0
        %3154 = vmatprep.subr.mxu0 0.0
        %3155 = vmatpush1.msra.mxu0 0.0
        %3156 = vmatprep.subr.mxu0 0.0
        %3157 = vmatpush1.msra.mxu0 0.0
        %3158 = vmatprep.subr.mxu0 0.0
        %3159 = vmatpush1.msra.mxu0 0.0
        %3160 = vmatprep.subr.mxu0 0.0
        %3161 = vmatpush1.msra.mxu0 0.0
        %3162 = vmatprep.subr.mxu0 0.0
        %3163 = vmatpush1.msra.mxu0 0.0
        %3164 = vmatprep.subr.mxu0 0.0
        %3165 = vmatpush1.msra.mxu0 0.0
        %3166 = vmatprep.subr.mxu0 0.0
        %3167 = vmatpush1.msra.mxu0 0.0
        %3168 = vmatprep.subr.mxu0 0.0
        %3169 = vmatpush1.msra.mxu0 0.0
        %3170 = vmatprep.subr.mxu0 0.0
        %3171 = vmatpush1.msra.mxu0 0.0
        %3172 = vmatprep.subr.mxu0 0.0
        %3173 = vmatpush1.msra.mxu0 0.0
        %3174 = vmatprep.subr.mxu0 0.0
        %3175 = vmatpush1.msra.mxu0 0.0
        %3176 = vmatprep.subr.mxu0 0.0
        %3177 = vmatpush1.msra.mxu0 0.0
        %3178 = vmatprep.subr.mxu0 0.0
        %3179 = vmatpush1.msra.mxu0 0.0
        %3180 = vmatprep.subr.mxu0 0.0
        %3181 = vmatpush1.msra.mxu0 0.0
        %3182 = vmatprep.subr.mxu0 %v3142
        %3183 = vmatpush1.msra.mxu0 %v3141
        %3184 = vmatprep.subr.mxu0 %v3138
        %3185 = vmatpush1.msra.mxu0 %v3137
        %3186 = vmatprep.subr.mxu0 0.0
        %3187 = vmatpush2.msra.mxu0 0.0
        %3188 = vmatprep.subr.mxu0 0.0
        %3189 = vmatpush2.msra.mxu0 0.0
        %3190 = vmatprep.subr.mxu0 0.0
        %3191 = vmatpush2.msra.mxu0 0.0
        %3192 = vmatprep.subr.mxu0 0.0
        %3193 = vmatpush2.msra.mxu0 0.0
        %3194 = vmatprep.subr.mxu0 0.0
        %3195 = vmatpush2.msra.mxu0 0.0
        %3196 = vmatprep.subr.mxu0 0.0
        %3197 = vmatpush2.msra.mxu0 0.0
        %3198 = vmatprep.subr.mxu0 0.0
        %3199 = vmatpush2.msra.mxu0 0.0
        %3200 = vmatprep.subr.mxu0 0.0
        %3201 = vmatpush2.msra.mxu0 0.0
        %3202 = vmatprep.subr.mxu0 0.0
        %3203 = vmatpush2.msra.mxu0 0.0
        %3204 = vmatprep.subr.mxu0 0.0
        %3205 = vmatpush2.msra.mxu0 0.0
        %3206 = vmatprep.subr.mxu0 0.0
        %3207 = vmatpush2.msra.mxu0 0.0
        %3208 = vmatprep.subr.mxu0 0.0
        %3209 = vmatpush2.msra.mxu0 0.0
        %3210 = vmatprep.subr.mxu0 0.0
        %3211 = vmatpush2.msra.mxu0 0.0
        %3212 = vmatprep.subr.mxu0 0.0
        %3213 = vmatpush2.msra.mxu0 0.0
        %3214 = vmatprep.subr.mxu0 0.0
        %3215 = vmatpush2.msra.mxu0 0.0
        %3216 = vmatprep.subr.mxu0 0.0
        %3217 = vmatpush2.msra.mxu0 0.0
        %3218 = vmatprep.mubr.f32.mxu0 0.0
        %3219 = vmatmul.mubr.f32.gmra.mxu0 %v3149
        %v3220 = vpop.f32.mrf.mxu0
        %v3221 = vadd.f32 0.0, %v3220
        %v3222 = vpop.f32.mrf.mxu0
        %v3223 = vadd.f32 0.0, %v3222
        %3224 = vmatprep.mubr.f32.mxu0 0.0
        %3225 = vmatmul.mubr.f32.gmra.mxu0 %v3152
        %v3226 = vpop.f32.mrf.mxu0
        %v3227 = vadd.f32 0.0, %v3226
        %v3228 = vpop.f32.mrf.mxu0
        %v3229 = vadd.f32 0.0, %v3228
        %3230 = vdwg.mxu0
        %3231 = vmatprep.subr.mxu0 0.0
        %3232 = vmatpush1.msra.mxu0 0.0
        %3233 = vmatprep.subr.mxu0 0.0
        %3234 = vmatpush1.msra.mxu0 0.0
        %3235 = vmatprep.subr.mxu0 0.0
        %3236 = vmatpush1.msra.mxu0 0.0
        %3237 = vmatprep.subr.mxu0 0.0
        %3238 = vmatpush1.msra.mxu0 0.0
        %3239 = vmatprep.subr.mxu0 0.0
        %3240 = vmatpush1.msra.mxu0 0.0
        %3241 = vmatprep.subr.mxu0 0.0
        %3242 = vmatpush1.msra.mxu0 0.0
        %3243 = vmatprep.subr.mxu0 0.0
        %3244 = vmatpush1.msra.mxu0 0.0
        %3245 = vmatprep.subr.mxu0 0.0
        %3246 = vmatpush1.msra.mxu0 0.0
        %3247 = vmatprep.subr.mxu0 0.0
        %3248 = vmatpush1.msra.mxu0 0.0
        %3249 = vmatprep.subr.mxu0 0.0
        %3250 = vmatpush1.msra.mxu0 0.0
        %3251 = vmatprep.subr.mxu0 0.0
        %3252 = vmatpush1.msra.mxu0 0.0
        %3253 = vmatprep.subr.mxu0 0.0
        %3254 = vmatpush1.msra.mxu0 0.0
        %3255 = vmatprep.subr.mxu0 0.0
        %3256 = vmatpush1.msra.mxu0 0.0
        %3257 = vmatprep.subr.mxu0 0.0
        %3258 = vmatpush1.msra.mxu0 0.0
        %3259 = vmatprep.subr.mxu0 %v3144
        %3260 = vmatpush1.msra.mxu0 %v3143
        %3261 = vmatprep.subr.mxu0 %v3140
        %3262 = vmatpush1.msra.mxu0 %v3139
        %3263 = vmatprep.subr.mxu0 0.0
        %3264 = vmatpush2.msra.mxu0 0.0
        %3265 = vmatprep.subr.mxu0 0.0
        %3266 = vmatpush2.msra.mxu0 0.0
        %3267 = vmatprep.subr.mxu0 0.0
        %3268 = vmatpush2.msra.mxu0 0.0
        %3269 = vmatprep.subr.mxu0 0.0
        %3270 = vmatpush2.msra.mxu0 0.0
        %3271 = vmatprep.subr.mxu0 0.0
        %3272 = vmatpush2.msra.mxu0 0.0
        %3273 = vmatprep.subr.mxu0 0.0
        %3274 = vmatpush2.msra.mxu0 0.0
        %3275 = vmatprep.subr.mxu0 0.0
        %3276 = vmatpush2.msra.mxu0 0.0
        %3277 = vmatprep.subr.mxu0 0.0
        %3278 = vmatpush2.msra.mxu0 0.0
        %3279 = vmatprep.subr.mxu0 0.0
        %3280 = vmatpush2.msra.mxu0 0.0
        %3281 = vmatprep.subr.mxu0 0.0
        %3282 = vmatpush2.msra.mxu0 0.0
        %3283 = vmatprep.subr.mxu0 0.0
        %3284 = vmatpush2.msra.mxu0 0.0
        %3285 = vmatprep.subr.mxu0 0.0
        %3286 = vmatpush2.msra.mxu0 0.0
        %3287 = vmatprep.subr.mxu0 0.0
        %3288 = vmatpush2.msra.mxu0 0.0
        %3289 = vmatprep.subr.mxu0 0.0
        %3290 = vmatpush2.msra.mxu0 0.0
        %3291 = vmatprep.subr.mxu0 0.0
        %3292 = vmatpush2.msra.mxu0 0.0
        %3293 = vmatprep.subr.mxu0 0.0
        %3294 = vmatpush2.msra.mxu0 0.0
        %3295 = vmatprep.mubr.f32.mxu0 0.0
        %3296 = vmatmul.mubr.f32.gmra.mxu0 %v3149
        %v3297 = vpop.f32.mrf.mxu0
        %v3298 = vadd.f32 0.0, %v3297
        %v3299 = vpop.f32.mrf.mxu0
        %v3300 = vadd.f32 0.0, %v3299
        %3301 = vmatprep.mubr.f32.mxu0 0.0
        %3302 = vmatmul.mubr.f32.gmra.mxu0 %v3152
        %v3303 = vpop.f32.mrf.mxu0
        %v3304 = vadd.f32 0.0, %v3303
        %v3305 = vpop.f32.mrf.mxu0
        %v3306 = vadd.f32 0.0, %v3305
        %3307 = vdwg.mxu0
        %v3308 = vadd.f32 %v3129, %v3221
        %v3309 = vadd.f32 %v3130, %v3223
        %v3310 = vadd.f32 %v3131, %v3298
        %v3311 = vadd.f32 %v3132, %v3300
        %v3312 = vadd.f32 %v3133, %v3227
        %v3313 = vadd.f32 %v3134, %v3229
        %v3314 = vadd.f32 %v3135, %v3304
        %v3315 = vadd.f32 %v3136, %v3306
        %3316 = vrot.lane.b32.xlu0 %v2334, 127
        %v3317 = vpop.permute.xlu0 %3316
        %3318 = vrot.lane.b32.xlu0 %v2338, 127
        %v3319 = vpop.permute.xlu0 %3318
        %3320 = vrot.lane.b32.xlu0 %v2335, 127
        %v3321 = vpop.permute.xlu0 %3320
        %3322 = vrot.lane.b32.xlu0 %v2339, 127
        %v3323 = vpop.permute.xlu0 %3322
        %3324 = vrot.lane.b32.xlu0 %v2336, 127
        %v3325 = vpop.permute.xlu0 %3324
        %3326 = vrot.lane.b32.xlu0 %v2340, 127
        %v3327 = vpop.permute.xlu0 %3326
        %3328 = vrot.lane.b32.xlu0 %v2337, 127
        %v3329 = vpop.permute.xlu0 %3328
        %3330 = vrot.lane.b32.xlu0 %v2341, 127
        %v3331 = vpop.permute.xlu0 %3330
        %v3332 = vsel %vm1434, %v3325, %v3329
        %v3333 = vsel %vm1434, %v3327, %v3331
        %v3334 = vsel %vm1434, %v3321, %v3325
        %v3335 = vsel %vm1434, %v3323, %v3327
        %v3336 = vsel %vm1434, %v3317, %v3321
        %v3337 = vsel %vm1434, %v3319, %v3323
        %v3338 = vsel %vm1434, %v3329, %v3317
        %v3339 = vsel %vm1434, %v3331, %v3319
        %v3340 = vmul.f32 %v3336, %v1455
        %v3341 = vmul.f32 %v3334, %v1456
        %v3342 = vmul.f32 %v3332, %v1457
        %v3343 = vmul.f32 %v3338, %v1458
        %v3344 = vmul.f32 %v3337, %v1455
        %v3345 = vmul.f32 %v3335, %v1456
        %v3346 = vmul.f32 %v3333, %v1457
        %v3347 = vmul.f32 %v3339, %v1458
        %s3348 = scalar_lea.vmem [#allocation7], 80
        %v3349 = vld [vmem:[%s3348] sm:$0xff]
        %v3350 = vld [vmem:[%s3348 + $0x8] sm:$0xff]
        %v3352 = vsel %vm438, %v3349, 0
        %v3355 = vsel %vm438, %v3350, 0
        %3357 = vmatprep.subr.mxu0 0.0
        %3358 = vmatpush1.msra.mxu0 0.0
        %3359 = vmatprep.subr.mxu0 0.0
        %3360 = vmatpush1.msra.mxu0 0.0
        %3361 = vmatprep.subr.mxu0 0.0
        %3362 = vmatpush1.msra.mxu0 0.0
        %3363 = vmatprep.subr.mxu0 0.0
        %3364 = vmatpush1.msra.mxu0 0.0
        %3365 = vmatprep.subr.mxu0 0.0
        %3366 = vmatpush1.msra.mxu0 0.0
        %3367 = vmatprep.subr.mxu0 0.0
        %3368 = vmatpush1.msra.mxu0 0.0
        %3369 = vmatprep.subr.mxu0 0.0
        %3370 = vmatpush1.msra.mxu0 0.0
        %3371 = vmatprep.subr.mxu0 0.0
        %3372 = vmatpush1.msra.mxu0 0.0
        %3373 = vmatprep.subr.mxu0 0.0
        %3374 = vmatpush1.msra.mxu0 0.0
        %3375 = vmatprep.subr.mxu0 0.0
        %3376 = vmatpush1.msra.mxu0 0.0
        %3377 = vmatprep.subr.mxu0 0.0
        %3378 = vmatpush1.msra.mxu0 0.0
        %3379 = vmatprep.subr.mxu0 0.0
        %3380 = vmatpush1.msra.mxu0 0.0
        %3381 = vmatprep.subr.mxu0 0.0
        %3382 = vmatpush1.msra.mxu0 0.0
        %3383 = vmatprep.subr.mxu0 0.0
        %3384 = vmatpush1.msra.mxu0 0.0
        %3385 = vmatprep.subr.mxu0 %v3345
        %3386 = vmatpush1.msra.mxu0 %v3344
        %3387 = vmatprep.subr.mxu0 %v3341
        %3388 = vmatpush1.msra.mxu0 %v3340
        %3389 = vmatprep.subr.mxu0 0.0
        %3390 = vmatpush2.msra.mxu0 0.0
        %3391 = vmatprep.subr.mxu0 0.0
        %3392 = vmatpush2.msra.mxu0 0.0
        %3393 = vmatprep.subr.mxu0 0.0
        %3394 = vmatpush2.msra.mxu0 0.0
        %3395 = vmatprep.subr.mxu0 0.0
        %3396 = vmatpush2.msra.mxu0 0.0
        %3397 = vmatprep.subr.mxu0 0.0
        %3398 = vmatpush2.msra.mxu0 0.0
        %3399 = vmatprep.subr.mxu0 0.0
        %3400 = vmatpush2.msra.mxu0 0.0
        %3401 = vmatprep.subr.mxu0 0.0
        %3402 = vmatpush2.msra.mxu0 0.0
        %3403 = vmatprep.subr.mxu0 0.0
        %3404 = vmatpush2.msra.mxu0 0.0
        %3405 = vmatprep.subr.mxu0 0.0
        %3406 = vmatpush2.msra.mxu0 0.0
        %3407 = vmatprep.subr.mxu0 0.0
        %3408 = vmatpush2.msra.mxu0 0.0
        %3409 = vmatprep.subr.mxu0 0.0
        %3410 = vmatpush2.msra.mxu0 0.0
        %3411 = vmatprep.subr.mxu0 0.0
        %3412 = vmatpush2.msra.mxu0 0.0
        %3413 = vmatprep.subr.mxu0 0.0
        %3414 = vmatpush2.msra.mxu0 0.0
        %3415 = vmatprep.subr.mxu0 0.0
        %3416 = vmatpush2.msra.mxu0 0.0
        %3417 = vmatprep.subr.mxu0 0.0
        %3418 = vmatpush2.msra.mxu0 0.0
        %3419 = vmatprep.subr.mxu0 0.0
        %3420 = vmatpush2.msra.mxu0 0.0
        %3421 = vmatprep.mubr.f32.mxu0 0.0
        %3422 = vmatmul.mubr.f32.gmra.mxu0 %v3352
        %v3423 = vpop.f32.mrf.mxu0
        %v3424 = vadd.f32 0.0, %v3423
        %v3425 = vpop.f32.mrf.mxu0
        %v3426 = vadd.f32 0.0, %v3425
        %3427 = vmatprep.mubr.f32.mxu0 0.0
        %3428 = vmatmul.mubr.f32.gmra.mxu0 %v3355
        %v3429 = vpop.f32.mrf.mxu0
        %v3430 = vadd.f32 0.0, %v3429
        %v3431 = vpop.f32.mrf.mxu0
        %v3432 = vadd.f32 0.0, %v3431
        %3433 = vdwg.mxu0
        %3434 = vmatprep.subr.mxu0 0.0
        %3435 = vmatpush1.msra.mxu0 0.0
        %3436 = vmatprep.subr.mxu0 0.0
        %3437 = vmatpush1.msra.mxu0 0.0
        %3438 = vmatprep.subr.mxu0 0.0
        %3439 = vmatpush1.msra.mxu0 0.0
        %3440 = vmatprep.subr.mxu0 0.0
        %3441 = vmatpush1.msra.mxu0 0.0
        %3442 = vmatprep.subr.mxu0 0.0
        %3443 = vmatpush1.msra.mxu0 0.0
        %3444 = vmatprep.subr.mxu0 0.0
        %3445 = vmatpush1.msra.mxu0 0.0
        %3446 = vmatprep.subr.mxu0 0.0
        %3447 = vmatpush1.msra.mxu0 0.0
        %3448 = vmatprep.subr.mxu0 0.0
        %3449 = vmatpush1.msra.mxu0 0.0
        %3450 = vmatprep.subr.mxu0 0.0
        %3451 = vmatpush1.msra.mxu0 0.0
        %3452 = vmatprep.subr.mxu0 0.0
        %3453 = vmatpush1.msra.mxu0 0.0
        %3454 = vmatprep.subr.mxu0 0.0
        %3455 = vmatpush1.msra.mxu0 0.0
        %3456 = vmatprep.subr.mxu0 0.0
        %3457 = vmatpush1.msra.mxu0 0.0
        %3458 = vmatprep.subr.mxu0 0.0
        %3459 = vmatpush1.msra.mxu0 0.0
        %3460 = vmatprep.subr.mxu0 0.0
        %3461 = vmatpush1.msra.mxu0 0.0
        %3462 = vmatprep.subr.mxu0 %v3347
        %3463 = vmatpush1.msra.mxu0 %v3346
        %3464 = vmatprep.subr.mxu0 %v3343
        %3465 = vmatpush1.msra.mxu0 %v3342
        %3466 = vmatprep.subr.mxu0 0.0
        %3467 = vmatpush2.msra.mxu0 0.0
        %3468 = vmatprep.subr.mxu0 0.0
        %3469 = vmatpush2.msra.mxu0 0.0
        %3470 = vmatprep.subr.mxu0 0.0
        %3471 = vmatpush2.msra.mxu0 0.0
        %3472 = vmatprep.subr.mxu0 0.0
        %3473 = vmatpush2.msra.mxu0 0.0
        %3474 = vmatprep.subr.mxu0 0.0
        %3475 = vmatpush2.msra.mxu0 0.0
        %3476 = vmatprep.subr.mxu0 0.0
        %3477 = vmatpush2.msra.mxu0 0.0
        %3478 = vmatprep.subr.mxu0 0.0
        %3479 = vmatpush2.msra.mxu0 0.0
        %3480 = vmatprep.subr.mxu0 0.0
        %3481 = vmatpush2.msra.mxu0 0.0
        %3482 = vmatprep.subr.mxu0 0.0
        %3483 = vmatpush2.msra.mxu0 0.0
        %3484 = vmatprep.subr.mxu0 0.0
        %3485 = vmatpush2.msra.mxu0 0.0
        %3486 = vmatprep.subr.mxu0 0.0
        %3487 = vmatpush2.msra.mxu0 0.0
        %3488 = vmatprep.subr.mxu0 0.0
        %3489 = vmatpush2.msra.mxu0 0.0
        %3490 = vmatprep.subr.mxu0 0.0
        %3491 = vmatpush2.msra.mxu0 0.0
        %3492 = vmatprep.subr.mxu0 0.0
        %3493 = vmatpush2.msra.mxu0 0.0
        %3494 = vmatprep.subr.mxu0 0.0
        %3495 = vmatpush2.msra.mxu0 0.0
        %3496 = vmatprep.subr.mxu0 0.0
        %3497 = vmatpush2.msra.mxu0 0.0
        %3498 = vmatprep.mubr.f32.mxu0 0.0
        %3499 = vmatmul.mubr.f32.gmra.mxu0 %v3352
        %v3500 = vpop.f32.mrf.mxu0
        %v3501 = vadd.f32 0.0, %v3500
        %v3502 = vpop.f32.mrf.mxu0
        %v3503 = vadd.f32 0.0, %v3502
        %3504 = vmatprep.mubr.f32.mxu0 0.0
        %3505 = vmatmul.mubr.f32.gmra.mxu0 %v3355
        %v3506 = vpop.f32.mrf.mxu0
        %v3507 = vadd.f32 0.0, %v3506
        %v3508 = vpop.f32.mrf.mxu0
        %v3509 = vadd.f32 0.0, %v3508
        %3510 = vdwg.mxu0
        %v3511 = vadd.f32 %v3308, %v3424
        %v3512 = vadd.f32 %v3309, %v3426
        %v3513 = vadd.f32 %v3310, %v3501
        %v3514 = vadd.f32 %v3311, %v3503
        %v3515 = vadd.f32 %v3312, %v3430
        %v3516 = vadd.f32 %v3313, %v3432
        %v3517 = vadd.f32 %v3314, %v3507
        %v3518 = vadd.f32 %v3315, %v3509
        %3519 = vrot.lane.b32.xlu0 %v2334, 113
        %v3520 = vpop.permute.xlu0 %3519
        %3521 = vrot.lane.b32.xlu0 %v2338, 113
        %v3522 = vpop.permute.xlu0 %3521
        %3523 = vrot.lane.b32.xlu0 %v2335, 113
        %v3524 = vpop.permute.xlu0 %3523
        %3525 = vrot.lane.b32.xlu0 %v2339, 113
        %v3526 = vpop.permute.xlu0 %3525
        %3527 = vrot.lane.b32.xlu0 %v2336, 113
        %v3528 = vpop.permute.xlu0 %3527
        %3529 = vrot.lane.b32.xlu0 %v2340, 113
        %v3530 = vpop.permute.xlu0 %3529
        %3531 = vrot.lane.b32.xlu0 %v2337, 113
        %v3532 = vpop.permute.xlu0 %3531
        %3533 = vrot.lane.b32.xlu0 %v2341, 113
        %v3534 = vpop.permute.xlu0 %3533
        %v3535 = vsel %vm1654, %v3528, %v3532
        %v3536 = vsel %vm1654, %v3530, %v3534
        %v3537 = vsel %vm1654, %v3524, %v3528
        %v3538 = vsel %vm1654, %v3526, %v3530
        %v3539 = vsel %vm1654, %v3520, %v3524
        %v3540 = vsel %vm1654, %v3522, %v3526
        %v3541 = vsel %vm1654, %v3532, %v3520
        %v3542 = vsel %vm1654, %v3534, %v3522
        %v3543 = vmul.f32 %v3539, %v1691
        %v3544 = vmul.f32 %v3537, %v1692
        %v3545 = vmul.f32 %v3535, %v1693
        %v3546 = vmul.f32 %v3541, %v1694
        %v3547 = vmul.f32 %v3540, %v1691
        %v3548 = vmul.f32 %v3538, %v1692
        %v3549 = vmul.f32 %v3536, %v1693
        %v3550 = vmul.f32 %v3542, %v1694
        %s3551 = scalar_lea.vmem [#allocation7], 96
        %v3552 = vld [vmem:[%s3551] sm:$0xff]
        %v3553 = vld [vmem:[%s3551 + $0x8] sm:$0xff]
        %v3555 = vsel %vm438, %v3552, 0
        %v3558 = vsel %vm438, %v3553, 0
        %3560 = vmatprep.subr.mxu0 0.0
        %3561 = vmatpush1.msra.mxu0 0.0
        %3562 = vmatprep.subr.mxu0 0.0
        %3563 = vmatpush1.msra.mxu0 0.0
        %3564 = vmatprep.subr.mxu0 0.0
        %3565 = vmatpush1.msra.mxu0 0.0
        %3566 = vmatprep.subr.mxu0 0.0
        %3567 = vmatpush1.msra.mxu0 0.0
        %3568 = vmatprep.subr.mxu0 0.0
        %3569 = vmatpush1.msra.mxu0 0.0
        %3570 = vmatprep.subr.mxu0 0.0
        %3571 = vmatpush1.msra.mxu0 0.0
        %3572 = vmatprep.subr.mxu0 0.0
        %3573 = vmatpush1.msra.mxu0 0.0
        %3574 = vmatprep.subr.mxu0 0.0
        %3575 = vmatpush1.msra.mxu0 0.0
        %3576 = vmatprep.subr.mxu0 0.0
        %3577 = vmatpush1.msra.mxu0 0.0
        %3578 = vmatprep.subr.mxu0 0.0
        %3579 = vmatpush1.msra.mxu0 0.0
        %3580 = vmatprep.subr.mxu0 0.0
        %3581 = vmatpush1.msra.mxu0 0.0
        %3582 = vmatprep.subr.mxu0 0.0
        %3583 = vmatpush1.msra.mxu0 0.0
        %3584 = vmatprep.subr.mxu0 0.0
        %3585 = vmatpush1.msra.mxu0 0.0
        %3586 = vmatprep.subr.mxu0 0.0
        %3587 = vmatpush1.msra.mxu0 0.0
        %3588 = vmatprep.subr.mxu0 %v3548
        %3589 = vmatpush1.msra.mxu0 %v3547
        %3590 = vmatprep.subr.mxu0 %v3544
        %3591 = vmatpush1.msra.mxu0 %v3543
        %3592 = vmatprep.subr.mxu0 0.0
        %3593 = vmatpush2.msra.mxu0 0.0
        %3594 = vmatprep.subr.mxu0 0.0
        %3595 = vmatpush2.msra.mxu0 0.0
        %3596 = vmatprep.subr.mxu0 0.0
        %3597 = vmatpush2.msra.mxu0 0.0
        %3598 = vmatprep.subr.mxu0 0.0
        %3599 = vmatpush2.msra.mxu0 0.0
        %3600 = vmatprep.subr.mxu0 0.0
        %3601 = vmatpush2.msra.mxu0 0.0
        %3602 = vmatprep.subr.mxu0 0.0
        %3603 = vmatpush2.msra.mxu0 0.0
        %3604 = vmatprep.subr.mxu0 0.0
        %3605 = vmatpush2.msra.mxu0 0.0
        %3606 = vmatprep.subr.mxu0 0.0
        %3607 = vmatpush2.msra.mxu0 0.0
        %3608 = vmatprep.subr.mxu0 0.0
        %3609 = vmatpush2.msra.mxu0 0.0
        %3610 = vmatprep.subr.mxu0 0.0
        %3611 = vmatpush2.msra.mxu0 0.0
        %3612 = vmatprep.subr.mxu0 0.0
        %3613 = vmatpush2.msra.mxu0 0.0
        %3614 = vmatprep.subr.mxu0 0.0
        %3615 = vmatpush2.msra.mxu0 0.0
        %3616 = vmatprep.subr.mxu0 0.0
        %3617 = vmatpush2.msra.mxu0 0.0
        %3618 = vmatprep.subr.mxu0 0.0
        %3619 = vmatpush2.msra.mxu0 0.0
        %3620 = vmatprep.subr.mxu0 0.0
        %3621 = vmatpush2.msra.mxu0 0.0
        %3622 = vmatprep.subr.mxu0 0.0
        %3623 = vmatpush2.msra.mxu0 0.0
        %3624 = vmatprep.mubr.f32.mxu0 0.0
        %3625 = vmatmul.mubr.f32.gmra.mxu0 %v3555
        %v3626 = vpop.f32.mrf.mxu0
        %v3627 = vadd.f32 0.0, %v3626
        %v3628 = vpop.f32.mrf.mxu0
        %v3629 = vadd.f32 0.0, %v3628
        %3630 = vmatprep.mubr.f32.mxu0 0.0
        %3631 = vmatmul.mubr.f32.gmra.mxu0 %v3558
        %v3632 = vpop.f32.mrf.mxu0
        %v3633 = vadd.f32 0.0, %v3632
        %v3634 = vpop.f32.mrf.mxu0
        %v3635 = vadd.f32 0.0, %v3634
        %3636 = vdwg.mxu0
        %3637 = vmatprep.subr.mxu0 0.0
        %3638 = vmatpush1.msra.mxu0 0.0
        %3639 = vmatprep.subr.mxu0 0.0
        %3640 = vmatpush1.msra.mxu0 0.0
        %3641 = vmatprep.subr.mxu0 0.0
        %3642 = vmatpush1.msra.mxu0 0.0
        %3643 = vmatprep.subr.mxu0 0.0
        %3644 = vmatpush1.msra.mxu0 0.0
        %3645 = vmatprep.subr.mxu0 0.0
        %3646 = vmatpush1.msra.mxu0 0.0
        %3647 = vmatprep.subr.mxu0 0.0
        %3648 = vmatpush1.msra.mxu0 0.0
        %3649 = vmatprep.subr.mxu0 0.0
        %3650 = vmatpush1.msra.mxu0 0.0
        %3651 = vmatprep.subr.mxu0 0.0
        %3652 = vmatpush1.msra.mxu0 0.0
        %3653 = vmatprep.subr.mxu0 0.0
        %3654 = vmatpush1.msra.mxu0 0.0
        %3655 = vmatprep.subr.mxu0 0.0
        %3656 = vmatpush1.msra.mxu0 0.0
        %3657 = vmatprep.subr.mxu0 0.0
        %3658 = vmatpush1.msra.mxu0 0.0
        %3659 = vmatprep.subr.mxu0 0.0
        %3660 = vmatpush1.msra.mxu0 0.0
        %3661 = vmatprep.subr.mxu0 0.0
        %3662 = vmatpush1.msra.mxu0 0.0
        %3663 = vmatprep.subr.mxu0 0.0
        %3664 = vmatpush1.msra.mxu0 0.0
        %3665 = vmatprep.subr.mxu0 %v3550
        %3666 = vmatpush1.msra.mxu0 %v3549
        %3667 = vmatprep.subr.mxu0 %v3546
        %3668 = vmatpush1.msra.mxu0 %v3545
        %3669 = vmatprep.subr.mxu0 0.0
        %3670 = vmatpush2.msra.mxu0 0.0
        %3671 = vmatprep.subr.mxu0 0.0
        %3672 = vmatpush2.msra.mxu0 0.0
        %3673 = vmatprep.subr.mxu0 0.0
        %3674 = vmatpush2.msra.mxu0 0.0
        %3675 = vmatprep.subr.mxu0 0.0
        %3676 = vmatpush2.msra.mxu0 0.0
        %3677 = vmatprep.subr.mxu0 0.0
        %3678 = vmatpush2.msra.mxu0 0.0
        %3679 = vmatprep.subr.mxu0 0.0
        %3680 = vmatpush2.msra.mxu0 0.0
        %3681 = vmatprep.subr.mxu0 0.0
        %3682 = vmatpush2.msra.mxu0 0.0
        %3683 = vmatprep.subr.mxu0 0.0
        %3684 = vmatpush2.msra.mxu0 0.0
        %3685 = vmatprep.subr.mxu0 0.0
        %3686 = vmatpush2.msra.mxu0 0.0
        %3687 = vmatprep.subr.mxu0 0.0
        %3688 = vmatpush2.msra.mxu0 0.0
        %3689 = vmatprep.subr.mxu0 0.0
        %3690 = vmatpush2.msra.mxu0 0.0
        %3691 = vmatprep.subr.mxu0 0.0
        %3692 = vmatpush2.msra.mxu0 0.0
        %3693 = vmatprep.subr.mxu0 0.0
        %3694 = vmatpush2.msra.mxu0 0.0
        %3695 = vmatprep.subr.mxu0 0.0
        %3696 = vmatpush2.msra.mxu0 0.0
        %3697 = vmatprep.subr.mxu0 0.0
        %3698 = vmatpush2.msra.mxu0 0.0
        %3699 = vmatprep.subr.mxu0 0.0
        %3700 = vmatpush2.msra.mxu0 0.0
        %3701 = vmatprep.mubr.f32.mxu0 0.0
        %3702 = vmatmul.mubr.f32.gmra.mxu0 %v3555
        %v3703 = vpop.f32.mrf.mxu0
        %v3704 = vadd.f32 0.0, %v3703
        %v3705 = vpop.f32.mrf.mxu0
        %v3706 = vadd.f32 0.0, %v3705
        %3707 = vmatprep.mubr.f32.mxu0 0.0
        %3708 = vmatmul.mubr.f32.gmra.mxu0 %v3558
        %v3709 = vpop.f32.mrf.mxu0
        %v3710 = vadd.f32 0.0, %v3709
        %v3711 = vpop.f32.mrf.mxu0
        %v3712 = vadd.f32 0.0, %v3711
        %3713 = vdwg.mxu0
        %v3714 = vadd.f32 %v3511, %v3627
        %v3715 = vadd.f32 %v3512, %v3629
        %v3716 = vadd.f32 %v3513, %v3704
        %v3717 = vadd.f32 %v3514, %v3706
        %v3718 = vadd.f32 %v3515, %v3633
        %v3719 = vadd.f32 %v3516, %v3635
        %v3720 = vadd.f32 %v3517, %v3710
        %v3721 = vadd.f32 %v3518, %v3712
        %3722 = vrot.lane.b32.xlu0 %v2334, 112
        %v3723 = vpop.permute.xlu0 %3722
        %3724 = vrot.lane.b32.xlu0 %v2338, 112
        %v3725 = vpop.permute.xlu0 %3724
        %3726 = vrot.lane.b32.xlu0 %v2335, 112
        %v3727 = vpop.permute.xlu0 %3726
        %3728 = vrot.lane.b32.xlu0 %v2339, 112
        %v3729 = vpop.permute.xlu0 %3728
        %3730 = vrot.lane.b32.xlu0 %v2336, 112
        %v3731 = vpop.permute.xlu0 %3730
        %3732 = vrot.lane.b32.xlu0 %v2340, 112
        %v3733 = vpop.permute.xlu0 %3732
        %3734 = vrot.lane.b32.xlu0 %v2337, 112
        %v3735 = vpop.permute.xlu0 %3734
        %3736 = vrot.lane.b32.xlu0 %v2341, 112
        %v3737 = vpop.permute.xlu0 %3736
        %v3738 = vsel %vm1890, %v3731, %v3735
        %v3739 = vsel %vm1890, %v3733, %v3737
        %v3740 = vsel %vm1890, %v3727, %v3731
        %v3741 = vsel %vm1890, %v3729, %v3733
        %v3742 = vsel %vm1890, %v3723, %v3727
        %v3743 = vsel %vm1890, %v3725, %v3729
        %v3744 = vsel %vm1890, %v3735, %v3723
        %v3745 = vsel %vm1890, %v3737, %v3725
        %v3746 = vmul.f32 %v3742, %v1911
        %v3747 = vmul.f32 %v3740, %v1912
        %v3748 = vmul.f32 %v3738, %v1913
        %v3749 = vmul.f32 %v3744, %v1914
        %v3750 = vmul.f32 %v3743, %v1911
        %v3751 = vmul.f32 %v3741, %v1912
        %v3752 = vmul.f32 %v3739, %v1913
        %v3753 = vmul.f32 %v3745, %v1914
        %s3754 = scalar_lea.vmem [#allocation7], 112
        %v3755 = vld [vmem:[%s3754] sm:$0xff]
        %v3756 = vld [vmem:[%s3754 + $0x8] sm:$0xff]
        %v3758 = vsel %vm438, %v3755, 0
        %v3761 = vsel %vm438, %v3756, 0
        %3763 = vmatprep.subr.mxu0 0.0
        %3764 = vmatpush1.msra.mxu0 0.0
        %3765 = vmatprep.subr.mxu0 0.0
        %3766 = vmatpush1.msra.mxu0 0.0
        %3767 = vmatprep.subr.mxu0 0.0
        %3768 = vmatpush1.msra.mxu0 0.0
        %3769 = vmatprep.subr.mxu0 0.0
        %3770 = vmatpush1.msra.mxu0 0.0
        %3771 = vmatprep.subr.mxu0 0.0
        %3772 = vmatpush1.msra.mxu0 0.0
        %3773 = vmatprep.subr.mxu0 0.0
        %3774 = vmatpush1.msra.mxu0 0.0
        %3775 = vmatprep.subr.mxu0 0.0
        %3776 = vmatpush1.msra.mxu0 0.0
        %3777 = vmatprep.subr.mxu0 0.0
        %3778 = vmatpush1.msra.mxu0 0.0
        %3779 = vmatprep.subr.mxu0 0.0
        %3780 = vmatpush1.msra.mxu0 0.0
        %3781 = vmatprep.subr.mxu0 0.0
        %3782 = vmatpush1.msra.mxu0 0.0
        %3783 = vmatprep.subr.mxu0 0.0
        %3784 = vmatpush1.msra.mxu0 0.0
        %3785 = vmatprep.subr.mxu0 0.0
        %3786 = vmatpush1.msra.mxu0 0.0
        %3787 = vmatprep.subr.mxu0 0.0
        %3788 = vmatpush1.msra.mxu0 0.0
        %3789 = vmatprep.subr.mxu0 0.0
        %3790 = vmatpush1.msra.mxu0 0.0
        %3791 = vmatprep.subr.mxu0 %v3751
        %3792 = vmatpush1.msra.mxu0 %v3750
        %3793 = vmatprep.subr.mxu0 %v3747
        %3794 = vmatpush1.msra.mxu0 %v3746
        %3795 = vmatprep.subr.mxu0 0.0
        %3796 = vmatpush2.msra.mxu0 0.0
        %3797 = vmatprep.subr.mxu0 0.0
        %3798 = vmatpush2.msra.mxu0 0.0
        %3799 = vmatprep.subr.mxu0 0.0
        %3800 = vmatpush2.msra.mxu0 0.0
        %3801 = vmatprep.subr.mxu0 0.0
        %3802 = vmatpush2.msra.mxu0 0.0
        %3803 = vmatprep.subr.mxu0 0.0
        %3804 = vmatpush2.msra.mxu0 0.0
        %3805 = vmatprep.subr.mxu0 0.0
        %3806 = vmatpush2.msra.mxu0 0.0
        %3807 = vmatprep.subr.mxu0 0.0
        %3808 = vmatpush2.msra.mxu0 0.0
        %3809 = vmatprep.subr.mxu0 0.0
        %3810 = vmatpush2.msra.mxu0 0.0
        %3811 = vmatprep.subr.mxu0 0.0
        %3812 = vmatpush2.msra.mxu0 0.0
        %3813 = vmatprep.subr.mxu0 0.0
        %3814 = vmatpush2.msra.mxu0 0.0
        %3815 = vmatprep.subr.mxu0 0.0
        %3816 = vmatpush2.msra.mxu0 0.0
        %3817 = vmatprep.subr.mxu0 0.0
        %3818 = vmatpush2.msra.mxu0 0.0
        %3819 = vmatprep.subr.mxu0 0.0
        %3820 = vmatpush2.msra.mxu0 0.0
        %3821 = vmatprep.subr.mxu0 0.0
        %3822 = vmatpush2.msra.mxu0 0.0
        %3823 = vmatprep.subr.mxu0 0.0
        %3824 = vmatpush2.msra.mxu0 0.0
        %3825 = vmatprep.subr.mxu0 0.0
        %3826 = vmatpush2.msra.mxu0 0.0
        %3827 = vmatprep.mubr.f32.mxu0 0.0
        %3828 = vmatmul.mubr.f32.gmra.mxu0 %v3758
        %v3829 = vpop.f32.mrf.mxu0
        %v3830 = vadd.f32 0.0, %v3829
        %v3831 = vpop.f32.mrf.mxu0
        %v3832 = vadd.f32 0.0, %v3831
        %3833 = vmatprep.mubr.f32.mxu0 0.0
        %3834 = vmatmul.mubr.f32.gmra.mxu0 %v3761
        %v3835 = vpop.f32.mrf.mxu0
        %v3836 = vadd.f32 0.0, %v3835
        %v3837 = vpop.f32.mrf.mxu0
        %v3838 = vadd.f32 0.0, %v3837
        %3839 = vdwg.mxu0
        %3840 = vmatprep.subr.mxu0 0.0
        %3841 = vmatpush1.msra.mxu0 0.0
        %3842 = vmatprep.subr.mxu0 0.0
        %3843 = vmatpush1.msra.mxu0 0.0
        %3844 = vmatprep.subr.mxu0 0.0
        %3845 = vmatpush1.msra.mxu0 0.0
        %3846 = vmatprep.subr.mxu0 0.0
        %3847 = vmatpush1.msra.mxu0 0.0
        %3848 = vmatprep.subr.mxu0 0.0
        %3849 = vmatpush1.msra.mxu0 0.0
        %3850 = vmatprep.subr.mxu0 0.0
        %3851 = vmatpush1.msra.mxu0 0.0
        %3852 = vmatprep.subr.mxu0 0.0
        %3853 = vmatpush1.msra.mxu0 0.0
        %3854 = vmatprep.subr.mxu0 0.0
        %3855 = vmatpush1.msra.mxu0 0.0
        %3856 = vmatprep.subr.mxu0 0.0
        %3857 = vmatpush1.msra.mxu0 0.0
        %3858 = vmatprep.subr.mxu0 0.0
        %3859 = vmatpush1.msra.mxu0 0.0
        %3860 = vmatprep.subr.mxu0 0.0
        %3861 = vmatpush1.msra.mxu0 0.0
        %3862 = vmatprep.subr.mxu0 0.0
        %3863 = vmatpush1.msra.mxu0 0.0
        %3864 = vmatprep.subr.mxu0 0.0
        %3865 = vmatpush1.msra.mxu0 0.0
        %3866 = vmatprep.subr.mxu0 0.0
        %3867 = vmatpush1.msra.mxu0 0.0
        %3868 = vmatprep.subr.mxu0 %v3753
        %3869 = vmatpush1.msra.mxu0 %v3752
        %3870 = vmatprep.subr.mxu0 %v3749
        %3871 = vmatpush1.msra.mxu0 %v3748
        %3872 = vmatprep.subr.mxu0 0.0
        %3873 = vmatpush2.msra.mxu0 0.0
        %3874 = vmatprep.subr.mxu0 0.0
        %3875 = vmatpush2.msra.mxu0 0.0
        %3876 = vmatprep.subr.mxu0 0.0
        %3877 = vmatpush2.msra.mxu0 0.0
        %3878 = vmatprep.subr.mxu0 0.0
        %3879 = vmatpush2.msra.mxu0 0.0
        %3880 = vmatprep.subr.mxu0 0.0
        %3881 = vmatpush2.msra.mxu0 0.0
        %3882 = vmatprep.subr.mxu0 0.0
        %3883 = vmatpush2.msra.mxu0 0.0
        %3884 = vmatprep.subr.mxu0 0.0
        %3885 = vmatpush2.msra.mxu0 0.0
        %3886 = vmatprep.subr.mxu0 0.0
        %3887 = vmatpush2.msra.mxu0 0.0
        %3888 = vmatprep.subr.mxu0 0.0
        %3889 = vmatpush2.msra.mxu0 0.0
        %3890 = vmatprep.subr.mxu0 0.0
        %3891 = vmatpush2.msra.mxu0 0.0
        %3892 = vmatprep.subr.mxu0 0.0
        %3893 = vmatpush2.msra.mxu0 0.0
        %3894 = vmatprep.subr.mxu0 0.0
        %3895 = vmatpush2.msra.mxu0 0.0
        %3896 = vmatprep.subr.mxu0 0.0
        %3897 = vmatpush2.msra.mxu0 0.0
        %3898 = vmatprep.subr.mxu0 0.0
        %3899 = vmatpush2.msra.mxu0 0.0
        %3900 = vmatprep.subr.mxu0 0.0
        %3901 = vmatpush2.msra.mxu0 0.0
        %3902 = vmatprep.subr.mxu0 0.0
        %3903 = vmatpush2.msra.mxu0 0.0
        %3904 = vmatprep.mubr.f32.mxu0 0.0
        %3905 = vmatmul.mubr.f32.gmra.mxu0 %v3758
        %v3906 = vpop.f32.mrf.mxu0
        %v3907 = vadd.f32 0.0, %v3906
        %v3908 = vpop.f32.mrf.mxu0
        %v3909 = vadd.f32 0.0, %v3908
        %3910 = vmatprep.mubr.f32.mxu0 0.0
        %3911 = vmatmul.mubr.f32.gmra.mxu0 %v3761
        %v3912 = vpop.f32.mrf.mxu0
        %v3913 = vadd.f32 0.0, %v3912
        %v3914 = vpop.f32.mrf.mxu0
        %v3915 = vadd.f32 0.0, %v3914
        %3916 = vdwg.mxu0
        %v3917 = vadd.f32 %v3714, %v3830
        %v3918 = vadd.f32 %v3715, %v3832
        %v3919 = vadd.f32 %v3716, %v3907
        %v3920 = vadd.f32 %v3717, %v3909
        %v3921 = vadd.f32 %v3718, %v3836
        %v3922 = vadd.f32 %v3719, %v3838
        %v3923 = vadd.f32 %v3720, %v3913
        %v3924 = vadd.f32 %v3721, %v3915
        %3925 = vrot.lane.b32.xlu0 %v2334, 111
        %v3926 = vpop.permute.xlu0 %3925
        %3927 = vrot.lane.b32.xlu0 %v2338, 111
        %v3928 = vpop.permute.xlu0 %3927
        %3929 = vrot.lane.b32.xlu0 %v2335, 111
        %v3930 = vpop.permute.xlu0 %3929
        %3931 = vrot.lane.b32.xlu0 %v2339, 111
        %v3932 = vpop.permute.xlu0 %3931
        %3933 = vrot.lane.b32.xlu0 %v2336, 111
        %v3934 = vpop.permute.xlu0 %3933
        %3935 = vrot.lane.b32.xlu0 %v2340, 111
        %v3936 = vpop.permute.xlu0 %3935
        %3937 = vrot.lane.b32.xlu0 %v2337, 111
        %v3938 = vpop.permute.xlu0 %3937
        %3939 = vrot.lane.b32.xlu0 %v2341, 111
        %v3940 = vpop.permute.xlu0 %3939
        %v3941 = vsel %vm2110, %v3934, %v3938
        %v3942 = vsel %vm2110, %v3936, %v3940
        %v3943 = vsel %vm2110, %v3930, %v3934
        %v3944 = vsel %vm2110, %v3932, %v3936
        %v3945 = vsel %vm2110, %v3926, %v3930
        %v3946 = vsel %vm2110, %v3928, %v3932
        %v3947 = vsel %vm2110, %v3938, %v3926
        %v3948 = vsel %vm2110, %v3940, %v3928
        %v3949 = vmul.f32 %v3945, %v2131
        %v3950 = vmul.f32 %v3943, %v2132
        %v3951 = vmul.f32 %v3941, %v2133
        %v3952 = vmul.f32 %v3947, %v2134
        %v3953 = vmul.f32 %v3946, %v2131
        %v3954 = vmul.f32 %v3944, %v2132
        %v3955 = vmul.f32 %v3942, %v2133
        %v3956 = vmul.f32 %v3948, %v2134
        %s3957 = scalar_lea.vmem [#allocation7], 128
        %v3958 = vld [vmem:[%s3957] sm:$0xff]
        %v3959 = vld [vmem:[%s3957 + $0x8] sm:$0xff]
        %v3961 = vsel %vm438, %v3958, 0
        %v3964 = vsel %vm438, %v3959, 0
        %3966 = vmatprep.subr.mxu0 0.0
        %3967 = vmatpush1.msra.mxu0 0.0
        %3968 = vmatprep.subr.mxu0 0.0
        %3969 = vmatpush1.msra.mxu0 0.0
        %3970 = vmatprep.subr.mxu0 0.0
        %3971 = vmatpush1.msra.mxu0 0.0
        %3972 = vmatprep.subr.mxu0 0.0
        %3973 = vmatpush1.msra.mxu0 0.0
        %3974 = vmatprep.subr.mxu0 0.0
        %3975 = vmatpush1.msra.mxu0 0.0
        %3976 = vmatprep.subr.mxu0 0.0
        %3977 = vmatpush1.msra.mxu0 0.0
        %3978 = vmatprep.subr.mxu0 0.0
        %3979 = vmatpush1.msra.mxu0 0.0
        %3980 = vmatprep.subr.mxu0 0.0
        %3981 = vmatpush1.msra.mxu0 0.0
        %3982 = vmatprep.subr.mxu0 0.0
        %3983 = vmatpush1.msra.mxu0 0.0
        %3984 = vmatprep.subr.mxu0 0.0
        %3985 = vmatpush1.msra.mxu0 0.0
        %3986 = vmatprep.subr.mxu0 0.0
        %3987 = vmatpush1.msra.mxu0 0.0
        %3988 = vmatprep.subr.mxu0 0.0
        %3989 = vmatpush1.msra.mxu0 0.0
        %3990 = vmatprep.subr.mxu0 0.0
        %3991 = vmatpush1.msra.mxu0 0.0
        %3992 = vmatprep.subr.mxu0 0.0
        %3993 = vmatpush1.msra.mxu0 0.0
        %3994 = vmatprep.subr.mxu0 %v3954
        %3995 = vmatpush1.msra.mxu0 %v3953
        %3996 = vmatprep.subr.mxu0 %v3950
        %3997 = vmatpush1.msra.mxu0 %v3949
        %3998 = vmatprep.subr.mxu0 0.0
        %3999 = vmatpush2.msra.mxu0 0.0
        %4000 = vmatprep.subr.mxu0 0.0
        %4001 = vmatpush2.msra.mxu0 0.0
        %4002 = vmatprep.subr.mxu0 0.0
        %4003 = vmatpush2.msra.mxu0 0.0
        %4004 = vmatprep.subr.mxu0 0.0
        %4005 = vmatpush2.msra.mxu0 0.0
        %4006 = vmatprep.subr.mxu0 0.0
        %4007 = vmatpush2.msra.mxu0 0.0
        %4008 = vmatprep.subr.mxu0 0.0
        %4009 = vmatpush2.msra.mxu0 0.0
        %4010 = vmatprep.subr.mxu0 0.0
        %4011 = vmatpush2.msra.mxu0 0.0
        %4012 = vmatprep.subr.mxu0 0.0
        %4013 = vmatpush2.msra.mxu0 0.0
        %4014 = vmatprep.subr.mxu0 0.0
        %4015 = vmatpush2.msra.mxu0 0.0
        %4016 = vmatprep.subr.mxu0 0.0
        %4017 = vmatpush2.msra.mxu0 0.0
        %4018 = vmatprep.subr.mxu0 0.0
        %4019 = vmatpush2.msra.mxu0 0.0
        %4020 = vmatprep.subr.mxu0 0.0
        %4021 = vmatpush2.msra.mxu0 0.0
        %4022 = vmatprep.subr.mxu0 0.0
        %4023 = vmatpush2.msra.mxu0 0.0
        %4024 = vmatprep.subr.mxu0 0.0
        %4025 = vmatpush2.msra.mxu0 0.0
        %4026 = vmatprep.subr.mxu0 0.0
        %4027 = vmatpush2.msra.mxu0 0.0
        %4028 = vmatprep.subr.mxu0 0.0
        %4029 = vmatpush2.msra.mxu0 0.0
        %4030 = vmatprep.mubr.f32.mxu0 0.0
        %4031 = vmatmul.mubr.f32.gmra.mxu0 %v3961
        %v4032 = vpop.f32.mrf.mxu0
        %v4033 = vadd.f32 0.0, %v4032
        %v4034 = vpop.f32.mrf.mxu0
        %v4035 = vadd.f32 0.0, %v4034
        %4036 = vmatprep.mubr.f32.mxu0 0.0
        %4037 = vmatmul.mubr.f32.gmra.mxu0 %v3964
        %v4038 = vpop.f32.mrf.mxu0
        %v4039 = vadd.f32 0.0, %v4038
        %v4040 = vpop.f32.mrf.mxu0
        %v4041 = vadd.f32 0.0, %v4040
        %4042 = vdwg.mxu0
        %4043 = vmatprep.subr.mxu0 0.0
        %4044 = vmatpush1.msra.mxu0 0.0
        %4045 = vmatprep.subr.mxu0 0.0
        %4046 = vmatpush1.msra.mxu0 0.0
        %4047 = vmatprep.subr.mxu0 0.0
        %4048 = vmatpush1.msra.mxu0 0.0
        %4049 = vmatprep.subr.mxu0 0.0
        %4050 = vmatpush1.msra.mxu0 0.0
        %4051 = vmatprep.subr.mxu0 0.0
        %4052 = vmatpush1.msra.mxu0 0.0
        %4053 = vmatprep.subr.mxu0 0.0
        %4054 = vmatpush1.msra.mxu0 0.0
        %4055 = vmatprep.subr.mxu0 0.0
        %4056 = vmatpush1.msra.mxu0 0.0
        %4057 = vmatprep.subr.mxu0 0.0
        %4058 = vmatpush1.msra.mxu0 0.0
        %4059 = vmatprep.subr.mxu0 0.0
        %4060 = vmatpush1.msra.mxu0 0.0
        %4061 = vmatprep.subr.mxu0 0.0
        %4062 = vmatpush1.msra.mxu0 0.0
        %4063 = vmatprep.subr.mxu0 0.0
        %4064 = vmatpush1.msra.mxu0 0.0
        %4065 = vmatprep.subr.mxu0 0.0
        %4066 = vmatpush1.msra.mxu0 0.0
        %4067 = vmatprep.subr.mxu0 0.0
        %4068 = vmatpush1.msra.mxu0 0.0
        %4069 = vmatprep.subr.mxu0 0.0
        %4070 = vmatpush1.msra.mxu0 0.0
        %4071 = vmatprep.subr.mxu0 %v3956
        %4072 = vmatpush1.msra.mxu0 %v3955
        %4073 = vmatprep.subr.mxu0 %v3952
        %4074 = vmatpush1.msra.mxu0 %v3951
        %4075 = vmatprep.subr.mxu0 0.0
        %4076 = vmatpush2.msra.mxu0 0.0
        %4077 = vmatprep.subr.mxu0 0.0
        %4078 = vmatpush2.msra.mxu0 0.0
        %4079 = vmatprep.subr.mxu0 0.0
        %4080 = vmatpush2.msra.mxu0 0.0
        %4081 = vmatprep.subr.mxu0 0.0
        %4082 = vmatpush2.msra.mxu0 0.0
        %4083 = vmatprep.subr.mxu0 0.0
        %4084 = vmatpush2.msra.mxu0 0.0
        %4085 = vmatprep.subr.mxu0 0.0
        %4086 = vmatpush2.msra.mxu0 0.0
        %4087 = vmatprep.subr.mxu0 0.0
        %4088 = vmatpush2.msra.mxu0 0.0
        %4089 = vmatprep.subr.mxu0 0.0
        %4090 = vmatpush2.msra.mxu0 0.0
        %4091 = vmatprep.subr.mxu0 0.0
        %4092 = vmatpush2.msra.mxu0 0.0
        %4093 = vmatprep.subr.mxu0 0.0
        %4094 = vmatpush2.msra.mxu0 0.0
        %4095 = vmatprep.subr.mxu0 0.0
        %4096 = vmatpush2.msra.mxu0 0.0
        %4097 = vmatprep.subr.mxu0 0.0
        %4098 = vmatpush2.msra.mxu0 0.0
        %4099 = vmatprep.subr.mxu0 0.0
        %4100 = vmatpush2.msra.mxu0 0.0
        %4101 = vmatprep.subr.mxu0 0.0
        %4102 = vmatpush2.msra.mxu0 0.0
        %4103 = vmatprep.subr.mxu0 0.0
        %4104 = vmatpush2.msra.mxu0 0.0
        %4105 = vmatprep.subr.mxu0 0.0
        %4106 = vmatpush2.msra.mxu0 0.0
        %4107 = vmatprep.mubr.f32.mxu0 0.0
        %4108 = vmatmul.mubr.f32.gmra.mxu0 %v3961
        %v4109 = vpop.f32.mrf.mxu0
        %v4110 = vadd.f32 0.0, %v4109
        %v4111 = vpop.f32.mrf.mxu0
        %v4112 = vadd.f32 0.0, %v4111
        %4113 = vmatprep.mubr.f32.mxu0 0.0
        %4114 = vmatmul.mubr.f32.gmra.mxu0 %v3964
        %v4115 = vpop.f32.mrf.mxu0
        %v4116 = vadd.f32 0.0, %v4115
        %v4117 = vpop.f32.mrf.mxu0
        %v4118 = vadd.f32 0.0, %v4117
        %4119 = vdwg.mxu0
        %v4120 = vadd.f32 %v3917, %v4033
        %v4121 = vadd.f32 %v3918, %v4035
        %v4122 = vadd.f32 %v3919, %v4110
        %v4123 = vadd.f32 %v3920, %v4112
        %v4124 = vadd.f32 %v3921, %v4039
        %v4125 = vadd.f32 %v3922, %v4041
        %v4126 = vadd.f32 %v3923, %v4116
        %v4127 = vadd.f32 %v3924, %v4118
        %v4128 = vld [vmem:[%s4] sm:$0xff]
        %v4129 = vld [vmem:[%s4 + $0x8] sm:$0xff]
        %4131 = vset.pattern.permute.xlu0 0
        %4132 = vperm.xlu0 %4131, %v4128
        %v4133 = vpop.permute.xlu0 %4132
        %4136 = vset.pattern.permute.xlu0 0
        %4137 = vperm.xlu0 %4136, %v4129
        %v4138 = vpop.permute.xlu0 %4137
        %v4140 = vadd.f32 %v4120, %v4133
        %v4141 = vadd.f32 %v4121, %v4133
        %v4142 = vadd.f32 %v4122, %v4133
        %v4143 = vadd.f32 %v4123, %v4133
        %v4144 = vadd.f32 %v4124, %v4138
        %v4145 = vadd.f32 %v4125, %v4138
        %v4146 = vadd.f32 %v4126, %v4138
        %v4147 = vadd.f32 %v4127, %v4138
        %v4148 = vadd.f32 %v4140, %v274
        %v4149 = vadd.f32 %v4141, %v275
        %v4150 = vadd.f32 %v4142, %v276
        %v4151 = vadd.f32 %v4143, %v277
        %v4152 = vadd.f32 %v4144, %v278
        %v4153 = vadd.f32 %v4145, %v279
        %v4154 = vadd.f32 %v4146, %v280
        %v4155 = vadd.f32 %v4147, %v281
        %v4156 = vmax.f32 %v4148, 0.0
        %v4157 = vmax.f32 %v4149, 0.0
        %v4158 = vmax.f32 %v4150, 0.0
        %v4159 = vmax.f32 %v4151, 0.0
        %v4160 = vmax.f32 %v4152, 0.0
        %v4161 = vmax.f32 %v4153, 0.0
        %v4162 = vmax.f32 %v4154, 0.0
        %v4163 = vmax.f32 %v4155, 0.0
        %4164 = vst [vmem:[%s271] sm:$0xff] %v4156
        %4165 = vst [vmem:[%s271 + $0x8] sm:$0xff] %v4157
        %4166 = vst [vmem:[%s271 + $0x10] sm:$0xff] %v4158
        %4167 = vst [vmem:[%s271 + $0x18] sm:$0xff] %v4159
        %4168 = vst [vmem:[%s271 + $0x20] sm:$0xff] %v4160
        %4169 = vst [vmem:[%s271 + $0x28] sm:$0xff] %v4161
        %4170 = vst [vmem:[%s271 + $0x30] sm:$0xff] %v4162
        %4171 = vst [vmem:[%s271 + $0x38] sm:$0xff] %v4163
        %s4172 = sand.u32 %s141, 1
        %s4173 = scalar_lea.sflag [#allocation4], %s4172
        %s4174 = sand.u32 %s141, 1
        %s4175 = smul.addr %s4174, 64
        %s4176 = scalar_lea.vmem [#allocation8], %s4175
        // Predicated region
        $region53: #{tpu_custom_call.1} parent=39 // pred_check
          %p4177 = pneg %p151
        $region54: #{tpu_custom_call.1} parent=39 // pred_check_branch
          %4179 = sbr.rel (%p4177) target = $region56
        $region55: #{tpu_custom_call.1} parent=39 // pred_region
          %s4180 = smul.u32 4, %s23
          %s4182 = ssub.s32 1024, 1024
          %4183 = vsyncadd %s4173, %s4182
          %s4184 = smul.addr %s4180, 128
          %s4185 = scalar_lea.hbm %s5, %s4184
          %s4186 = sshll.u32 %s4176, 4
          %s4187 = int_to_ptr.vmem [resolvable:$true] %s4186
          %4192 = dma.vmem_to_hbm [thread:$0]  %s4187, 1024, %s4185, %s4173, 512, 1024, 32
        $region56: #{tpu_custom_call.1} parent=39 // pred_fallthru
          _
      $region40: #{tpu_custom_call.1} parent=5 // pred_fallthru
        _
      %p4193 = scmp.le.s32.totalorder 2, %s18
      // Predicated region
      $region57: #{tpu_custom_call.1} parent=5 // pred_check
        %p4194 = pneg %p4193
      $region58: #{tpu_custom_call.1} parent=5 // pred_check_branch
        %4196 = sbr.rel (%p4194) target = $region60
      $region59: #{tpu_custom_call.1} parent=5 // pred_region
        %s4197 = ssub.s32 %s18, 2
        // Predicated region
        $region61: #{tpu_custom_call.1} parent=59 // pred_check
          %p4198 = pneg %p157
        $region62: #{tpu_custom_call.1} parent=59 // pred_check_branch
          %4200 = sbr.rel (%p4198) target = $region64
        $region63: #{tpu_custom_call.1} parent=59 // pred_region
          %s4201 = sand.u32 %s142, 1
          %s4202 = scalar_lea.sflag [#allocation4], %s4201
          %s4203 = sand.u32 %s142, 1
          %s4204 = smul.addr %s4203, 64
          %s4205 = scalar_lea.vmem [#allocation8], %s4204
          %4206 = dma.done %s4202, 1024
        $region64: #{tpu_custom_call.1} parent=59 // pred_fallthru
          _
      $region60: #{tpu_custom_call.1} parent=5 // pred_fallthru
        _
    $region6: #{tpu_custom_call.1} parent=1 // loop_footer
      %s22 = sadd.s32 1, %s18
    $region7: #{tpu_custom_call.1} parent=1 // loop_footer_branch
      %17 = sbr.rel target = $region3
    $region8: #{tpu_custom_call.1} parent=1 // loop_exit
      _
    %4207 = vsyncpa [#allocation3], 1
    %s4208 = scalar_lea.sflag [#allocation3], 1
    %4209 = vsyncpa %s4208, 1
    %4210 = vsyncpa [#allocation6], 1
    %4211 = vsyncpa [#allocation4], 1
    %s4212 = scalar_lea.sflag [#allocation4], 1
    %4213 = vsyncpa %s4212, 1

</llo_original>
